<compile_context>
chip_gen: v5e
topology: v5e:2x2
jax: 0.10.0
libtpu: 0.0.40
codegen_flags: <defaults>
</compile_context>

<pallas_src>
import functools
import inspect

import jax
import jax.numpy as jnp
from jax import lax
from jax.experimental import pallas as pl
from jax.experimental.pallas import tpu as pltpu

# Older jax exposes TPUCompilerParams instead of CompilerParams.
_CompilerParams = getattr(pltpu, "CompilerParams", None) or getattr(pltpu, "TPUCompilerParams")

try:
    _COST_ESTIMATE_OK = (hasattr(pl, "CostEstimate")
                         and "cost_estimate" in inspect.signature(pl.pallas_call).parameters)
except (TypeError, ValueError):
    _COST_ESTIMATE_OK = False

ACT_DTYPE = jnp.bfloat16   # dense/conv activation+weight stream dtype (f32 accumulation)


def _parallel(n_axes=1):
    return _CompilerParams(dimension_semantics=("parallel",) * n_axes)


def _ce(flops, bytes_accessed):
    if not _COST_ESTIMATE_OK:
        return None
    return pl.CostEstimate(flops=int(flops), transcendentals=0,
                           bytes_accessed=int(bytes_accessed))


def _pallas_call(kernel, **kw):
    if kw.get("cost_estimate", None) is None:
        kw.pop("cost_estimate", None)
    return pl.pallas_call(kernel, **kw)


# ----------------------------------------------------------------------------
# Pallas kernels (channels-first: C on sublanes, N on lanes)
# ----------------------------------------------------------------------------
def _dense_kernel(x_ref, w_ref, b_ref, o_ref, *, relu):
    # out(Cout, tn) = w(Cout, Cin) @ x(Cin, tn) + b(Cout, 1)
    acc = jnp.dot(w_ref[...], x_ref[...], preferred_element_type=jnp.float32) + b_ref[...]
    if relu:
        acc = jnp.maximum(acc, 0.0)
    o_ref[...] = acc.astype(o_ref.dtype)


def _conv_add_bn_kernel(h_ref, x1_ref, w_ref, b_ref, sh_ref, o_ref, *, relu):
    # BN(eval) scale already folded into w/b and into the spectral weights that
    # produced x1 -> the tail is just relu(x1 + (w @ h + b) + shift).
    x2 = jnp.dot(w_ref[...], h_ref[...], preferred_element_type=jnp.float32) + b_ref[...]
    y = x1_ref[...] + x2 + sh_ref[...]
    if relu:
        y = jnp.maximum(y, 0.0)
    o_ref[...] = y.astype(o_ref.dtype)


def _tail_proj_kernel(h_ref, x1_ref, w_ref, b_ref, sh_ref,
                      w1_ref, b1_ref, w2_ref, b2_ref, o_ref):
    # Fused layer-3 tail + projection: fc2(relu(fc1(x1 + conv(h) + shift))).
    # The (W, tn) layer-3 activation and the (128, tn) hidden never hit HBM.
    x2 = jnp.dot(w_ref[...], h_ref[...], preferred_element_type=jnp.float32) + b_ref[...]
    t = (x1_ref[...] + x2 + sh_ref[...]).astype(w1_ref.dtype)
    u = jnp.dot(w1_ref[...], t, preferred_element_type=jnp.float32) + b1_ref[...]
    u = jnp.maximum(u, 0.0).astype(w2_ref.dtype)
    o = jnp.dot(w2_ref[...], u, preferred_element_type=jnp.float32) + b2_ref[...]
    o_ref[...] = o.astype(o_ref.dtype)


def _cmul_kernel(xr_ref, xi_ref, wr_ref, wi_ref, or_ref, oi_ref):
    # out[o, p] = sum_i (xr + j*xi)[i, p] * (wr + j*wi)[i, o, p]  (real/imag split)
    # Cin is small & static -> fully unrolled VPU MAC loop, two accumulators,
    # no cross-sublane reduce.  Kept in f32 (v5e VPU has no bf16 VALU).
    # TODO(synk): a stride-0 sublane-broadcast load (pl.ds(i, cout, stride=0))
    # would move the per-iteration broadcast into the vld; kept as an implicit
    # broadcast here for lowering robustness.
    cin = wr_ref.shape[0]
    xr = xr_ref[...]
    xi = xi_ref[...]
    accr = jnp.zeros(or_ref.shape, jnp.float32)
    acci = jnp.zeros(oi_ref.shape, jnp.float32)
    for i in range(cin):
        xr_i = xr[i:i + 1, :]          # (1, tp) -> broadcasts over Cout sublanes
        xi_i = xi[i:i + 1, :]
        wr_i = wr_ref[i]               # (Cout, tp)
        wi_i = wi_ref[i]
        accr = accr + (xr_i * wr_i - xi_i * wi_i)
        acci = acci + (xr_i * wi_i + xi_i * wr_i)
    or_ref[...] = accr
    oi_ref[...] = acci


# ----------------------------------------------------------------------------
# Wrapper helpers
# ----------------------------------------------------------------------------
def _round_up(n, m):
    return -(-n // m) * m


def _pad_lanes(a, n_pad):
    n = a.shape[-1]
    if n == n_pad:
        return a
    return jnp.pad(a, ((0, 0),) * (a.ndim - 1) + ((0, n_pad - n),))


def _pick_lane_tile(n, max_tile):
    """Largest 128-multiple tile dividing n (n already a 128-multiple), <= max_tile,
    preferring tiles that yield an EVEN grid count (keeps v7x's two TCs balanced)."""
    cands = [t for t in range(128, min(n, max_tile) + 1, 128) if n % t == 0]
    if not cands:
        return min(n, 128)
    even = [t for t in cands if (n // t) % 2 == 0]
    return max(even) if even else max(cands)


# ----------------------------------------------------------------------------
# Pallas-call wrappers
# ----------------------------------------------------------------------------
def dense_cf(x, w, b, *, relu=False, out_dtype=None, max_tile=2048):
    """Channels-first dense: out(Cout, N) = w(Cout, Cin) @ x(Cin, N) + b."""
    cin, n = x.shape
    cout = w.shape[0]
    out_dtype = out_dtype if out_dtype is not None else x.dtype
    n_pad = _round_up(n, 128)
    xp = _pad_lanes(x, n_pad)
    tn = _pick_lane_tile(n_pad, max_tile)
    bytes_io = (cin * n_pad * x.dtype.itemsize
                + cout * n_pad * jnp.dtype(out_dtype).itemsize
                + int(w.size) * w.dtype.itemsize + int(b.size) * 4)
    out = _pallas_call(
        functools.partial(_dense_kernel, relu=relu),
        out_shape=jax.ShapeDtypeStruct((cout, n_pad), out_dtype),
        grid=(n_pad // tn,),
        in_specs=[
            pl.BlockSpec((cin, tn), lambda i: (0, i)),
            pl.BlockSpec((cout, cin), lambda i: (0, 0)),
            pl.BlockSpec((cout, 1), lambda i: (0, 0)),
        ],
        out_specs=pl.BlockSpec((cout, tn), lambda i: (0, i)),
        compiler_params=_parallel(),
        cost_estimate=_ce(2 * cout * cin * n_pad, bytes_io),
    )(xp, w, b.reshape(cout, 1))
    return out if n_pad == n else out[:, :n]


def conv_add_bn_act(h, x1, w, b, shift, *, relu=True, out_dtype=None, max_tile=2048):
    """Fused per-layer tail: relu(x1 + (w @ h + b) + shift)   (BN scale pre-folded)."""
    cin, n = h.shape
    cout = w.shape[0]
    out_dtype = out_dtype if out_dtype is not None else h.dtype
    n_pad = _round_up(n, 128)
    hp = _pad_lanes(h, n_pad)
    x1p = _pad_lanes(x1, n_pad)
    tn = _pick_lane_tile(n_pad, max_tile)
    bytes_io = (cin * n_pad * h.dtype.itemsize + cout * n_pad * x1.dtype.itemsize
                + cout * n_pad * jnp.dtype(out_dtype).itemsize
                + int(w.size) * w.dtype.itemsize + 8 * cout)
    out = _pallas_call(
        functools.partial(_conv_add_bn_kernel, relu=relu),
        out_shape=jax.ShapeDtypeStruct((cout, n_pad), out_dtype),
        grid=(n_pad // tn,),
        in_specs=[
            pl.BlockSpec((cin, tn), lambda i: (0, i)),
            pl.BlockSpec((cout, tn), lambda i: (0, i)),
            pl.BlockSpec((cout, cin), lambda i: (0, 0)),
            pl.BlockSpec((cout, 1), lambda i: (0, 0)),
            pl.BlockSpec((cout, 1), lambda i: (0, 0)),
        ],
        out_specs=pl.BlockSpec((cout, tn), lambda i: (0, i)),
        compiler_params=_parallel(),
        cost_estimate=_ce(2 * cout * cin * n_pad + 3 * cout * n_pad, bytes_io),
    )(hp, x1p, w, b.reshape(cout, 1), shift.reshape(cout, 1))
    return out if n_pad == n else out[:, :n]


def tail_project(h, x1, w, b, shift, w1, b1, w2, b2, *, max_tile=512):
    """Fused layer-3 conv+residual+BN(shift) + fc1/ReLU/fc2 projection -> (1, N) f32."""
    cin, n = h.shape
    hid = w1.shape[0]
    cout = w2.shape[0]
    n_pad = _round_up(n, 128)
    hp = _pad_lanes(h, n_pad)
    x1p = _pad_lanes(x1, n_pad)
    tn = _pick_lane_tile(n_pad, max_tile)
    flops = 2 * n_pad * (cin * cin + hid * cin + cout * hid)
    bytes_io = (cin * n_pad * h.dtype.itemsize + cin * n_pad * 4 + cout * n_pad * 4
                + (int(w.size) + int(w1.size) + int(w2.size)) * 2
                + (int(b.size) + int(b1.size) + int(b2.size) + int(shift.size)) * 4)
    out = _pallas_call(
        _tail_proj_kernel,
        out_shape=jax.ShapeDtypeStruct((cout, n_pad), jnp.float32),
        grid=(n_pad // tn,),
        in_specs=[
            pl.BlockSpec((cin, tn), lambda i: (0, i)),
            pl.BlockSpec((cin, tn), lambda i: (0, i)),
            pl.BlockSpec((cin, cin), lambda i: (0, 0)),
            pl.BlockSpec((cin, 1), lambda i: (0, 0)),
            pl.BlockSpec((cin, 1), lambda i: (0, 0)),
            pl.BlockSpec((hid, cin), lambda i: (0, 0)),
            pl.BlockSpec((hid, 1), lambda i: (0, 0)),
            pl.BlockSpec((cout, hid), lambda i: (0, 0)),
            pl.BlockSpec((cout, 1), lambda i: (0, 0)),
        ],
        out_specs=pl.BlockSpec((cout, tn), lambda i: (0, i)),
        compiler_params=_parallel(),
        cost_estimate=_ce(flops, bytes_io),
    )(hp, x1p, w, b.reshape(cin, 1), shift.reshape(cin, 1),
      w1, b1.reshape(hid, 1), w2, b2.reshape(cout, 1))
    return out if n_pad == n else out[:, :n]


def complex_mode_mix(xr, xi, wr, wi, *, batch, pp, max_tile_p=512):
    """out[o, b*pp + p] = sum_i x[i, b*pp + p] * w[i, o, p]   (complex, real/imag split).

    xr/xi: (Cin, batch*pp) f32.  wr/wi: (Cin, Cout, pp) f32, pp a 128-multiple
    (low+high mode blocks packed + zero-padded).  Grid = (pp//tp, batch) with the
    mode axis OUTER so each weight block stays resident while sweeping all batches.
    """
    cin, n = xr.shape
    cout = wr.shape[1]
    tp = _pick_lane_tile(pp, max_tile_p)
    n_p = pp // tp
    flops = 8 * cin * cout * pp * batch
    bytes_io = 4 * (2 * cin * n + 2 * cout * n + 2 * cin * cout * pp)
    return _pallas_call(
        _cmul_kernel,
        out_shape=(jax.ShapeDtypeStruct((cout, n), jnp.float32),
                   jax.ShapeDtypeStruct((cout, n), jnp.float32)),
        grid=(n_p, batch),
        in_specs=[
            pl.BlockSpec((cin, tp), lambda j, b: (0, b * n_p + j)),
            pl.BlockSpec((cin, tp), lambda j, b: (0, b * n_p + j)),
            pl.BlockSpec((cin, cout, tp), lambda j, b: (0, 0, j)),
            pl.BlockSpec((cin, cout, tp), lambda j, b: (0, 0, j)),
        ],
        out_specs=(
            pl.BlockSpec((cout, tp), lambda j, b: (0, b * n_p + j)),
            pl.BlockSpec((cout, tp), lambda j, b: (0, b * n_p + j)),
        ),
        compiler_params=_parallel(2),
        cost_estimate=_ce(flops, bytes_io),
    )(xr, xi, wr, wi)


# ----------------------------------------------------------------------------
# Model (FFT glue in JAX + Pallas kernels for the heavy lifting)
# ----------------------------------------------------------------------------
def spectral_conv2d(h, dims, wr, wi, m1, m2):
    """SpectralConv2d_fast forward (BN scale pre-folded along Cout into wr/wi).

    h: (Cin, N) channels-first flat activation, N = B*V*X*Y.  Returns (Cout, N) f32.
    """
    B, V, X, Y = dims
    Cin = h.shape[0]
    Cout = wr.shape[1]
    Pp = wr.shape[2]                     # lane-padded packed (low+high) mode count
    Yr = Y // 2 + 1
    P = V * m1 * m2

    hh = h.reshape(Cin, B, V, X, Y).astype(jnp.float32)
    x_ft = jnp.fft.rfft2(hh, axes=(3, 4))                      # (Cin,B,V,X,Yr) c64

    # Pack low + high corner mode blocks along ONE lane-dense axis (no transposes).
    low = x_ft[:, :, :, :m1, :m2].reshape(Cin, B, P)
    high = x_ft[:, :, :, X - m1:, :m2].reshape(Cin, B, P)
    xm = jnp.concatenate([low, high], axis=-1)                  # (Cin, B, 2P)
    if Pp > 2 * P:
        xm = jnp.pad(xm, ((0, 0), (0, 0), (0, Pp - 2 * P)))
    xr = jnp.real(xm).reshape(Cin, B * Pp)
    xi = jnp.imag(xm).reshape(Cin, B * Pp)

    outr, outi = complex_mode_mix(xr, xi, wr, wi, batch=B, pp=Pp)   # (Cout, B*Pp)
    out = (outr + 1j * outi).reshape(Cout, B, Pp)[:, :, :2 * P]
    low_o = out[:, :, :P].reshape(Cout, B, V, m1, m2)
    high_o = out[:, :, P:].reshape(Cout, B, V, m1, m2)

    out_ft = jnp.zeros((Cout, B, V, X, Yr), dtype=jnp.complex64)
    out_ft = out_ft.at[:, :, :, :m1, :m2].set(low_o)
    out_ft = out_ft.at[:, :, :, X - m1:, :m2].set(high_o)
    x1 = jnp.fft.irfft2(out_ft, s=(X, Y), axes=(3, 4))
    return x1.reshape(Cout, B * V * X * Y).astype(jnp.float32)


def net2d_forward(x, params, *, m1, m2):
    """x: (B, V, X, Y, T_in+2) float32  ->  (B, V, X, Y, 1) float32."""
    B, V, X, Y, Cin0 = x.shape
    N = B * V * X * Y
    dims = (B, V, X, Y)

    # channels-first flat activations (C, N): C on sublanes, N on lanes; bf16 stream.
    x_cf = jnp.transpose(x, (4, 0, 1, 2, 3)).reshape(Cin0, N).astype(params["fc0_w"].dtype)
    h = dense_cf(x_cf, params["fc0_w"], params["fc0_b"])                  # (W, N) bf16

    for layer in range(3):
        x1 = spectral_conv2d(h, dims, params[f"conv{layer}_wr"],
                             params[f"conv{layer}_wi"], m1, m2)           # (W, N) f32
        h = conv_add_bn_act(h, x1, params[f"w{layer}_w"], params[f"w{layer}_b"],
                            params[f"bn{layer}_shift"], relu=True)        # (W, N) bf16

    # layer 3: conv + residual + BN(shift) fused directly into fc1/ReLU/fc2.
    x1 = spectral_conv2d(h, dims, params["conv3_wr"], params["conv3_wi"], m1, m2)
    out = tail_project(h, x1, params["w3_w"], params["w3_b"], params["bn3_shift"],
                       params["fc1_w"], params["fc1_b"],
                       params["fc2_w"], params["fc2_b"])                  # (1, N) f32
    return jnp.transpose(out.reshape(1, B, V, X, Y), (1, 2, 3, 4, 0))


# ----------------------------------------------------------------------------
# Deterministic parameter init (PyTorch-shaped) + prep-time packing/folding
# ----------------------------------------------------------------------------
def init_params(key, *, t_in, width, modes, num_vars, hidden=128):
    keys = iter(jax.random.split(key, 64))
    u = lambda shape, s=1.0: (s * jax.random.uniform(next(keys), shape)).astype(jnp.float32)
    nrm = lambda shape, s=0.1: (s * jax.random.normal(next(keys), shape)).astype(jnp.float32)

    p = {}
    p["fc0_w"] = nrm((width, t_in + 2))          # nn.Linear stored (out, in)
    p["fc0_b"] = nrm((width,))
    spec_scale = 1.0 / (width * width)
    for l in range(4):
        for tag in ("w1r", "w1i", "w2r", "w2i"):
            p[f"conv{l}_{tag}"] = u((width, width, num_vars, modes, modes), spec_scale)
        p[f"w{l}_w"] = nrm((width, width))        # Conv1d(width,width,1) weight[:, :, 0]
        p[f"w{l}_b"] = nrm((width,))
        p[f"bn{l}_g"] = 1.0 + nrm((width,), 0.05)
        p[f"bn{l}_b"] = nrm((width,), 0.05)
        p[f"bn{l}_mean"] = jnp.zeros((width,), jnp.float32)
        p[f"bn{l}_var"] = jnp.ones((width,), jnp.float32)
    p["fc1_w"] = nrm((hidden, width))
    p["fc1_b"] = nrm((hidden,))
    p["fc2_w"] = nrm((1, hidden))
    p["fc2_b"] = nrm((1,))
    return p


def prepare_params(raw, *, num_vars, modes, act_dtype=ACT_DTYPE, eps=1e-5):
    """Prep-time transform (runs once, outside the forward):
       * pack low/high spectral weight blocks into one lane-dense (Cin,Cout,Pp),
       * fold BatchNorm(eval) scale into spectral (along Cout) + 1x1-conv weights,
       * cast the dense weight streams to bf16 (biases/shifts stay f32)."""
    width = raw["fc0_w"].shape[0]
    P = num_vars * modes * modes
    Pp = _round_up(2 * P, 128)

    p = {"fc0_w": raw["fc0_w"].astype(act_dtype),
         "fc0_b": raw["fc0_b"].astype(jnp.float32)}
    for l in range(4):
        scale = raw[f"bn{l}_g"] * lax.rsqrt(raw[f"bn{l}_var"] + eps)   # (W,)
        shift = raw[f"bn{l}_b"] - raw[f"bn{l}_mean"] * scale
        wr = jnp.concatenate([raw[f"conv{l}_w1r"].reshape(width, width, P),
                              raw[f"conv{l}_w2r"].reshape(width, width, P)], axis=-1)
        wi = jnp.concatenate([raw[f"conv{l}_w1i"].reshape(width, width, P),
                              raw[f"conv{l}_w2i"].reshape(width, width, P)], axis=-1)
        wr = wr * scale[None, :, None]            # fold BN scale along Cout
        wi = wi * scale[None, :, None]
        if Pp > 2 * P:
            pad = ((0, 0), (0, 0), (0, Pp - 2 * P))
            wr, wi = jnp.pad(wr, pad), jnp.pad(wi, pad)
        p[f"conv{l}_wr"] = wr.astype(jnp.float32)
        p[f"conv{l}_wi"] = wi.astype(jnp.float32)
        p[f"w{l}_w"] = (raw[f"w{l}_w"] * scale[:, None]).astype(act_dtype)
        p[f"w{l}_b"] = (raw[f"w{l}_b"] * scale).astype(jnp.float32)
        p[f"bn{l}_shift"] = shift.astype(jnp.float32)
    p["fc1_w"] = raw["fc1_w"].astype(act_dtype)
    p["fc1_b"] = raw["fc1_b"].astype(jnp.float32)
    p["fc2_w"] = raw["fc2_w"].astype(act_dtype)
    p["fc2_b"] = raw["fc2_b"].astype(jnp.float32)
    return p


# ----------------------------------------------------------------------------
if __name__ == "__main__":
    # Small, module-consistent shapes: batch=2, num_vars=3, spatial=16x16,
    # T_in=6 (=> fc0 in = 8), width=8, modes=4, fc1 hidden=128.
    B, V, X, Y = 2, 3, 16, 16
    T_IN, WIDTH, MODES = 6, 8, 4

    key = jax.random.PRNGKey(0)
    k_x, k_p = jax.random.split(key)
    x = jax.random.normal(k_x, (B, V, X, Y, T_IN + 2), dtype=jnp.float32)
    raw = init_params(k_p, t_in=T_IN, width=WIDTH, modes=MODES, num_vars=V)
    params = prepare_params(raw, num_vars=V, modes=MODES)

    # modes are STATIC (Python ints), not part of the jitted pytree.
    fwd = jax.jit(functools.partial(net2d_forward, m1=MODES, m2=MODES))
    out = jax.block_until_ready(fwd(x, params))
    assert out.shape == (B, V, X, Y, 1)
    assert bool(jnp.all(jnp.isfinite(out)))
    print("KERNEL_OK")
</pallas_src>

<mosaic_0001>
module attributes {stable_mosaic.version = 11 : i64} {
  func.func @_dense_kernel(%arg0: i32, %arg1: memref<8x768xbf16, #tpu.memory_space<vmem>>, %arg2: memref<8x8xbf16, #tpu.memory_space<vmem>>, %arg3: memref<8x1xf32, #tpu.memory_space<vmem>>, %arg4: memref<8x768xbf16, #tpu.memory_space<vmem>>) attributes {dimension_semantics = [#tpu.dimension_semantics<parallel>], iteration_bounds = array<i64: 2>, scalar_prefetch = 0 : i64, scratch_operands = 0 : i64, tpu.core_type = #tpu.core_type<tc>, window_params = [{transform_indices = @transform_0, window_bounds = array<i64: 8, 768>}, {pipeline_mode = #tpu.pipeline_mode<synchronous>, transform_indices = @transform_1, window_bounds = array<i64: 8, 8>}, {pipeline_mode = #tpu.pipeline_mode<synchronous>, transform_indices = @transform_2, window_bounds = array<i64: 8, 1>}, {transform_indices = @transform_3, window_bounds = array<i64: 8, 768>}]} {
    %c0 = arith.constant 0 : index
    %c0_0 = arith.constant 0 : index
    %0 = vector.load %arg2[%c0, %c0_0] : memref<8x8xbf16, #tpu.memory_space<vmem>>, vector<8x8xbf16>
    %c0_1 = arith.constant 0 : index
    %c0_2 = arith.constant 0 : index
    %1 = vector.load %arg1[%c0_1, %c0_2] : memref<8x768xbf16, #tpu.memory_space<vmem>>, vector<8x768xbf16>
    %cst = arith.constant dense<0.000000e+00> : vector<8x768xf32>
    %2 = tpu.matmul %0, %1, %cst {dimension_numbers = #tpu.dot_dimension_numbers<[1], [0], [0], [1], [0, 0, 1, 1], [], []>} : vector<8x8xbf16>, vector<8x768xbf16>, vector<8x768xf32> -> vector<8x768xf32>
    %c0_3 = arith.constant 0 : index
    %c0_4 = arith.constant 0 : index
    %3 = vector.load %arg3[%c0_3, %c0_4] : memref<8x1xf32, #tpu.memory_space<vmem>>, vector<8x1xf32>
    %4 = vector.broadcast %3 : vector<8x1xf32> to vector<8x768xf32>
    %5 = arith.addf %2, %4 : vector<8x768xf32>
    %6 = arith.truncf %5 : vector<8x768xf32> to vector<8x768xbf16>
    %c0_5 = arith.constant 0 : index
    %c0_6 = arith.constant 0 : index
    %7 = vector.load %arg4[%c0_5, %c0_6] : memref<8x768xbf16, #tpu.memory_space<vmem>>, vector<8x768xbf16>
    tpu.vector_store %arg4[%c0_5, %c0_6], %6 {strides = array<i32>} : memref<8x768xbf16, #tpu.memory_space<vmem>>, vector<8x768xbf16>,
    return
  }
  func.func @transform_0(%arg0: i32) -> (i32, i32) {
    %c0_i32 = arith.constant 0 : i32
    %c0_i32_0 = arith.constant 0 : i32
    return %c0_i32, %arg0 : i32, i32
  }
  func.func @transform_1(%arg0: i32) -> (i32, i32) {
    %c0_i32 = arith.constant 0 : i32
    %c0_i32_0 = arith.constant 0 : i32
    %c0_i32_1 = arith.constant 0 : i32
    return %c0_i32, %c0_i32_0 : i32, i32
  }
  func.func @transform_2(%arg0: i32) -> (i32, i32) {
    %c0_i32 = arith.constant 0 : i32
    %c0_i32_0 = arith.constant 0 : i32
    %c0_i32_1 = arith.constant 0 : i32
    return %c0_i32, %c0_i32_0 : i32, i32
  }
  func.func @transform_3(%arg0: i32) -> (i32, i32) {
    %c0_i32 = arith.constant 0 : i32
    %c0_i32_0 = arith.constant 0 : i32
    return %c0_i32, %arg0 : i32, i32
  }
}

module attributes {stable_mosaic.version = 11 : i64} {
  func.func @_cmul_kernel(%arg0: i32, %arg1: i32, %arg2: memref<8x128xf32, #tpu.memory_space<vmem>>, %arg3: memref<8x128xf32, #tpu.memory_space<vmem>>, %arg4: memref<8x8x128xf32, #tpu.memory_space<vmem>>, %arg5: memref<8x8x128xf32, #tpu.memory_space<vmem>>, %arg6: memref<8x128xf32, #tpu.memory_space<vmem>>, %arg7: memref<8x128xf32, #tpu.memory_space<vmem>>) attributes {dimension_semantics = [#tpu.dimension_semantics<parallel>, #tpu.dimension_semantics<parallel>], iteration_bounds = array<i64: 1, 2>, scalar_prefetch = 0 : i64, scratch_operands = 0 : i64, tpu.core_type = #tpu.core_type<tc>, window_params = [{transform_indices = @transform_0, window_bounds = array<i64: 8, 128>}, {transform_indices = @transform_1, window_bounds = array<i64: 8, 128>}, {transform_indices = @transform_2, window_bounds = array<i64: 8, 8, 128>}, {transform_indices = @transform_3, window_bounds = array<i64: 8, 8, 128>}, {transform_indices = @transform_4, window_bounds = array<i64: 8, 128>}, {transform_indices = @transform_5, window_bounds = array<i64: 8, 128>}]} {
    %c0 = arith.constant 0 : index
    %c0_0 = arith.constant 0 : index
    %0 = vector.load %arg2[%c0, %c0_0] : memref<8x128xf32, #tpu.memory_space<vmem>>, vector<8x128xf32>
    %c0_1 = arith.constant 0 : index
    %c0_2 = arith.constant 0 : index
    %1 = vector.load %arg3[%c0_1, %c0_2] : memref<8x128xf32, #tpu.memory_space<vmem>>, vector<8x128xf32>
    %cst = arith.constant 0.000000e+00 : f32
    %2 = vector.broadcast %cst : f32 to vector<8x128xf32>
    %cst_3 = arith.constant 0.000000e+00 : f32
    %3 = vector.broadcast %cst_3 : f32 to vector<8x128xf32>
    %4 = vector.extract_strided_slice %0 {offsets = [0, 0], sizes = [1, 128], strides = [1, 1]} : vector<8x128xf32> to vector<1x128xf32>
    %5 = vector.extract_strided_slice %1 {offsets = [0, 0], sizes = [1, 128], strides = [1, 1]} : vector<8x128xf32> to vector<1x128xf32>
    %c0_4 = arith.constant 0 : index
    %c0_5 = arith.constant 0 : index
    %c0_6 = arith.constant 0 : index
    %6 = vector.load %arg4[%c0_4, %c0_5, %c0_6] : memref<8x8x128xf32, #tpu.memory_space<vmem>>, vector<1x8x128xf32>
    %7 = vector.shape_cast %6 : vector<1x8x128xf32> to vector<8x128xf32>
    %c0_7 = arith.constant 0 : index
    %c0_8 = arith.constant 0 : index
    %c0_9 = arith.constant 0 : index
    %8 = vector.load %arg5[%c0_7, %c0_8, %c0_9] : memref<8x8x128xf32, #tpu.memory_space<vmem>>, vector<1x8x128xf32>
    %9 = vector.shape_cast %8 : vector<1x8x128xf32> to vector<8x128xf32>
    %10 = vector.broadcast %4 : vector<1x128xf32> to vector<8x128xf32>
    %11 = arith.mulf %10, %7 : vector<8x128xf32>
    %12 = vector.broadcast %5 : vector<1x128xf32> to vector<8x128xf32>
    %13 = arith.mulf %12, %9 : vector<8x128xf32>
    %14 = arith.subf %11, %13 : vector<8x128xf32>
    %15 = arith.addf %2, %14 : vector<8x128xf32>
    %16 = vector.broadcast %4 : vector<1x128xf32> to vector<8x128xf32>
    %17 = arith.mulf %16, %9 : vector<8x128xf32>
    %18 = vector.broadcast %5 : vector<1x128xf32> to vector<8x128xf32>
    %19 = arith.mulf %18, %7 : vector<8x128xf32>
    %20 = arith.addf %17, %19 : vector<8x128xf32>
    %21 = arith.addf %3, %20 : vector<8x128xf32>
    %22 = vector.extract_strided_slice %0 {offsets = [1, 0], sizes = [1, 128], strides = [1, 1]} : vector<8x128xf32> to vector<1x128xf32>
    %23 = vector.extract_strided_slice %1 {offsets = [1, 0], sizes = [1, 128], strides = [1, 1]} : vector<8x128xf32> to vector<1x128xf32>
    %c1 = arith.constant 1 : index
    %c0_10 = arith.constant 0 : index
    %c0_11 = arith.constant 0 : index
    %24 = vector.load %arg4[%c1, %c0_10, %c0_11] : memref<8x8x128xf32, #tpu.memory_space<vmem>>, vector<1x8x128xf32>
    %25 = vector.shape_cast %24 : vector<1x8x128xf32> to vector<8x128xf32>
    %c1_12 = arith.constant 1 : index
    %c0_13 = arith.constant 0 : index
    %c0_14 = arith.constant 0 : index
    %26 = vector.load %arg5[%c1_12, %c0_13, %c0_14] : memref<8x8x128xf32, #tpu.memory_space<vmem>>, vector<1x8x128xf32>
    %27 = vector.shape_cast %26 : vector<1x8x128xf32> to vector<8x128xf32>
    %28 = vector.broadcast %22 : vector<1x128xf32> to vector<8x128xf32>
    %29 = arith.mulf %28, %25 : vector<8x128xf32>
    %30 = vector.broadcast %23 : vector<1x128xf32> to vector<8x128xf32>
    %31 = arith.mulf %30, %27 : vector<8x128xf32>
    %32 = arith.subf %29, %31 : vector<8x128xf32>
    %33 = arith.addf %15, %32 : vector<8x128xf32>
    %34 = vector.broadcast %22 : vector<1x128xf32> to vector<8x128xf32>
    %35 = arith.mulf %34, %27 : vector<8x128xf32>
    %36 = vector.broadcast %23 : vector<1x128xf32> to vector<8x128xf32>
    %37 = arith.mulf %36, %25 : vector<8x128xf32>
    %38 = arith.addf %35, %37 : vector<8x128xf32>
    %39 = arith.addf %21, %38 : vector<8x128xf32>
    %40 = vector.extract_strided_slice %0 {offsets = [2, 0], sizes = [1, 128], strides = [1, 1]} : vector<8x128xf32> to vector<1x128xf32>
    %41 = vector.extract_strided_slice %1 {offsets = [2, 0], sizes = [1, 128], strides = [1, 1]} : vector<8x128xf32> to vector<1x128xf32>
    %c2 = arith.constant 2 : index
    %c0_15 = arith.constant 0 : index
    %c0_16 = arith.constant 0 : index
    %42 = vector.load %arg4[%c2, %c0_15, %c0_16] : memref<8x8x128xf32, #tpu.memory_space<vmem>>, vector<1x8x128xf32>
    %43 = vector.shape_cast %42 : vector<1x8x128xf32> to vector<8x128xf32>
    %c2_17 = arith.constant 2 : index
    %c0_18 = arith.constant 0 : index
    %c0_19 = arith.constant 0 : index
    %44 = vector.load %arg5[%c2_17, %c0_18, %c0_19] : memref<8x8x128xf32, #tpu.memory_space<vmem>>, vector<1x8x128xf32>
    %45 = vector.shape_cast %44 : vector<1x8x128xf32> to vector<8x128xf32>
    %46 = vector.broadcast %40 : vector<1x128xf32> to vector<8x128xf32>
    %47 = arith.mulf %46, %43 : vector<8x128xf32>
    %48 = vector.broadcast %41 : vector<1x128xf32> to vector<8x128xf32>
    %49 = arith.mulf %48, %45 : vector<8x128xf32>
    %50 = arith.subf %47, %49 : vector<8x128xf32>
    %51 = arith.addf %33, %50 : vector<8x128xf32>
    %52 = vector.broadcast %40 : vector<1x128xf32> to vector<8x128xf32>
    %53 = arith.mulf %52, %45 : vector<8x128xf32>
    %54 = vector.broadcast %41 : vector<1x128xf32> to vector<8x128xf32>
    %55 = arith.mulf %54, %43 : vector<8x128xf32>
    %56 = arith.addf %53, %55 : vector<8x128xf32>
    %57 = arith.addf %39, %56 : vector<8x128xf32>
    %58 = vector.extract_strided_slice %0 {offsets = [3, 0], sizes = [1, 128], strides = [1, 1]} : vector<8x128xf32> to vector<1x128xf32>
    %59 = vector.extract_strided_slice %1 {offsets = [3, 0], sizes = [1, 128], strides = [1, 1]} : vector<8x128xf32> to vector<1x128xf32>
    %c3 = arith.constant 3 : index
    %c0_20 = arith.constant 0 : index
    %c0_21 = arith.constant 0 : index
    %60 = vector.load %arg4[%c3, %c0_20, %c0_21] : memref<8x8x128xf32, #tpu.memory_space<vmem>>, vector<1x8x128xf32>
    %61 = vector.shape_cast %60 : vector<1x8x128xf32> to vector<8x128xf32>
    %c3_22 = arith.constant 3 : index
    %c0_23 = arith.constant 0 : index
    %c0_24 = arith.constant 0 : index
    %62 = vector.load %arg5[%c3_22, %c0_23, %c0_24] : memref<8x8x128xf32, #tpu.memory_space<vmem>>, vector<1x8x128xf32>
    %63 = vector.shape_cast %62 : vector<1x8x128xf32> to vector<8x128xf32>
    %64 = vector.broadcast %58 : vector<1x128xf32> to vector<8x128xf32>
    %65 = arith.mulf %64, %61 : vector<8x128xf32>
    %66 = vector.broadcast %59 : vector<1x128xf32> to vector<8x128xf32>
    %67 = arith.mulf %66, %63 : vector<8x128xf32>
    %68 = arith.subf %65, %67 : vector<8x128xf32>
    %69 = arith.addf %51, %68 : vector<8x128xf32>
    %70 = vector.broadcast %58 : vector<1x128xf32> to vector<8x128xf32>
    %71 = arith.mulf %70, %63 : vector<8x128xf32>
    %72 = vector.broadcast %59 : vector<1x128xf32> to vector<8x128xf32>
    %73 = arith.mulf %72, %61 : vector<8x128xf32>
    %74 = arith.addf %71, %73 : vector<8x128xf32>
    %75 = arith.addf %57, %74 : vector<8x128xf32>
    %76 = vector.extract_strided_slice %0 {offsets = [4, 0], sizes = [1, 128], strides = [1, 1]} : vector<8x128xf32> to vector<1x128xf32>
    %77 = vector.extract_strided_slice %1 {offsets = [4, 0], sizes = [1, 128], strides = [1, 1]} : vector<8x128xf32> to vector<1x128xf32>
    %c4 = arith.constant 4 : index
    %c0_25 = arith.constant 0 : index
    %c0_26 = arith.constant 0 : index
    %78 = vector.load %arg4[%c4, %c0_25, %c0_26] : memref<8x8x128xf32, #tpu.memory_space<vmem>>, vector<1x8x128xf32>
    %79 = vector.shape_cast %78 : vector<1x8x128xf32> to vector<8x128xf32>
    %c4_27 = arith.constant 4 : index
    %c0_28 = arith.constant 0 : index
    %c0_29 = arith.constant 0 : index
    %80 = vector.load %arg5[%c4_27, %c0_28, %c0_29] : memref<8x8x128xf32, #tpu.memory_space<vmem>>, vector<1x8x128xf32>
    %81 = vector.shape_cast %80 : vector<1x8x128xf32> to vector<8x128xf32>
    %82 = vector.broadcast %76 : vector<1x128xf32> to vector<8x128xf32>
    %83 = arith.mulf %82, %79 : vector<8x128xf32>
    %84 = vector.broadcast %77 : vector<1x128xf32> to vector<8x128xf32>
    %85 = arith.mulf %84, %81 : vector<8x128xf32>
    %86 = arith.subf %83, %85 : vector<8x128xf32>
    %87 = arith.addf %69, %86 : vector<8x128xf32>
    %88 = vector.broadcast %76 : vector<1x128xf32> to vector<8x128xf32>
    %89 = arith.mulf %88, %81 : vector<8x128xf32>
    %90 = vector.broadcast %77 : vector<1x128xf32> to vector<8x128xf32>
    %91 = arith.mulf %90, %79 : vector<8x128xf32>
    %92 = arith.addf %89, %91 : vector<8x128xf32>
    %93 = arith.addf %75, %92 : vector<8x128xf32>
    %94 = vector.extract_strided_slice %0 {offsets = [5, 0], sizes = [1, 128], strides = [1, 1]} : vector<8x128xf32> to vector<1x128xf32>
    %95 = vector.extract_strided_slice %1 {offsets = [5, 0], sizes = [1, 128], strides = [1, 1]} : vector<8x128xf32> to vector<1x128xf32>
    %c5 = arith.constant 5 : index
    %c0_30 = arith.constant 0 : index
    %c0_31 = arith.constant 0 : index
    %96 = vector.load %arg4[%c5, %c0_30, %c0_31] : memref<8x8x128xf32, #tpu.memory_space<vmem>>, vector<1x8x128xf32>
    %97 = vector.shape_cast %96 : vector<1x8x128xf32> to vector<8x128xf32>
    %c5_32 = arith.constant 5 : index
    %c0_33 = arith.constant 0 : index
    %c0_34 = arith.constant 0 : index
    %98 = vector.load %arg5[%c5_32, %c0_33, %c0_34] : memref<8x8x128xf32, #tpu.memory_space<vmem>>, vector<1x8x128xf32>
    %99 = vector.shape_cast %98 : vector<1x8x128xf32> to vector<8x128xf32>
    %100 = vector.broadcast %94 : vector<1x128xf32> to vector<8x128xf32>
    %101 = arith.mulf %100, %97 : vector<8x128xf32>
    %102 = vector.broadcast %95 : vector<1x128xf32> to vector<8x128xf32>
    %103 = arith.mulf %102, %99 : vector<8x128xf32>
    %104 = arith.subf %101, %103 : vector<8x128xf32>
    %105 = arith.addf %87, %104 : vector<8x128xf32>
    %106 = vector.broadcast %94 : vector<1x128xf32> to vector<8x128xf32>
    %107 = arith.mulf %106, %99 : vector<8x128xf32>
    %108 = vector.broadcast %95 : vector<1x128xf32> to vector<8x128xf32>
    %109 = arith.mulf %108, %97 : vector<8x128xf32>
    %110 = arith.addf %107, %109 : vector<8x128xf32>
    %111 = arith.addf %93, %110 : vector<8x128xf32>
    %112 = vector.extract_strided_slice %0 {offsets = [6, 0], sizes = [1, 128], strides = [1, 1]} : vector<8x128xf32> to vector<1x128xf32>
    %113 = vector.extract_strided_slice %1 {offsets = [6, 0], sizes = [1, 128], strides = [1, 1]} : vector<8x128xf32> to vector<1x128xf32>
    %c6 = arith.constant 6 : index
    %c0_35 = arith.constant 0 : index
    %c0_36 = arith.constant 0 : index
    %114 = vector.load %arg4[%c6, %c0_35, %c0_36] : memref<8x8x128xf32, #tpu.memory_space<vmem>>, vector<1x8x128xf32>
    %115 = vector.shape_cast %114 : vector<1x8x128xf32> to vector<8x128xf32>
    %c6_37 = arith.constant 6 : index
    %c0_38 = arith.constant 0 : index
    %c0_39 = arith.constant 0 : index
    %116 = vector.load %arg5[%c6_37, %c0_38, %c0_39] : memref<8x8x128xf32, #tpu.memory_space<vmem>>, vector<1x8x128xf32>
    %117 = vector.shape_cast %116 : vector<1x8x128xf32> to vector<8x128xf32>
    %118 = vector.broadcast %112 : vector<1x128xf32> to vector<8x128xf32>
    %119 = arith.mulf %118, %115 : vector<8x128xf32>
    %120 = vector.broadcast %113 : vector<1x128xf32> to vector<8x128xf32>
    %121 = arith.mulf %120, %117 : vector<8x128xf32>
    %122 = arith.subf %119, %121 : vector<8x128xf32>
    %123 = arith.addf %105, %122 : vector<8x128xf32>
    %124 = vector.broadcast %112 : vector<1x128xf32> to vector<8x128xf32>
    %125 = arith.mulf %124, %117 : vector<8x128xf32>
    %126 = vector.broadcast %113 : vector<1x128xf32> to vector<8x128xf32>
    %127 = arith.mulf %126, %115 : vector<8x128xf32>
    %128 = arith.addf %125, %127 : vector<8x128xf32>
    %129 = arith.addf %111, %128 : vector<8x128xf32>
    %130 = vector.extract_strided_slice %0 {offsets = [7, 0], sizes = [1, 128], strides = [1, 1]} : vector<8x128xf32> to vector<1x128xf32>
    %131 = vector.extract_strided_slice %1 {offsets = [7, 0], sizes = [1, 128], strides = [1, 1]} : vector<8x128xf32> to vector<1x128xf32>
    %c7 = arith.constant 7 : index
    %c0_40 = arith.constant 0 : index
    %c0_41 = arith.constant 0 : index
    %132 = vector.load %arg4[%c7, %c0_40, %c0_41] : memref<8x8x128xf32, #tpu.memory_space<vmem>>, vector<1x8x128xf32>
    %133 = vector.shape_cast %132 : vector<1x8x128xf32> to vector<8x128xf32>
    %c7_42 = arith.constant 7 : index
    %c0_43 = arith.constant 0 : index
    %c0_44 = arith.constant 0 : index
    %134 = vector.load %arg5[%c7_42, %c0_43, %c0_44] : memref<8x8x128xf32, #tpu.memory_space<vmem>>, vector<1x8x128xf32>
    %135 = vector.shape_cast %134 : vector<1x8x128xf32> to vector<8x128xf32>
    %136 = vector.broadcast %130 : vector<1x128xf32> to vector<8x128xf32>
    %137 = arith.mulf %136, %133 : vector<8x128xf32>
    %138 = vector.broadcast %131 : vector<1x128xf32> to vector<8x128xf32>
    %139 = arith.mulf %138, %135 : vector<8x128xf32>
    %140 = arith.subf %137, %139 : vector<8x128xf32>
    %141 = arith.addf %123, %140 : vector<8x128xf32>
    %142 = vector.broadcast %130 : vector<1x128xf32> to vector<8x128xf32>
    %143 = arith.mulf %142, %135 : vector<8x128xf32>
    %144 = vector.broadcast %131 : vector<1x128xf32> to vector<8x128xf32>
    %145 = arith.mulf %144, %133 : vector<8x128xf32>
    %146 = arith.addf %143, %145 : vector<8x128xf32>
    %147 = arith.addf %129, %146 : vector<8x128xf32>
    %c0_45 = arith.constant 0 : index
    %c0_46 = arith.constant 0 : index
    %148 = vector.load %arg6[%c0_45, %c0_46] : memref<8x128xf32, #tpu.memory_space<vmem>>, vector<8x128xf32>
    tpu.vector_store %arg6[%c0_45, %c0_46], %141 {strides = array<i32>} : memref<8x128xf32, #tpu.memory_space<vmem>>, vector<8x128xf32>,
    %c0_47 = arith.constant 0 : index
    %c0_48 = arith.constant 0 : index
    %149 = vector.load %arg7[%c0_47, %c0_48] : memref<8x128xf32, #tpu.memory_space<vmem>>, vector<8x128xf32>
    tpu.vector_store %arg7[%c0_47, %c0_48], %147 {strides = array<i32>} : memref<8x128xf32, #tpu.memory_space<vmem>>, vector<8x128xf32>,
    return
  }
  func.func @transform_0(%arg0: i32, %arg1: i32) -> (i32, i32) {
    %c1_i32 = arith.constant 1 : i32
    %0 = arith.muli %arg1, %c1_i32 : i32
    %1 = arith.addi %0, %arg0 : i32
    %c0_i32 = arith.constant 0 : i32
    %c0_i32_0 = arith.constant 0 : i32
    return %c0_i32, %1 : i32, i32
  }
  func.func @transform_1(%arg0: i32, %arg1: i32) -> (i32, i32) {
    %c1_i32 = arith.constant 1 : i32
    %0 = arith.muli %arg1, %c1_i32 : i32
    %1 = arith.addi %0, %arg0 : i32
    %c0_i32 = arith.constant 0 : i32
    %c0_i32_0 = arith.constant 0 : i32
    return %c0_i32, %1 : i32, i32
  }
  func.func @transform_2(%arg0: i32, %arg1: i32) -> (i32, i32, i32) {
    %c0_i32 = arith.constant 0 : i32
    %c0_i32_0 = arith.constant 0 : i32
    %c0_i32_1 = arith.constant 0 : i32
    return %c0_i32, %c0_i32_0, %arg0 : i32, i32, i32
  }
  func.func @transform_3(%arg0: i32, %arg1: i32) -> (i32, i32, i32) {
    %c0_i32 = arith.constant 0 : i32
    %c0_i32_0 = arith.constant 0 : i32
    %c0_i32_1 = arith.constant 0 : i32
    return %c0_i32, %c0_i32_0, %arg0 : i32, i32, i32
  }
  func.func @transform_4(%arg0: i32, %arg1: i32) -> (i32, i32) {
    %c1_i32 = arith.constant 1 : i32
    %0 = arith.muli %arg1, %c1_i32 : i32
    %1 = arith.addi %0, %arg0 : i32
    %c0_i32 = arith.constant 0 : i32
    %c0_i32_0 = arith.constant 0 : i32
    return %c0_i32, %1 : i32, i32
  }
  func.func @transform_5(%arg0: i32, %arg1: i32) -> (i32, i32) {
    %c1_i32 = arith.constant 1 : i32
    %0 = arith.muli %arg1, %c1_i32 : i32
    %1 = arith.addi %0, %arg0 : i32
    %c0_i32 = arith.constant 0 : i32
    %c0_i32_0 = arith.constant 0 : i32
    return %c0_i32, %1 : i32, i32
  }
}

module attributes {stable_mosaic.version = 11 : i64} {
  func.func @_conv_add_bn_kernel(%arg0: i32, %arg1: memref<8x768xbf16, #tpu.memory_space<vmem>>, %arg2: memref<8x768xf32, #tpu.memory_space<vmem>>, %arg3: memref<8x8xbf16, #tpu.memory_space<vmem>>, %arg4: memref<8x1xf32, #tpu.memory_space<vmem>>, %arg5: memref<8x1xf32, #tpu.memory_space<vmem>>, %arg6: memref<8x768xbf16, #tpu.memory_space<vmem>>) attributes {dimension_semantics = [#tpu.dimension_semantics<parallel>], iteration_bounds = array<i64: 2>, scalar_prefetch = 0 : i64, scratch_operands = 0 : i64, tpu.core_type = #tpu.core_type<tc>, window_params = [{transform_indices = @transform_0, window_bounds = array<i64: 8, 768>}, {transform_indices = @transform_1, window_bounds = array<i64: 8, 768>}, {pipeline_mode = #tpu.pipeline_mode<synchronous>, transform_indices = @transform_2, window_bounds = array<i64: 8, 8>}, {pipeline_mode = #tpu.pipeline_mode<synchronous>, transform_indices = @transform_3, window_bounds = array<i64: 8, 1>}, {pipeline_mode = #tpu.pipeline_mode<synchronous>, transform_indices = @transform_4, window_bounds = array<i64: 8, 1>}, {transform_indices = @transform_5, window_bounds = array<i64: 8, 768>}]} {
    %c0 = arith.constant 0 : index
    %c0_0 = arith.constant 0 : index
    %0 = vector.load %arg3[%c0, %c0_0] : memref<8x8xbf16, #tpu.memory_space<vmem>>, vector<8x8xbf16>
    %c0_1 = arith.constant 0 : index
    %c0_2 = arith.constant 0 : index
    %1 = vector.load %arg1[%c0_1, %c0_2] : memref<8x768xbf16, #tpu.memory_space<vmem>>, vector<8x768xbf16>
    %cst = arith.constant dense<0.000000e+00> : vector<8x768xf32>
    %2 = tpu.matmul %0, %1, %cst {dimension_numbers = #tpu.dot_dimension_numbers<[1], [0], [0], [1], [0, 0, 1, 1], [], []>} : vector<8x8xbf16>, vector<8x768xbf16>, vector<8x768xf32> -> vector<8x768xf32>
    %c0_3 = arith.constant 0 : index
    %c0_4 = arith.constant 0 : index
    %3 = vector.load %arg4[%c0_3, %c0_4] : memref<8x1xf32, #tpu.memory_space<vmem>>, vector<8x1xf32>
    %4 = vector.broadcast %3 : vector<8x1xf32> to vector<8x768xf32>
    %5 = arith.addf %2, %4 : vector<8x768xf32>
    %c0_5 = arith.constant 0 : index
    %c0_6 = arith.constant 0 : index
    %6 = vector.load %arg2[%c0_5, %c0_6] : memref<8x768xf32, #tpu.memory_space<vmem>>, vector<8x768xf32>
    %7 = arith.addf %6, %5 : vector<8x768xf32>
    %c0_7 = arith.constant 0 : index
    %c0_8 = arith.constant 0 : index
    %8 = vector.load %arg5[%c0_7, %c0_8] : memref<8x1xf32, #tpu.memory_space<vmem>>, vector<8x1xf32>
    %9 = vector.broadcast %8 : vector<8x1xf32> to vector<8x768xf32>
    %10 = arith.addf %7, %9 : vector<8x768xf32>
    %cst_9 = arith.constant 0.000000e+00 : f32
    %11 = vector.broadcast %cst_9 : f32 to vector<8x768xf32>
    %12 = arith.maximumf %10, %11 : vector<8x768xf32>
    %13 = arith.truncf %12 : vector<8x768xf32> to vector<8x768xbf16>
    %c0_10 = arith.constant 0 : index
    %c0_11 = arith.constant 0 : index
    %14 = vector.load %arg6[%c0_10, %c0_11] : memref<8x768xbf16, #tpu.memory_space<vmem>>, vector<8x768xbf16>
    tpu.vector_store %arg6[%c0_10, %c0_11], %13 {strides = array<i32>} : memref<8x768xbf16, #tpu.memory_space<vmem>>, vector<8x768xbf16>,
    return
  }
  func.func @transform_0(%arg0: i32) -> (i32, i32) {
    %c0_i32 = arith.constant 0 : i32
    %c0_i32_0 = arith.constant 0 : i32
    return %c0_i32, %arg0 : i32, i32
  }
  func.func @transform_1(%arg0: i32) -> (i32, i32) {
    %c0_i32 = arith.constant 0 : i32
    %c0_i32_0 = arith.constant 0 : i32
    return %c0_i32, %arg0 : i32, i32
  }
  func.func @transform_2(%arg0: i32) -> (i32, i32) {
    %c0_i32 = arith.constant 0 : i32
    %c0_i32_0 = arith.constant 0 : i32
    %c0_i32_1 = arith.constant 0 : i32
    return %c0_i32, %c0_i32_0 : i32, i32
  }
  func.func @transform_3(%arg0: i32) -> (i32, i32) {
    %c0_i32 = arith.constant 0 : i32
    %c0_i32_0 = arith.constant 0 : i32
    %c0_i32_1 = arith.constant 0 : i32
    return %c0_i32, %c0_i32_0 : i32, i32
  }
  func.func @transform_4(%arg0: i32) -> (i32, i32) {
    %c0_i32 = arith.constant 0 : i32
    %c0_i32_0 = arith.constant 0 : i32
    %c0_i32_1 = arith.constant 0 : i32
    return %c0_i32, %c0_i32_0 : i32, i32
  }
  func.func @transform_5(%arg0: i32) -> (i32, i32) {
    %c0_i32 = arith.constant 0 : i32
    %c0_i32_0 = arith.constant 0 : i32
    return %c0_i32, %arg0 : i32, i32
  }
}

module attributes {stable_mosaic.version = 11 : i64} {
  func.func @_tail_proj_kernel(%arg0: i32, %arg1: memref<8x384xbf16, #tpu.memory_space<vmem>>, %arg2: memref<8x384xf32, #tpu.memory_space<vmem>>, %arg3: memref<8x8xbf16, #tpu.memory_space<vmem>>, %arg4: memref<8x1xf32, #tpu.memory_space<vmem>>, %arg5: memref<8x1xf32, #tpu.memory_space<vmem>>, %arg6: memref<128x8xbf16, #tpu.memory_space<vmem>>, %arg7: memref<128x1xf32, #tpu.memory_space<vmem>>, %arg8: memref<1x128xbf16, #tpu.memory_space<vmem>>, %arg9: memref<1x1xf32, #tpu.memory_space<vmem>>, %arg10: memref<1x384xf32, #tpu.memory_space<vmem>>) attributes {dimension_semantics = [#tpu.dimension_semantics<parallel>], iteration_bounds = array<i64: 4>, scalar_prefetch = 0 : i64, scratch_operands = 0 : i64, tpu.core_type = #tpu.core_type<tc>, window_params = [{transform_indices = @transform_0, window_bounds = array<i64: 8, 384>}, {transform_indices = @transform_1, window_bounds = array<i64: 8, 384>}, {pipeline_mode = #tpu.pipeline_mode<synchronous>, transform_indices = @transform_2, window_bounds = array<i64: 8, 8>}, {pipeline_mode = #tpu.pipeline_mode<synchronous>, transform_indices = @transform_3, window_bounds = array<i64: 8, 1>}, {pipeline_mode = #tpu.pipeline_mode<synchronous>, transform_indices = @transform_4, window_bounds = array<i64: 8, 1>}, {pipeline_mode = #tpu.pipeline_mode<synchronous>, transform_indices = @transform_5, window_bounds = array<i64: 128, 8>}, {pipeline_mode = #tpu.pipeline_mode<synchronous>, transform_indices = @transform_6, window_bounds = array<i64: 128, 1>}, {pipeline_mode = #tpu.pipeline_mode<synchronous>, transform_indices = @transform_7, window_bounds = array<i64: 1, 128>}, {pipeline_mode = #tpu.pipeline_mode<synchronous>, transform_indices = @transform_8, window_bounds = array<i64: 1, 1>}, {transform_indices = @transform_9, window_bounds = array<i64: 1, 384>}]} {
    %c0 = arith.constant 0 : index
    %c0_0 = arith.constant 0 : index
    %0 = vector.load %arg3[%c0, %c0_0] : memref<8x8xbf16, #tpu.memory_space<vmem>>, vector<8x8xbf16>
    %c0_1 = arith.constant 0 : index
    %c0_2 = arith.constant 0 : index
    %1 = vector.load %arg1[%c0_1, %c0_2] : memref<8x384xbf16, #tpu.memory_space<vmem>>, vector<8x384xbf16>
    %cst = arith.constant dense<0.000000e+00> : vector<8x384xf32>
    %2 = tpu.matmul %0, %1, %cst {dimension_numbers = #tpu.dot_dimension_numbers<[1], [0], [0], [1], [0, 0, 1, 1], [], []>} : vector<8x8xbf16>, vector<8x384xbf16>, vector<8x384xf32> -> vector<8x384xf32>
    %c0_3 = arith.constant 0 : index
    %c0_4 = arith.constant 0 : index
    %3 = vector.load %arg4[%c0_3, %c0_4] : memref<8x1xf32, #tpu.memory_space<vmem>>, vector<8x1xf32>
    %4 = vector.broadcast %3 : vector<8x1xf32> to vector<8x384xf32>
    %5 = arith.addf %2, %4 : vector<8x384xf32>
    %c0_5 = arith.constant 0 : index
    %c0_6 = arith.constant 0 : index
    %6 = vector.load %arg2[%c0_5, %c0_6] : memref<8x384xf32, #tpu.memory_space<vmem>>, vector<8x384xf32>
    %7 = arith.addf %6, %5 : vector<8x384xf32>
    %c0_7 = arith.constant 0 : index
    %c0_8 = arith.constant 0 : index
    %8 = vector.load %arg5[%c0_7, %c0_8] : memref<8x1xf32, #tpu.memory_space<vmem>>, vector<8x1xf32>
    %9 = vector.broadcast %8 : vector<8x1xf32> to vector<8x384xf32>
    %10 = arith.addf %7, %9 : vector<8x384xf32>
    %11 = arith.truncf %10 : vector<8x384xf32> to vector<8x384xbf16>
    %c0_9 = arith.constant 0 : index
    %c0_10 = arith.constant 0 : index
    %12 = vector.load %arg6[%c0_9, %c0_10] : memref<128x8xbf16, #tpu.memory_space<vmem>>, vector<128x8xbf16>
    %cst_11 = arith.constant dense<0.000000e+00> : vector<128x384xf32>
    %13 = tpu.matmul %12, %11, %cst_11 {dimension_numbers = #tpu.dot_dimension_numbers<[1], [0], [0], [1], [0, 0, 1, 1], [], []>} : vector<128x8xbf16>, vector<8x384xbf16>, vector<128x384xf32> -> vector<128x384xf32>
    %c0_12 = arith.constant 0 : index
    %c0_13 = arith.constant 0 : index
    %14 = vector.load %arg7[%c0_12, %c0_13] : memref<128x1xf32, #tpu.memory_space<vmem>>, vector<128x1xf32>
    %15 = vector.broadcast %14 : vector<128x1xf32> to vector<128x384xf32>
    %16 = arith.addf %13, %15 : vector<128x384xf32>
    %cst_14 = arith.constant 0.000000e+00 : f32
    %17 = vector.broadcast %cst_14 : f32 to vector<128x384xf32>
    %18 = arith.maximumf %16, %17 : vector<128x384xf32>
    %19 = arith.truncf %18 : vector<128x384xf32> to vector<128x384xbf16>
    %c0_15 = arith.constant 0 : index
    %c0_16 = arith.constant 0 : index
    %20 = vector.load %arg8[%c0_15, %c0_16] : memref<1x128xbf16, #tpu.memory_space<vmem>>, vector<1x128xbf16>
    %cst_17 = arith.constant dense<0.000000e+00> : vector<1x384xf32>
    %21 = tpu.matmul %20, %19, %cst_17 {dimension_numbers = #tpu.dot_dimension_numbers<[1], [0], [0], [1], [0, 0, 1, 1], [], []>} : vector<1x128xbf16>, vector<128x384xbf16>, vector<1x384xf32> -> vector<1x384xf32>
    %c0_18 = arith.constant 0 : index
    %c0_19 = arith.constant 0 : index
    %22 = vector.load %arg9[%c0_18, %c0_19] : memref<1x1xf32, #tpu.memory_space<vmem>>, vector<1x1xf32>
    %23 = vector.broadcast %22 : vector<1x1xf32> to vector<1x384xf32>
    %24 = arith.addf %21, %23 : vector<1x384xf32>
    %c0_20 = arith.constant 0 : index
    %c0_21 = arith.constant 0 : index
    %25 = vector.load %arg10[%c0_20, %c0_21] : memref<1x384xf32, #tpu.memory_space<vmem>>, vector<1x384xf32>
    tpu.vector_store %arg10[%c0_20, %c0_21], %24 {strides = array<i32>} : memref<1x384xf32, #tpu.memory_space<vmem>>, vector<1x384xf32>,
    return
  }
  func.func @transform_0(%arg0: i32) -> (i32, i32) {
    %c0_i32 = arith.constant 0 : i32
    %c0_i32_0 = arith.constant 0 : i32
    return %c0_i32, %arg0 : i32, i32
  }
  func.func @transform_1(%arg0: i32) -> (i32, i32) {
    %c0_i32 = arith.constant 0 : i32
    %c0_i32_0 = arith.constant 0 : i32
    return %c0_i32, %arg0 : i32, i32
  }
  func.func @transform_2(%arg0: i32) -> (i32, i32) {
    %c0_i32 = arith.constant 0 : i32
    %c0_i32_0 = arith.constant 0 : i32
    %c0_i32_1 = arith.constant 0 : i32
    return %c0_i32, %c0_i32_0 : i32, i32
  }
  func.func @transform_3(%arg0: i32) -> (i32, i32) {
    %c0_i32 = arith.constant 0 : i32
    %c0_i32_0 = arith.constant 0 : i32
    %c0_i32_1 = arith.constant 0 : i32
    return %c0_i32, %c0_i32_0 : i32, i32
  }
  func.func @transform_4(%arg0: i32) -> (i32, i32) {
    %c0_i32 = arith.constant 0 : i32
    %c0_i32_0 = arith.constant 0 : i32
    %c0_i32_1 = arith.constant 0 : i32
    return %c0_i32, %c0_i32_0 : i32, i32
  }
  func.func @transform_5(%arg0: i32) -> (i32, i32) {
    %c0_i32 = arith.constant 0 : i32
    %c0_i32_0 = arith.constant 0 : i32
    %c0_i32_1 = arith.constant 0 : i32
    return %c0_i32, %c0_i32_0 : i32, i32
  }
  func.func @transform_6(%arg0: i32) -> (i32, i32) {
    %c0_i32 = arith.constant 0 : i32
    %c0_i32_0 = arith.constant 0 : i32
    %c0_i32_1 = arith.constant 0 : i32
    return %c0_i32, %c0_i32_0 : i32, i32
  }
  func.func @transform_7(%arg0: i32) -> (i32, i32) {
    %c0_i32 = arith.constant 0 : i32
    %c0_i32_0 = arith.constant 0 : i32
    %c0_i32_1 = arith.constant 0 : i32
    return %c0_i32, %c0_i32_0 : i32, i32
  }
  func.func @transform_8(%arg0: i32) -> (i32, i32) {
    %c0_i32 = arith.constant 0 : i32
    %c0_i32_0 = arith.constant 0 : i32
    %c0_i32_1 = arith.constant 0 : i32
    return %c0_i32, %c0_i32_0 : i32, i32
  }
  func.func @transform_9(%arg0: i32) -> (i32, i32) {
    %c0_i32 = arith.constant 0 : i32
    %c0_i32_0 = arith.constant 0 : i32
    return %c0_i32, %arg0 : i32, i32
  }
}

</mosaic_0001>

<llo_original>
// kernel: net2d_forward.9
$region0: #{net2d_forward.9}
  #allocation0 [shape = 'u32[]', space=smem, size = 0x4, offset = 0x4, fixed_abs, tag = 'smem constant byte address 0x4 - core index']
  #allocation1 [shape = 'u32[72,128]{1,0:T(1,128)}', space=vmem, size = 0x9000, scoped, tag = 'internal scratch']
  %s0 = inlined_call_operand.vmem [shape: bf16[8,1536], index: 0, kind: input, shape index: {}]
  %s1 = inlined_call_operand.vmem [shape: bf16[8,8], index: 1, kind: input, shape index: {}]
  %s2 = inlined_call_operand.vmem [shape: f32[8,1], index: 2, kind: input, shape index: {}]
  %s3 = inlined_call_operand.vmem [shape: bf16[8,1536], index: 3, kind: output, shape index: {}]
  %s4 = sld [smem:[#allocation0]]
  $region45: #{net2d_forward.9} parent=0
    _
  %s6 = ssub.s32 1, %s4
  %s7 = scalar_select 0, %s6, %s4
  loop: start=0, step=1, limit=4
  $region2: #{net2d_forward.9} parent=0 // loop_pre_header
    _
  $region3: #{net2d_forward.9} parent=0 // loop_header
    %s9 = sphi 0, %s13
    %p10 = scmp.ge.s32.totalorder %s9, 4
    %s19 = sphi 0, %s21
    %s22 = sphi 0, %s19
    %s23 = sphi 0, %s22
    %s39 = sphi 0, %s23
    %s43 = sphi 0, %s43
    %s45 = sphi 0, %s43
    %s46 = sphi 0, %s45
    %s60 = sphi 0, %s46
    %s64 = sphi 0, %s64
    %s66 = sphi 0, %s64
    %s67 = sphi 0, %s66
    %s81 = sphi 0, %s67
    %s87 = sphi 0, %s89
    %s90 = sphi 0, %s87
    %s91 = sphi 0, %s90
    %s107 = sphi 0, %s91
  $region4: #{net2d_forward.9} parent=0 // loop_header_branch
    %12 = sbr.rel (%p10) target = $region8
  $region5: #{net2d_forward.9} parent=0 // loop_body
    %s14 = ssub.s32 %s9, 1
    %s15 = ssub.s32 %s9, 2
    %s16 = sadd.s32 %s9, 1
    %s17 = ssub.s32 %s9, %s16
    %p18 = scmp.eq.s32.totalorder %s17, 0
    %s20 = sadd.s32 %s19, 1
    %s21 = scalar_select %p18, %s19, %s20
    %p24 = pneg %p18
    %p25 = scmp.eq.s32.totalorder %s9, 1
    %p26 = por %p24, %p25
    %p27 = scmp.ne.s32.totalorder %s19, %s22
    %p28 = scmp.eq.s32.totalorder %s9, 0
    %p29 = por %p27, %p28
    %p30 = scmp.ne.s32.totalorder %s19, %s22
    %p31 = scmp.eq.s32.totalorder %s14, 1
    %p32 = por %p30, %p31
    %p33 = scmp.ne.s32.totalorder %s22, %s23
    %p34 = scmp.eq.s32.totalorder %s14, 0
    %p35 = por %p33, %p34
    %p36 = scmp.ne.s32.totalorder %s22, %s23
    %p37 = scmp.eq.s32.totalorder %s15, 1
    %p38 = por %p36, %p37
    %p40 = scmp.ne.s32.totalorder %s23, %s39
    %p41 = scmp.eq.s32.totalorder %s15, 0
    %p42 = por %p40, %p41
    %s44 = sadd.s32 %s43, 1
    %p47 = scmp.eq.s32.totalorder %s9, 1
    %p48 = scmp.ne.s32.totalorder %s43, %s45
    %p49 = scmp.eq.s32.totalorder %s9, 0
    %p50 = por %p48, %p49
    %p51 = scmp.ne.s32.totalorder %s43, %s45
    %p52 = scmp.eq.s32.totalorder %s14, 1
    %p53 = por %p51, %p52
    %p54 = scmp.ne.s32.totalorder %s45, %s46
    %p55 = scmp.eq.s32.totalorder %s14, 0
    %p56 = por %p54, %p55
    %p57 = scmp.ne.s32.totalorder %s45, %s46
    %p58 = scmp.eq.s32.totalorder %s15, 1
    %p59 = por %p57, %p58
    %p61 = scmp.ne.s32.totalorder %s46, %s60
    %p62 = scmp.eq.s32.totalorder %s15, 0
    %p63 = por %p61, %p62
    %s65 = sadd.s32 %s64, 1
    %p68 = scmp.eq.s32.totalorder %s9, 1
    %p69 = scmp.ne.s32.totalorder %s64, %s66
    %p70 = scmp.eq.s32.totalorder %s9, 0
    %p71 = por %p69, %p70
    %p72 = scmp.ne.s32.totalorder %s64, %s66
    %p73 = scmp.eq.s32.totalorder %s14, 1
    %p74 = por %p72, %p73
    %p75 = scmp.ne.s32.totalorder %s66, %s67
    %p76 = scmp.eq.s32.totalorder %s14, 0
    %p77 = por %p75, %p76
    %p78 = scmp.ne.s32.totalorder %s66, %s67
    %p79 = scmp.eq.s32.totalorder %s15, 1
    %p80 = por %p78, %p79
    %p82 = scmp.ne.s32.totalorder %s67, %s81
    %p83 = scmp.eq.s32.totalorder %s15, 0
    %p84 = por %p82, %p83
    %s85 = ssub.s32 %s9, %s16
    %p86 = scmp.eq.s32.totalorder %s85, 0
    %s88 = sadd.s32 %s87, 1
    %s89 = scalar_select %p86, %s87, %s88
    %p92 = pneg %p86
    %p93 = scmp.eq.s32.totalorder %s9, 1
    %p94 = por %p92, %p93
    %p95 = scmp.ne.s32.totalorder %s87, %s90
    %p96 = scmp.eq.s32.totalorder %s9, 0
    %p97 = por %p95, %p96
    %p98 = scmp.ne.s32.totalorder %s87, %s90
    %p99 = scmp.eq.s32.totalorder %s14, 1
    %p100 = por %p98, %p99
    %p101 = scmp.ne.s32.totalorder %s90, %s91
    %p102 = scmp.eq.s32.totalorder %s14, 0
    %p103 = por %p101, %p102
    %p104 = scmp.ne.s32.totalorder %s90, %s91
    %p105 = scmp.eq.s32.totalorder %s15, 1
    %p106 = por %p104, %p105
    %p108 = scmp.ne.s32.totalorder %s91, %s107
    %p109 = scmp.eq.s32.totalorder %s15, 0
    %p110 = por %p108, %p109
    %p111 = scmp.le.s32.totalorder 1, %s9
    %p112 = scmp.lt.s32.totalorder %s9, 3
    %p113 = pnand %p111, %p112
    %p114 = pneg %p113
    // Predicated region
    $region9: #{net2d_forward.9} parent=5 // pred_check
      _
    $region10: #{net2d_forward.9} parent=5 // pred_check_branch
      %116 = sbr.rel (%p113) target = $region12
    $region11: #{net2d_forward.9} parent=5 // pred_region
      %s117 = ssub.s32 %s9, 1
      // Predicated region
      $region13: #{net2d_forward.9} parent=11 // pred_check
        %p118 = pneg %p56
      $region14: #{net2d_forward.9} parent=11 // pred_check_branch
        %120 = sbr.rel (%p118) target = $region16
      $region15: #{net2d_forward.9} parent=11 // pred_region
        _
      $region16: #{net2d_forward.9} parent=11 // pred_fallthru
        _
      // Predicated region
      $region17: #{net2d_forward.9} parent=11 // pred_check
        %p121 = pneg %p77
      $region18: #{net2d_forward.9} parent=11 // pred_check_branch
        %123 = sbr.rel (%p121) target = $region20
      $region19: #{net2d_forward.9} parent=11 // pred_region
        _
      $region20: #{net2d_forward.9} parent=11 // pred_fallthru
        _
    $region12: #{net2d_forward.9} parent=5 // pred_fallthru
      _
    %p124 = scmp.lt.s32.totalorder %s9, 2
    // Predicated region
    $region21: #{net2d_forward.9} parent=5 // pred_check
      %p125 = pneg %p124
    $region22: #{net2d_forward.9} parent=5 // pred_check_branch
      %127 = sbr.rel (%p125) target = $region24
    $region23: #{net2d_forward.9} parent=5 // pred_region
      // Predicated region
      $region25: #{net2d_forward.9} parent=23 // pred_check
        %p128 = pneg %p29
      $region26: #{net2d_forward.9} parent=23 // pred_check_branch
        %130 = sbr.rel (%p128) target = $region28
      $region27: #{net2d_forward.9} parent=23 // pred_region
        %s131 = smul.u32 6, %s9
        %p132 = scmp.lt.s32.totalorder %s131, 11
        %s133 = scalar_select %p132, %s131, 11
        %s134 = smul.addr %s133, 4
        %s135 = scalar_lea.vmem %s0, %s134
        %s136 = smul.u32 6, %s9
      $region28: #{net2d_forward.9} parent=23 // pred_fallthru
        _
    $region24: #{net2d_forward.9} parent=5 // pred_fallthru
      _
    %p137 = scmp.le.s32.totalorder 1, %s9
    %p138 = scmp.lt.s32.totalorder %s9, 3
    %p139 = pnand %p137, %p138
    %p140 = pneg %p139
    // Predicated region
    $region29: #{net2d_forward.9} parent=5 // pred_check
      _
    $region30: #{net2d_forward.9} parent=5 // pred_check_branch
      %142 = sbr.rel (%p139) target = $region32
    $region31: #{net2d_forward.9} parent=5 // pred_region
      %s143 = ssub.s32 %s9, 1
      %s144 = smul.u32 6, %s14
      %p145 = scmp.lt.s32.totalorder %s144, 11
      %s146 = scalar_select %p145, %s144, 11
      %s147 = smul.addr %s146, 4
      %s148 = scalar_lea.vmem %s0, %s147
      %p149 = pneg %p35
      %p150 = pneg %p32
      %p151 = pneg %p56
      %p152 = pneg %p53
      %p153 = pneg %p77
      %p154 = pneg %p74
      %p155 = pneg %p103
      %p156 = pneg %p100
      %s157 = smul.u32 6, %s14
      %p158 = scmp.lt.s32.totalorder %s157, 11
      %s159 = scalar_select %p158, %s157, 11
      %s160 = smul.addr %s159, 4
      %s161 = scalar_lea.vmem %s3, %s160
      %s162 = smul.u32 6, %s14
      %p163 = scmp.lt.s32.totalorder %s162, 11
      %s164 = scalar_select %p163, %s162, 11
      %s165 = smul.addr %s164, 4
      %s166 = scalar_lea.vmem %s0, %s165
      %s167 = smul.u32 6, %s14
      %s168 = smul.u32 6, %s14
      %p169 = scmp.lt.s32.totalorder %s168, 11
      %s170 = scalar_select %p169, %s168, 11
      %s171 = smul.addr %s170, 4
      %s172 = scalar_lea.vmem %s3, %s171
      %s173 = smul.u32 6, %s14
      %v175 = vld [vmem:[%s1] sm:$0xf]
      %v176 = vld [vmem:[%s166] sm:$0xff]
      %v177 = vld [vmem:[%s166 + $0x8] sm:$0xff]
      %v178 = vld [vmem:[%s166 + $0x10] sm:$0xff]
      %v179 = vld [vmem:[%s2] sm:$0xff]
      %181 = vset.pattern.permute.xlu0 0
      %182 = vperm.xlu0 %181, %v179
      %v183 = vpop.permute.xlu0 %182
      %v188 = vunpack.c.l.b16 %v176
      %v189 = vunpack.c.h.b16 %v176
      %v190 = vunpack.c.l.b16 %v177
      %v191 = vunpack.c.h.b16 %v177
      %v192 = vunpack.c.l.b16 %v178
      %v193 = vunpack.c.h.b16 %v178
      %v194 = vpack.c.b16 %v188, %v188
      %v195 = vpack.c.b16 %v189, %v189
      %v196 = vpack.c.b16 %v190, %v190
      %v197 = vpack.c.b16 %v191, %v191
      %v198 = vpack.c.b16 %v192, %v192
      %v199 = vpack.c.b16 %v193, %v193
      %vm200 = vcmask 64512
      %v202 = vsel %vm200, %v175, 0
      %vm204 = vcmask 1043456
      %v206 = vsel %vm204, %v194, 0
      %v209 = vsel %vm204, %v195, 0
      %v212 = vsel %vm204, %v196, 0
      %v215 = vsel %vm204, %v197, 0
      %v218 = vsel %vm204, %v198, 0
      %v221 = vsel %vm204, %v199, 0
      %223 = vmatpush.bf16.msra.mxu0 0
      %224 = vmatpush.bf16.msra.mxu0 0
      %225 = vmatpush.bf16.msra.mxu0 0
      %226 = vmatpush.bf16.msra.mxu0 0
      %227 = vmatpush.bf16.msra.mxu0 0
      %228 = vmatpush.bf16.msra.mxu0 0
      %229 = vmatpush.bf16.msra.mxu0 0
      %230 = vmatpush.bf16.msra.mxu0 %v206
      %231 = vmatmul.bf16.gmra.mxu0 %v202
      %v232 = vpop.f32.mrf.mxu0
      %v233 = vadd.f32 %v183, %v232
      %v234 = vpop.f32.mrf.mxu0
      %235 = vdwg.mxu0
      %236 = vmatpush.bf16.msra.mxu0 0
      %237 = vmatpush.bf16.msra.mxu0 0
      %238 = vmatpush.bf16.msra.mxu0 0
      %239 = vmatpush.bf16.msra.mxu0 0
      %240 = vmatpush.bf16.msra.mxu0 0
      %241 = vmatpush.bf16.msra.mxu0 0
      %242 = vmatpush.bf16.msra.mxu0 0
      %243 = vmatpush.bf16.msra.mxu0 %v209
      %244 = vmatmul.bf16.gmra.mxu0 %v202
      %v245 = vpop.f32.mrf.mxu0
      %v246 = vadd.f32 %v183, %v245
      %v247 = vpop.f32.mrf.mxu0
      %248 = vdwg.mxu0
      %249 = vmatpush.bf16.msra.mxu0 0
      %250 = vmatpush.bf16.msra.mxu0 0
      %251 = vmatpush.bf16.msra.mxu0 0
      %252 = vmatpush.bf16.msra.mxu0 0
      %253 = vmatpush.bf16.msra.mxu0 0
      %254 = vmatpush.bf16.msra.mxu0 0
      %255 = vmatpush.bf16.msra.mxu0 0
      %256 = vmatpush.bf16.msra.mxu0 %v212
      %257 = vmatmul.bf16.gmra.mxu0 %v202
      %v258 = vpop.f32.mrf.mxu0
      %v259 = vadd.f32 %v183, %v258
      %v260 = vpop.f32.mrf.mxu0
      %261 = vdwg.mxu0
      %262 = vmatpush.bf16.msra.mxu0 0
      %263 = vmatpush.bf16.msra.mxu0 0
      %264 = vmatpush.bf16.msra.mxu0 0
      %265 = vmatpush.bf16.msra.mxu0 0
      %266 = vmatpush.bf16.msra.mxu0 0
      %267 = vmatpush.bf16.msra.mxu0 0
      %268 = vmatpush.bf16.msra.mxu0 0
      %269 = vmatpush.bf16.msra.mxu0 %v215
      %270 = vmatmul.bf16.gmra.mxu0 %v202
      %v271 = vpop.f32.mrf.mxu0
      %v272 = vadd.f32 %v183, %v271
      %v273 = vpop.f32.mrf.mxu0
      %274 = vdwg.mxu0
      %275 = vmatpush.bf16.msra.mxu0 0
      %276 = vmatpush.bf16.msra.mxu0 0
      %277 = vmatpush.bf16.msra.mxu0 0
      %278 = vmatpush.bf16.msra.mxu0 0
      %279 = vmatpush.bf16.msra.mxu0 0
      %280 = vmatpush.bf16.msra.mxu0 0
      %281 = vmatpush.bf16.msra.mxu0 0
      %282 = vmatpush.bf16.msra.mxu0 %v218
      %283 = vmatmul.bf16.gmra.mxu0 %v202
      %v284 = vpop.f32.mrf.mxu0
      %v285 = vadd.f32 %v183, %v284
      %v286 = vpop.f32.mrf.mxu0
      %287 = vdwg.mxu0
      %288 = vmatpush.bf16.msra.mxu0 0
      %289 = vmatpush.bf16.msra.mxu0 0
      %290 = vmatpush.bf16.msra.mxu0 0
      %291 = vmatpush.bf16.msra.mxu0 0
      %292 = vmatpush.bf16.msra.mxu0 0
      %293 = vmatpush.bf16.msra.mxu0 0
      %294 = vmatpush.bf16.msra.mxu0 0
      %295 = vmatpush.bf16.msra.mxu0 %v221
      %296 = vmatmul.bf16.gmra.mxu0 %v202
      %v297 = vpop.f32.mrf.mxu0
      %v298 = vadd.f32 %v183, %v297
      %v299 = vpop.f32.mrf.mxu0
      %300 = vdwg.mxu0
      %v301 = vpack.c.bf16 %v246, %v233
      %v302 = vpack.c.bf16 %v272, %v259
      %v303 = vpack.c.bf16 %v298, %v285
      %304 = vst [vmem:[%s172] sm:$0xff] %v301
      %305 = vst [vmem:[%s172 + $0x8] sm:$0xff] %v302
      %306 = vst [vmem:[%s172 + $0x10] sm:$0xff] %v303
      %s307 = smul.u32 6, %s14
      %p308 = scmp.lt.s32.totalorder %s307, 11
      %s309 = scalar_select %p308, %s307, 11
      %s310 = smul.addr %s309, 4
      %s311 = scalar_lea.vmem %s3, %s310
      // Predicated region
      $region33: #{net2d_forward.9} parent=31 // pred_check
        %p312 = pneg %p100
      $region34: #{net2d_forward.9} parent=31 // pred_check_branch
        %314 = sbr.rel (%p312) target = $region36
      $region35: #{net2d_forward.9} parent=31 // pred_region
        %s315 = smul.u32 6, %s14
      $region36: #{net2d_forward.9} parent=31 // pred_fallthru
        _
    $region32: #{net2d_forward.9} parent=5 // pred_fallthru
      _
    %p316 = scmp.le.s32.totalorder 2, %s9
    // Predicated region
    $region37: #{net2d_forward.9} parent=5 // pred_check
      %p317 = pneg %p316
    $region38: #{net2d_forward.9} parent=5 // pred_check_branch
      %319 = sbr.rel (%p317) target = $region40
    $region39: #{net2d_forward.9} parent=5 // pred_region
      %s320 = ssub.s32 %s9, 2
      // Predicated region
      $region41: #{net2d_forward.9} parent=39 // pred_check
        %p321 = pneg %p106
      $region42: #{net2d_forward.9} parent=39 // pred_check_branch
        %323 = sbr.rel (%p321) target = $region44
      $region43: #{net2d_forward.9} parent=39 // pred_region
        %s324 = smul.u32 6, %s15
        %p325 = scmp.lt.s32.totalorder %s324, 11
        %s326 = scalar_select %p325, %s324, 11
        %s327 = smul.addr %s326, 4
        %s328 = scalar_lea.vmem %s3, %s327
      $region44: #{net2d_forward.9} parent=39 // pred_fallthru
        _
    $region40: #{net2d_forward.9} parent=5 // pred_fallthru
      _
  $region6: #{net2d_forward.9} parent=0 // loop_footer
    %s13 = sadd.s32 1, %s9
  $region7: #{net2d_forward.9} parent=0 // loop_footer_branch
    %8 = sbr.rel target = $region3
  $region8: #{net2d_forward.9} parent=0 // loop_exit
    _

// kernel: net2d_forward.10
$region0: #{net2d_forward.10}
  #allocation0 [shape = 'u32[]', space=smem, size = 0x4, offset = 0x4, fixed_abs, tag = 'smem constant byte address 0x4 - core index']
  #allocation1 [shape = 'u32[72,128]{1,0:T(1,128)}', space=vmem, size = 0x9000, scoped, tag = 'internal scratch']
  %s0 = inlined_call_operand.vmem [shape: f32[8,256], index: 0, kind: input, shape index: {}]
  %s1 = inlined_call_operand.vmem [shape: f32[8,256], index: 1, kind: input, shape index: {}]
  %s2 = inlined_call_operand.vmem [shape: f32[8,8,128], index: 2, kind: input, shape index: {}]
  %s3 = inlined_call_operand.vmem [shape: f32[8,8,128], index: 3, kind: input, shape index: {}]
  %s4 = inlined_call_operand.vmem [shape: f32[8,256], index: 4, kind: output, shape index: {0}]
  %s5 = inlined_call_operand.vmem [shape: f32[8,256], index: 5, kind: output, shape index: {1}]
  %6 = xla_tuple %s4, %s5
  %s7 = sld [smem:[#allocation0]]
  $region57: #{net2d_forward.10} parent=0
    _
  %s9 = ssub.s32 1, %s7
  %s10 = scalar_select 0, %s9, %s7
  loop: start=0, step=1, limit=4
  $region2: #{net2d_forward.10} parent=0 // loop_pre_header
    _
  $region3: #{net2d_forward.10} parent=0 // loop_header
    %s12 = sphi 0, %s16
    %p13 = scmp.ge.s32.totalorder %s12, 4
    %s19 = sphi 0, %s31
    %s20 = sphi 0, %s27
    %s21 = sphi 0, %s19
    %s22 = sphi 0, %s20
    %s23 = sphi 0, %s21
    %s24 = sphi 0, %s22
    %s36 = sphi 0, %s38
    %s39 = sphi 0, %s36
    %s40 = sphi 0, %s39
    %s56 = sphi 0, %s40
    %s64 = sphi 0, %s66
    %s67 = sphi 0, %s64
    %s68 = sphi 0, %s67
    %s84 = sphi 0, %s68
    %s90 = sphi 0, %s92
    %s93 = sphi 0, %s90
    %s94 = sphi 0, %s93
    %s110 = sphi 0, %s94
    %s116 = sphi 0, %s118
    %s119 = sphi 0, %s116
    %s120 = sphi 0, %s119
    %s136 = sphi 0, %s120
    %s144 = sphi 0, %s146
    %s147 = sphi 0, %s144
    %s148 = sphi 0, %s147
    %s164 = sphi 0, %s148
    %s172 = sphi 0, %s174
    %s175 = sphi 0, %s172
    %s176 = sphi 0, %s175
    %s192 = sphi 0, %s176
  $region4: #{net2d_forward.10} parent=0 // loop_header_branch
    %15 = sbr.rel (%p13) target = $region8
  $region5: #{net2d_forward.10} parent=0 // loop_body
    %s17 = ssub.s32 %s12, 1
    %s18 = ssub.s32 %s12, 2
    %s25 = sadd.s32 1, %s20
    %p26 = scmp.ge.s32.totalorder %s25, 2
    %s27 = scalar_select %p26, 0, %s25
    %s28 = sadd.s32 1, %s19
    %s29 = scalar_select %p26, %s28, %s19
    %p30 = scmp.ge.s32.totalorder %s29, 1
    %s31 = scalar_select %p30, 0, %s29
    %s32 = sadd.s32 %s20, %s19
    %s33 = sadd.s32 %s27, %s31
    %s34 = ssub.s32 %s32, %s33
    %p35 = scmp.eq.s32.totalorder %s34, 0
    %s37 = sadd.s32 %s36, 1
    %s38 = scalar_select %p35, %s36, %s37
    %p41 = pneg %p35
    %p42 = scmp.eq.s32.totalorder %s12, 1
    %p43 = por %p41, %p42
    %p44 = scmp.ne.s32.totalorder %s36, %s39
    %p45 = scmp.eq.s32.totalorder %s12, 0
    %p46 = por %p44, %p45
    %p47 = scmp.ne.s32.totalorder %s36, %s39
    %p48 = scmp.eq.s32.totalorder %s17, 1
    %p49 = por %p47, %p48
    %p50 = scmp.ne.s32.totalorder %s39, %s40
    %p51 = scmp.eq.s32.totalorder %s17, 0
    %p52 = por %p50, %p51
    %p53 = scmp.ne.s32.totalorder %s39, %s40
    %p54 = scmp.eq.s32.totalorder %s18, 1
    %p55 = por %p53, %p54
    %p57 = scmp.ne.s32.totalorder %s40, %s56
    %p58 = scmp.eq.s32.totalorder %s18, 0
    %p59 = por %p57, %p58
    %s60 = sadd.s32 %s20, %s19
    %s61 = sadd.s32 %s27, %s31
    %s62 = ssub.s32 %s60, %s61
    %p63 = scmp.eq.s32.totalorder %s62, 0
    %s65 = sadd.s32 %s64, 1
    %s66 = scalar_select %p63, %s64, %s65
    %p69 = pneg %p63
    %p70 = scmp.eq.s32.totalorder %s12, 1
    %p71 = por %p69, %p70
    %p72 = scmp.ne.s32.totalorder %s64, %s67
    %p73 = scmp.eq.s32.totalorder %s12, 0
    %p74 = por %p72, %p73
    %p75 = scmp.ne.s32.totalorder %s64, %s67
    %p76 = scmp.eq.s32.totalorder %s17, 1
    %p77 = por %p75, %p76
    %p78 = scmp.ne.s32.totalorder %s67, %s68
    %p79 = scmp.eq.s32.totalorder %s17, 0
    %p80 = por %p78, %p79
    %p81 = scmp.ne.s32.totalorder %s67, %s68
    %p82 = scmp.eq.s32.totalorder %s18, 1
    %p83 = por %p81, %p82
    %p85 = scmp.ne.s32.totalorder %s68, %s84
    %p86 = scmp.eq.s32.totalorder %s18, 0
    %p87 = por %p85, %p86
    %s88 = ssub.s32 %s19, %s31
    %p89 = scmp.eq.s32.totalorder %s88, 0
    %s91 = sadd.s32 %s90, 1
    %s92 = scalar_select %p89, %s90, %s91
    %p95 = pneg %p89
    %p96 = scmp.eq.s32.totalorder %s12, 1
    %p97 = por %p95, %p96
    %p98 = scmp.ne.s32.totalorder %s90, %s93
    %p99 = scmp.eq.s32.totalorder %s12, 0
    %p100 = por %p98, %p99
    %p101 = scmp.ne.s32.totalorder %s90, %s93
    %p102 = scmp.eq.s32.totalorder %s17, 1
    %p103 = por %p101, %p102
    %p104 = scmp.ne.s32.totalorder %s93, %s94
    %p105 = scmp.eq.s32.totalorder %s17, 0
    %p106 = por %p104, %p105
    %p107 = scmp.ne.s32.totalorder %s93, %s94
    %p108 = scmp.eq.s32.totalorder %s18, 1
    %p109 = por %p107, %p108
    %p111 = scmp.ne.s32.totalorder %s94, %s110
    %p112 = scmp.eq.s32.totalorder %s18, 0
    %p113 = por %p111, %p112
    %s114 = ssub.s32 %s19, %s31
    %p115 = scmp.eq.s32.totalorder %s114, 0
    %s117 = sadd.s32 %s116, 1
    %s118 = scalar_select %p115, %s116, %s117
    %p121 = pneg %p115
    %p122 = scmp.eq.s32.totalorder %s12, 1
    %p123 = por %p121, %p122
    %p124 = scmp.ne.s32.totalorder %s116, %s119
    %p125 = scmp.eq.s32.totalorder %s12, 0
    %p126 = por %p124, %p125
    %p127 = scmp.ne.s32.totalorder %s116, %s119
    %p128 = scmp.eq.s32.totalorder %s17, 1
    %p129 = por %p127, %p128
    %p130 = scmp.ne.s32.totalorder %s119, %s120
    %p131 = scmp.eq.s32.totalorder %s17, 0
    %p132 = por %p130, %p131
    %p133 = scmp.ne.s32.totalorder %s119, %s120
    %p134 = scmp.eq.s32.totalorder %s18, 1
    %p135 = por %p133, %p134
    %p137 = scmp.ne.s32.totalorder %s120, %s136
    %p138 = scmp.eq.s32.totalorder %s18, 0
    %p139 = por %p137, %p138
    %s140 = sadd.s32 %s20, %s19
    %s141 = sadd.s32 %s27, %s31
    %s142 = ssub.s32 %s140, %s141
    %p143 = scmp.eq.s32.totalorder %s142, 0
    %s145 = sadd.s32 %s144, 1
    %s146 = scalar_select %p143, %s144, %s145
    %p149 = pneg %p143
    %p150 = scmp.eq.s32.totalorder %s12, 1
    %p151 = por %p149, %p150
    %p152 = scmp.ne.s32.totalorder %s144, %s147
    %p153 = scmp.eq.s32.totalorder %s12, 0
    %p154 = por %p152, %p153
    %p155 = scmp.ne.s32.totalorder %s144, %s147
    %p156 = scmp.eq.s32.totalorder %s17, 1
    %p157 = por %p155, %p156
    %p158 = scmp.ne.s32.totalorder %s147, %s148
    %p159 = scmp.eq.s32.totalorder %s17, 0
    %p160 = por %p158, %p159
    %p161 = scmp.ne.s32.totalorder %s147, %s148
    %p162 = scmp.eq.s32.totalorder %s18, 1
    %p163 = por %p161, %p162
    %p165 = scmp.ne.s32.totalorder %s148, %s164
    %p166 = scmp.eq.s32.totalorder %s18, 0
    %p167 = por %p165, %p166
    %s168 = sadd.s32 %s20, %s19
    %s169 = sadd.s32 %s27, %s31
    %s170 = ssub.s32 %s168, %s169
    %p171 = scmp.eq.s32.totalorder %s170, 0
    %s173 = sadd.s32 %s172, 1
    %s174 = scalar_select %p171, %s172, %s173
    %p177 = pneg %p171
    %p178 = scmp.eq.s32.totalorder %s12, 1
    %p179 = por %p177, %p178
    %p180 = scmp.ne.s32.totalorder %s172, %s175
    %p181 = scmp.eq.s32.totalorder %s12, 0
    %p182 = por %p180, %p181
    %p183 = scmp.ne.s32.totalorder %s172, %s175
    %p184 = scmp.eq.s32.totalorder %s17, 1
    %p185 = por %p183, %p184
    %p186 = scmp.ne.s32.totalorder %s175, %s176
    %p187 = scmp.eq.s32.totalorder %s17, 0
    %p188 = por %p186, %p187
    %p189 = scmp.ne.s32.totalorder %s175, %s176
    %p190 = scmp.eq.s32.totalorder %s18, 1
    %p191 = por %p189, %p190
    %p193 = scmp.ne.s32.totalorder %s176, %s192
    %p194 = scmp.eq.s32.totalorder %s18, 0
    %p195 = por %p193, %p194
    %p196 = scmp.le.s32.totalorder 1, %s12
    %p197 = scmp.lt.s32.totalorder %s12, 3
    %p198 = pnand %p196, %p197
    %p199 = pneg %p198
    // Predicated region
    $region9: #{net2d_forward.10} parent=5 // pred_check
      _
    $region10: #{net2d_forward.10} parent=5 // pred_check_branch
      %201 = sbr.rel (%p198) target = $region12
    $region11: #{net2d_forward.10} parent=5 // pred_region
      %s202 = ssub.s32 %s12, 1
      // Predicated region
      $region13: #{net2d_forward.10} parent=11 // pred_check
        %p203 = pneg %p106
      $region14: #{net2d_forward.10} parent=11 // pred_check_branch
        %205 = sbr.rel (%p203) target = $region16
      $region15: #{net2d_forward.10} parent=11 // pred_region
        %p206 = scmp.lt.s32.totalorder %s21, 0
        %s207 = scalar_select %p206, %s21, 0
        %s208 = smul.addr %s207, 8
        %s209 = scalar_lea.vmem %s2, %s208
      $region16: #{net2d_forward.10} parent=11 // pred_fallthru
        _
      // Predicated region
      $region17: #{net2d_forward.10} parent=11 // pred_check
        %p210 = pneg %p132
      $region18: #{net2d_forward.10} parent=11 // pred_check_branch
        %212 = sbr.rel (%p210) target = $region20
      $region19: #{net2d_forward.10} parent=11 // pred_region
        %p213 = scmp.lt.s32.totalorder %s21, 0
        %s214 = scalar_select %p213, %s21, 0
        %s215 = smul.addr %s214, 8
        %s216 = scalar_lea.vmem %s3, %s215
      $region20: #{net2d_forward.10} parent=11 // pred_fallthru
        _
    $region12: #{net2d_forward.10} parent=5 // pred_fallthru
      _
    %p217 = scmp.lt.s32.totalorder %s12, 2
    // Predicated region
    $region21: #{net2d_forward.10} parent=5 // pred_check
      %p218 = pneg %p217
    $region22: #{net2d_forward.10} parent=5 // pred_check_branch
      %220 = sbr.rel (%p218) target = $region24
    $region23: #{net2d_forward.10} parent=5 // pred_region
      // Predicated region
      $region25: #{net2d_forward.10} parent=23 // pred_check
        %p221 = pneg %p46
      $region26: #{net2d_forward.10} parent=23 // pred_check_branch
        %223 = sbr.rel (%p221) target = $region28
      $region27: #{net2d_forward.10} parent=23 // pred_region
        %s224 = sadd.s32 %s20, %s19
        %p225 = scmp.lt.s32.totalorder %s224, 1
        %s226 = scalar_select %p225, %s224, 1
        %s227 = smul.addr %s226, 8
        %s228 = scalar_lea.vmem %s0, %s227
        %s229 = sadd.s32 %s20, %s19
      $region28: #{net2d_forward.10} parent=23 // pred_fallthru
        _
      // Predicated region
      $region29: #{net2d_forward.10} parent=23 // pred_check
        %p230 = pneg %p74
      $region30: #{net2d_forward.10} parent=23 // pred_check_branch
        %232 = sbr.rel (%p230) target = $region32
      $region31: #{net2d_forward.10} parent=23 // pred_region
        %s233 = sadd.s32 %s20, %s19
        %p234 = scmp.lt.s32.totalorder %s233, 1
        %s235 = scalar_select %p234, %s233, 1
        %s236 = smul.addr %s235, 8
        %s237 = scalar_lea.vmem %s1, %s236
        %s238 = sadd.s32 %s20, %s19
      $region32: #{net2d_forward.10} parent=23 // pred_fallthru
        _
    $region24: #{net2d_forward.10} parent=5 // pred_fallthru
      _
    %p239 = scmp.le.s32.totalorder 1, %s12
    %p240 = scmp.lt.s32.totalorder %s12, 3
    %p241 = pnand %p239, %p240
    %p242 = pneg %p241
    // Predicated region
    $region33: #{net2d_forward.10} parent=5 // pred_check
      _
    $region34: #{net2d_forward.10} parent=5 // pred_check_branch
      %244 = sbr.rel (%p241) target = $region36
    $region35: #{net2d_forward.10} parent=5 // pred_region
      %s245 = ssub.s32 %s12, 1
      %s246 = sadd.s32 %s22, %s21
      %p247 = scmp.lt.s32.totalorder %s246, 1
      %s248 = scalar_select %p247, %s246, 1
      %s249 = smul.addr %s248, 8
      %s250 = scalar_lea.vmem %s0, %s249
      %p251 = pneg %p52
      %p252 = pneg %p49
      %s253 = sadd.s32 %s22, %s21
      %p254 = scmp.lt.s32.totalorder %s253, 1
      %s255 = scalar_select %p254, %s253, 1
      %s256 = smul.addr %s255, 8
      %s257 = scalar_lea.vmem %s1, %s256
      %p258 = pneg %p80
      %p259 = pneg %p77
      %p260 = scmp.lt.s32.totalorder %s21, 0
      %s261 = scalar_select %p260, %s21, 0
      %s262 = smul.addr %s261, 8
      %s263 = scalar_lea.vmem %s2, %s262
      %p264 = pneg %p106
      %p265 = pneg %p103
      %p266 = scmp.lt.s32.totalorder %s21, 0
      %s267 = scalar_select %p266, %s21, 0
      %s268 = smul.addr %s267, 8
      %s269 = scalar_lea.vmem %s3, %s268
      %p270 = pneg %p132
      %p271 = pneg %p129
      %p272 = pneg %p160
      %p273 = pneg %p157
      %s274 = sadd.s32 %s22, %s21
      %p275 = scmp.lt.s32.totalorder %s274, 1
      %s276 = scalar_select %p275, %s274, 1
      %s277 = smul.addr %s276, 8
      %s278 = scalar_lea.vmem %s4, %s277
      %p279 = pneg %p188
      %p280 = pneg %p185
      %s281 = sadd.s32 %s22, %s21
      %p282 = scmp.lt.s32.totalorder %s281, 1
      %s283 = scalar_select %p282, %s281, 1
      %s284 = smul.addr %s283, 8
      %s285 = scalar_lea.vmem %s5, %s284
      %s286 = sadd.s32 %s22, %s21
      %p287 = scmp.lt.s32.totalorder %s286, 1
      %s288 = scalar_select %p287, %s286, 1
      %s289 = smul.addr %s288, 8
      %s290 = scalar_lea.vmem %s0, %s289
      %s291 = sadd.s32 %s22, %s21
      %s292 = sadd.s32 %s22, %s21
      %p293 = scmp.lt.s32.totalorder %s292, 1
      %s294 = scalar_select %p293, %s292, 1
      %s295 = smul.addr %s294, 8
      %s296 = scalar_lea.vmem %s1, %s295
      %s297 = sadd.s32 %s22, %s21
      %p298 = scmp.lt.s32.totalorder %s21, 0
      %s299 = scalar_select %p298, %s21, 0
      %s300 = smul.addr %s299, 8
      %s301 = scalar_lea.vmem %s2, %s300
      %p302 = scmp.lt.s32.totalorder %s21, 0
      %s303 = scalar_select %p302, %s21, 0
      %s304 = smul.addr %s303, 8
      %s305 = scalar_lea.vmem %s3, %s304
      %s306 = sadd.s32 %s22, %s21
      %p307 = scmp.lt.s32.totalorder %s306, 1
      %s308 = scalar_select %p307, %s306, 1
      %s309 = smul.addr %s308, 8
      %s310 = scalar_lea.vmem %s4, %s309
      %s311 = sadd.s32 %s22, %s21
      %s312 = sadd.s32 %s22, %s21
      %p313 = scmp.lt.s32.totalorder %s312, 1
      %s314 = scalar_select %p313, %s312, 1
      %s315 = smul.addr %s314, 8
      %s316 = scalar_lea.vmem %s5, %s315
      %s317 = sadd.s32 %s22, %s21
      %v318 = vld [vmem:[%s290] sm:$0xff]
      %v319 = vld [vmem:[%s296] sm:$0xff]
      %v320 = vld [vmem:[%s301] sm:$0xff]
      %v321 = vld [vmem:[%s305] sm:$0xff]
      %v322 = vperm.slane %v318, 0
      %v323 = vmul.f32 %v322, %v320
      %v324 = vperm.slane %v319, 0
      %v325 = vmul.f32 %v324, %v321
      %v326 = vsub.f32 %v323, %v325
      %v327 = vadd.f32 %v326, 0.0
      %v328 = vmul.f32 %v322, %v321
      %v329 = vmul.f32 %v324, %v320
      %v330 = vadd.f32 %v328, %v329
      %v331 = vadd.f32 %v330, 0.0
      %s332 = scalar_lea.vmem %s301, 8
      %v333 = vld [vmem:[%s332] sm:$0xff]
      %s334 = scalar_lea.vmem %s305, 8
      %v335 = vld [vmem:[%s334] sm:$0xff]
      %v336 = vperm.slane %v318, 1
      %v337 = vmul.f32 %v336, %v333
      %v338 = vperm.slane %v319, 1
      %v339 = vmul.f32 %v338, %v335
      %v340 = vsub.f32 %v337, %v339
      %v341 = vadd.f32 %v327, %v340
      %v342 = vmul.f32 %v336, %v335
      %v343 = vmul.f32 %v338, %v333
      %v344 = vadd.f32 %v342, %v343
      %v345 = vadd.f32 %v331, %v344
      %s346 = scalar_lea.vmem %s301, 16
      %v347 = vld [vmem:[%s346] sm:$0xff]
      %s348 = scalar_lea.vmem %s305, 16
      %v349 = vld [vmem:[%s348] sm:$0xff]
      %v350 = vperm.slane %v318, 2
      %v351 = vmul.f32 %v350, %v347
      %v352 = vperm.slane %v319, 2
      %v353 = vmul.f32 %v352, %v349
      %v354 = vsub.f32 %v351, %v353
      %v355 = vadd.f32 %v341, %v354
      %v356 = vmul.f32 %v350, %v349
      %v357 = vmul.f32 %v352, %v347
      %v358 = vadd.f32 %v356, %v357
      %v359 = vadd.f32 %v345, %v358
      %s360 = scalar_lea.vmem %s301, 24
      %v361 = vld [vmem:[%s360] sm:$0xff]
      %s362 = scalar_lea.vmem %s305, 24
      %v363 = vld [vmem:[%s362] sm:$0xff]
      %v364 = vperm.slane %v318, 3
      %v365 = vmul.f32 %v364, %v361
      %v366 = vperm.slane %v319, 3
      %v367 = vmul.f32 %v366, %v363
      %v368 = vsub.f32 %v365, %v367
      %v369 = vadd.f32 %v355, %v368
      %v370 = vmul.f32 %v364, %v363
      %v371 = vmul.f32 %v366, %v361
      %v372 = vadd.f32 %v370, %v371
      %v373 = vadd.f32 %v359, %v372
      %s374 = scalar_lea.vmem %s301, 32
      %v375 = vld [vmem:[%s374] sm:$0xff]
      %s376 = scalar_lea.vmem %s305, 32
      %v377 = vld [vmem:[%s376] sm:$0xff]
      %v378 = vperm.slane %v318, 4
      %v379 = vmul.f32 %v378, %v375
      %v380 = vperm.slane %v319, 4
      %v381 = vmul.f32 %v380, %v377
      %v382 = vsub.f32 %v379, %v381
      %v383 = vadd.f32 %v369, %v382
      %v384 = vmul.f32 %v378, %v377
      %v385 = vmul.f32 %v380, %v375
      %v386 = vadd.f32 %v384, %v385
      %v387 = vadd.f32 %v373, %v386
      %s388 = scalar_lea.vmem %s301, 40
      %v389 = vld [vmem:[%s388] sm:$0xff]
      %s390 = scalar_lea.vmem %s305, 40
      %v391 = vld [vmem:[%s390] sm:$0xff]
      %v392 = vperm.slane %v318, 5
      %v393 = vmul.f32 %v392, %v389
      %v394 = vperm.slane %v319, 5
      %v395 = vmul.f32 %v394, %v391
      %v396 = vsub.f32 %v393, %v395
      %v397 = vadd.f32 %v383, %v396
      %v398 = vmul.f32 %v392, %v391
      %v399 = vmul.f32 %v394, %v389
      %v400 = vadd.f32 %v398, %v399
      %v401 = vadd.f32 %v387, %v400
      %s402 = scalar_lea.vmem %s301, 48
      %v403 = vld [vmem:[%s402] sm:$0xff]
      %s404 = scalar_lea.vmem %s305, 48
      %v405 = vld [vmem:[%s404] sm:$0xff]
      %v406 = vperm.slane %v318, 6
      %v407 = vmul.f32 %v406, %v403
      %v408 = vperm.slane %v319, 6
      %v409 = vmul.f32 %v408, %v405
      %v410 = vsub.f32 %v407, %v409
      %v411 = vadd.f32 %v397, %v410
      %v412 = vmul.f32 %v406, %v405
      %v413 = vmul.f32 %v408, %v403
      %v414 = vadd.f32 %v412, %v413
      %v415 = vadd.f32 %v401, %v414
      %s416 = scalar_lea.vmem %s301, 56
      %v417 = vld [vmem:[%s416] sm:$0xff]
      %s418 = scalar_lea.vmem %s305, 56
      %v419 = vld [vmem:[%s418] sm:$0xff]
      %v420 = vperm.slane %v318, 7
      %v421 = vmul.f32 %v420, %v417
      %v422 = vperm.slane %v319, 7
      %v423 = vmul.f32 %v422, %v419
      %v424 = vsub.f32 %v421, %v423
      %v425 = vadd.f32 %v411, %v424
      %v426 = vmul.f32 %v420, %v419
      %v427 = vmul.f32 %v422, %v417
      %v428 = vadd.f32 %v426, %v427
      %v429 = vadd.f32 %v415, %v428
      %430 = vst [vmem:[%s310] sm:$0xff] %v425
      %431 = vst [vmem:[%s316] sm:$0xff] %v429
      %s432 = sadd.s32 %s22, %s21
      %p433 = scmp.lt.s32.totalorder %s432, 1
      %s434 = scalar_select %p433, %s432, 1
      %s435 = smul.addr %s434, 8
      %s436 = scalar_lea.vmem %s4, %s435
      %s437 = sadd.s32 %s22, %s21
      %p438 = scmp.lt.s32.totalorder %s437, 1
      %s439 = scalar_select %p438, %s437, 1
      %s440 = smul.addr %s439, 8
      %s441 = scalar_lea.vmem %s5, %s440
      // Predicated region
      $region37: #{net2d_forward.10} parent=35 // pred_check
        %p442 = pneg %p157
      $region38: #{net2d_forward.10} parent=35 // pred_check_branch
        %444 = sbr.rel (%p442) target = $region40
      $region39: #{net2d_forward.10} parent=35 // pred_region
        %s445 = sadd.s32 %s22, %s21
      $region40: #{net2d_forward.10} parent=35 // pred_fallthru
        _
      // Predicated region
      $region41: #{net2d_forward.10} parent=35 // pred_check
        %p446 = pneg %p185
      $region42: #{net2d_forward.10} parent=35 // pred_check_branch
        %448 = sbr.rel (%p446) target = $region44
      $region43: #{net2d_forward.10} parent=35 // pred_region
        %s449 = sadd.s32 %s22, %s21
      $region44: #{net2d_forward.10} parent=35 // pred_fallthru
        _
    $region36: #{net2d_forward.10} parent=5 // pred_fallthru
      _
    %p450 = scmp.le.s32.totalorder 2, %s12
    // Predicated region
    $region45: #{net2d_forward.10} parent=5 // pred_check
      %p451 = pneg %p450
    $region46: #{net2d_forward.10} parent=5 // pred_check_branch
      %453 = sbr.rel (%p451) target = $region48
    $region47: #{net2d_forward.10} parent=5 // pred_region
      %s454 = ssub.s32 %s12, 2
      // Predicated region
      $region49: #{net2d_forward.10} parent=47 // pred_check
        %p455 = pneg %p163
      $region50: #{net2d_forward.10} parent=47 // pred_check_branch
        %457 = sbr.rel (%p455) target = $region52
      $region51: #{net2d_forward.10} parent=47 // pred_region
        %s458 = sadd.s32 %s24, %s23
        %p459 = scmp.lt.s32.totalorder %s458, 1
        %s460 = scalar_select %p459, %s458, 1
        %s461 = smul.addr %s460, 8
        %s462 = scalar_lea.vmem %s4, %s461
      $region52: #{net2d_forward.10} parent=47 // pred_fallthru
        _
      // Predicated region
      $region53: #{net2d_forward.10} parent=47 // pred_check
        %p463 = pneg %p191
      $region54: #{net2d_forward.10} parent=47 // pred_check_branch
        %465 = sbr.rel (%p463) target = $region56
      $region55: #{net2d_forward.10} parent=47 // pred_region
        %s466 = sadd.s32 %s24, %s23
        %p467 = scmp.lt.s32.totalorder %s466, 1
        %s468 = scalar_select %p467, %s466, 1
        %s469 = smul.addr %s468, 8
        %s470 = scalar_lea.vmem %s5, %s469
      $region56: #{net2d_forward.10} parent=47 // pred_fallthru
        _
    $region48: #{net2d_forward.10} parent=5 // pred_fallthru
      _
  $region6: #{net2d_forward.10} parent=0 // loop_footer
    %s16 = sadd.s32 1, %s12
  $region7: #{net2d_forward.10} parent=0 // loop_footer_branch
    %11 = sbr.rel target = $region3
  $region8: #{net2d_forward.10} parent=0 // loop_exit
    _

// kernel: reverse.9
$region0: #{reverse.9}
  %s0 = inlined_call_operand.vmem [shape: f32[8,2,3,16,7], index: 0, kind: input, shape index: {}]
  %s1 = inlined_call_operand.vmem [shape: f32[8,2,3,16,7], index: 1, kind: output, shape index: {}]
  $region1: #{reverse.9} parent=0
    #allocation0 [shape = 'u8[393216]{0}', space=vmem, size = 0x60000, scoped, tag = 'operand span for operand 0']
    #allocation1 [shape = 'u8[196608]{0}', space=vmem, size = 0x30000, scoped, tag = 'operand span for operand 1']
    %s2 = scalar_lea.vmem [#allocation0], 8
    // Predicated region
    $region2: #{reverse.9} parent=1 // pred_check
      _
    $region3: #{reverse.9} parent=1 // pred_check_branch
      %4 = sbr.rel (0) target = $region5
    $region4: #{reverse.9} parent=1 // pred_region
      // Predicated region
      $region6: #{reverse.9} parent=4 // pred_check
        _
      $region7: #{reverse.9} parent=4 // pred_check_branch
        %6 = sbr.rel (0) target = $region9
      $region8: #{reverse.9} parent=4 // pred_region
        // Predicated region
        $region21: #{reverse.9} parent=8 // pred_check
          _
        $region22: #{reverse.9} parent=8 // pred_check_branch
          %116 = sbr.rel (0) target = $region24
        $region23: #{reverse.9} parent=8 // pred_region
          loop: start=0, step=1, limit=1
          $region25: #{reverse.9} parent=23 // loop_pre_header
            _
          $region26: #{reverse.9} parent=23 // loop_header
            %s118 = sphi 0, %s122
            %p119 = scmp.ge.s32.totalorder %s118, 1
            %s123 = sphi %s0, %s0
            %s124 = sphi %s2, %s2
          $region27: #{reverse.9} parent=23 // loop_header_branch
            %121 = sbr.rel (%p119) target = $region31
          $region28: #{reverse.9} parent=23 // loop_body
            %v125 = vld [vmem:[%s123] sm:$0xff]
            %126 = vst [vmem:[%s124] sm:$0xff] %v125
            %v127 = vld [vmem:[%s123 + $0x8] sm:$0xff]
            %128 = vst [vmem:[%s124 + $0x10] sm:$0xff] %v127
            %v129 = vld [vmem:[%s123 + $0x10] sm:$0xff]
            %130 = vst [vmem:[%s124 + $0x20] sm:$0xff] %v129
            %v131 = vld [vmem:[%s123 + $0x18] sm:$0xff]
            %132 = vst [vmem:[%s124 + $0x30] sm:$0xff] %v131
            %v133 = vld [vmem:[%s123 + $0x20] sm:$0xff]
            %134 = vst [vmem:[%s124 + $0x40] sm:$0xff] %v133
            %v135 = vld [vmem:[%s123 + $0x28] sm:$0xff]
            %136 = vst [vmem:[%s124 + $0x50] sm:$0xff] %v135
            %v137 = vld [vmem:[%s123 + $0x30] sm:$0xff]
            %138 = vst [vmem:[%s124 + $0x60] sm:$0xff] %v137
            %v139 = vld [vmem:[%s123 + $0x38] sm:$0xff]
            %140 = vst [vmem:[%s124 + $0x70] sm:$0xff] %v139
            %v141 = vld [vmem:[%s123 + $0x40] sm:$0xff]
            %142 = vst [vmem:[%s124 + $0x80] sm:$0xff] %v141
            %v143 = vld [vmem:[%s123 + $0x48] sm:$0xff]
            %144 = vst [vmem:[%s124 + $0x90] sm:$0xff] %v143
            %v145 = vld [vmem:[%s123 + $0x50] sm:$0xff]
            %146 = vst [vmem:[%s124 + $0xa0] sm:$0xff] %v145
            %v147 = vld [vmem:[%s123 + $0x58] sm:$0xff]
            %148 = vst [vmem:[%s124 + $0xb0] sm:$0xff] %v147
            %v149 = vld [vmem:[%s123 + $0x60] sm:$0xff]
            %150 = vst [vmem:[%s124 + $0xc0] sm:$0xff] %v149
            %v151 = vld [vmem:[%s123 + $0x68] sm:$0xff]
            %152 = vst [vmem:[%s124 + $0xd0] sm:$0xff] %v151
            %v153 = vld [vmem:[%s123 + $0x70] sm:$0xff]
            %154 = vst [vmem:[%s124 + $0xe0] sm:$0xff] %v153
            %v155 = vld [vmem:[%s123 + $0x78] sm:$0xff]
            %156 = vst [vmem:[%s124 + $0xf0] sm:$0xff] %v155
            %v157 = vld [vmem:[%s123 + $0x80] sm:$0xff]
            %158 = vst [vmem:[%s124 + $0x100] sm:$0xff] %v157
            %v159 = vld [vmem:[%s123 + $0x88] sm:$0xff]
            %160 = vst [vmem:[%s124 + $0x110] sm:$0xff] %v159
            %v161 = vld [vmem:[%s123 + $0x90] sm:$0xff]
            %162 = vst [vmem:[%s124 + $0x120] sm:$0xff] %v161
            %v163 = vld [vmem:[%s123 + $0x98] sm:$0xff]
            %164 = vst [vmem:[%s124 + $0x130] sm:$0xff] %v163
            %v165 = vld [vmem:[%s123 + $0xa0] sm:$0xff]
            %166 = vst [vmem:[%s124 + $0x140] sm:$0xff] %v165
            %v167 = vld [vmem:[%s123 + $0xa8] sm:$0xff]
            %168 = vst [vmem:[%s124 + $0x150] sm:$0xff] %v167
            %v169 = vld [vmem:[%s123 + $0xb0] sm:$0xff]
            %170 = vst [vmem:[%s124 + $0x160] sm:$0xff] %v169
            %v171 = vld [vmem:[%s123 + $0xb8] sm:$0xff]
            %172 = vst [vmem:[%s124 + $0x170] sm:$0xff] %v171
            %v173 = vld [vmem:[%s123 + $0xc0] sm:$0xff]
            %174 = vst [vmem:[%s124 + $0x180] sm:$0xff] %v173
            %v175 = vld [vmem:[%s123 + $0xc8] sm:$0xff]
            %176 = vst [vmem:[%s124 + $0x190] sm:$0xff] %v175
            %v177 = vld [vmem:[%s123 + $0xd0] sm:$0xff]
            %178 = vst [vmem:[%s124 + $0x1a0] sm:$0xff] %v177
            %v179 = vld [vmem:[%s123 + $0xd8] sm:$0xff]
            %180 = vst [vmem:[%s124 + $0x1b0] sm:$0xff] %v179
            %v181 = vld [vmem:[%s123 + $0xe0] sm:$0xff]
            %182 = vst [vmem:[%s124 + $0x1c0] sm:$0xff] %v181
            %v183 = vld [vmem:[%s123 + $0xe8] sm:$0xff]
            %184 = vst [vmem:[%s124 + $0x1d0] sm:$0xff] %v183
            %v185 = vld [vmem:[%s123 + $0xf0] sm:$0xff]
            %186 = vst [vmem:[%s124 + $0x1e0] sm:$0xff] %v185
            %v187 = vld [vmem:[%s123 + $0xf8] sm:$0xff]
            %188 = vst [vmem:[%s124 + $0x1f0] sm:$0xff] %v187
            %v189 = vld [vmem:[%s123 + $0x100] sm:$0xff]
            %190 = vst [vmem:[%s124 + $0x200] sm:$0xff] %v189
            %v191 = vld [vmem:[%s123 + $0x108] sm:$0xff]
            %192 = vst [vmem:[%s124 + $0x210] sm:$0xff] %v191
            %v193 = vld [vmem:[%s123 + $0x110] sm:$0xff]
            %194 = vst [vmem:[%s124 + $0x220] sm:$0xff] %v193
            %v195 = vld [vmem:[%s123 + $0x118] sm:$0xff]
            %196 = vst [vmem:[%s124 + $0x230] sm:$0xff] %v195
            %v197 = vld [vmem:[%s123 + $0x120] sm:$0xff]
            %198 = vst [vmem:[%s124 + $0x240] sm:$0xff] %v197
            %v199 = vld [vmem:[%s123 + $0x128] sm:$0xff]
            %200 = vst [vmem:[%s124 + $0x250] sm:$0xff] %v199
            %v201 = vld [vmem:[%s123 + $0x130] sm:$0xff]
            %202 = vst [vmem:[%s124 + $0x260] sm:$0xff] %v201
            %v203 = vld [vmem:[%s123 + $0x138] sm:$0xff]
            %204 = vst [vmem:[%s124 + $0x270] sm:$0xff] %v203
            %v205 = vld [vmem:[%s123 + $0x140] sm:$0xff]
            %206 = vst [vmem:[%s124 + $0x280] sm:$0xff] %v205
            %v207 = vld [vmem:[%s123 + $0x148] sm:$0xff]
            %208 = vst [vmem:[%s124 + $0x290] sm:$0xff] %v207
            %v209 = vld [vmem:[%s123 + $0x150] sm:$0xff]
            %210 = vst [vmem:[%s124 + $0x2a0] sm:$0xff] %v209
            %v211 = vld [vmem:[%s123 + $0x158] sm:$0xff]
            %212 = vst [vmem:[%s124 + $0x2b0] sm:$0xff] %v211
            %v213 = vld [vmem:[%s123 + $0x160] sm:$0xff]
            %214 = vst [vmem:[%s124 + $0x2c0] sm:$0xff] %v213
            %v215 = vld [vmem:[%s123 + $0x168] sm:$0xff]
            %216 = vst [vmem:[%s124 + $0x2d0] sm:$0xff] %v215
            %v217 = vld [vmem:[%s123 + $0x170] sm:$0xff]
            %218 = vst [vmem:[%s124 + $0x2e0] sm:$0xff] %v217
            %v219 = vld [vmem:[%s123 + $0x178] sm:$0xff]
            %220 = vst [vmem:[%s124 + $0x2f0] sm:$0xff] %v219
          $region29: #{reverse.9} parent=23 // loop_footer
            %s122 = sadd.s32 1, %s118
          $region30: #{reverse.9} parent=23 // loop_footer_branch
            %117 = sbr.rel target = $region26
          $region31: #{reverse.9} parent=23 // loop_exit
            _
        $region24: #{reverse.9} parent=8 // pred_fallthru
          _
        // Predicated region
        $region32: #{reverse.9} parent=8 // pred_check
          _
        $region33: #{reverse.9} parent=8 // pred_check_branch
          %222 = sbr.rel target = $region35
        $region34: #{reverse.9} parent=8 // pred_region
          _
        $region35: #{reverse.9} parent=8 // pred_fallthru
          _
      $region9: #{reverse.9} parent=4 // pred_fallthru
        _
      // Predicated region
      $region10: #{reverse.9} parent=4 // pred_check
        _
      $region11: #{reverse.9} parent=4 // pred_check_branch
        %8 = sbr.rel target = $region13
      $region12: #{reverse.9} parent=4 // pred_region
        %s10 = ssub.s32 256, 1
        loop: start=0, step=1, limit=1
        $region14: #{reverse.9} parent=12 // loop_pre_header
          _
        $region15: #{reverse.9} parent=12 // loop_header
          %s12 = sphi 0, %s16
          %p13 = scmp.ge.s32.totalorder %s12, 1
          %s17 = sphi %s0, %s0
          %s18 = sphi %s2, %s2
        $region16: #{reverse.9} parent=12 // loop_header_branch
          %15 = sbr.rel (%p13) target = $region20
        $region17: #{reverse.9} parent=12 // loop_body
          %v19 = vld [vmem:[%s17] sm:%s10]
          %20 = vst [vmem:[%s18] sm:%s10] %v19
          %v21 = vld [vmem:[%s17 + $0x8] sm:%s10]
          %22 = vst [vmem:[%s18 + $0x10] sm:%s10] %v21
          %v23 = vld [vmem:[%s17 + $0x10] sm:%s10]
          %24 = vst [vmem:[%s18 + $0x20] sm:%s10] %v23
          %v25 = vld [vmem:[%s17 + $0x18] sm:%s10]
          %26 = vst [vmem:[%s18 + $0x30] sm:%s10] %v25
          %v27 = vld [vmem:[%s17 + $0x20] sm:%s10]
          %28 = vst [vmem:[%s18 + $0x40] sm:%s10] %v27
          %v29 = vld [vmem:[%s17 + $0x28] sm:%s10]
          %30 = vst [vmem:[%s18 + $0x50] sm:%s10] %v29
          %v31 = vld [vmem:[%s17 + $0x30] sm:%s10]
          %32 = vst [vmem:[%s18 + $0x60] sm:%s10] %v31
          %v33 = vld [vmem:[%s17 + $0x38] sm:%s10]
          %34 = vst [vmem:[%s18 + $0x70] sm:%s10] %v33
          %v35 = vld [vmem:[%s17 + $0x40] sm:%s10]
          %36 = vst [vmem:[%s18 + $0x80] sm:%s10] %v35
          %v37 = vld [vmem:[%s17 + $0x48] sm:%s10]
          %38 = vst [vmem:[%s18 + $0x90] sm:%s10] %v37
          %v39 = vld [vmem:[%s17 + $0x50] sm:%s10]
          %40 = vst [vmem:[%s18 + $0xa0] sm:%s10] %v39
          %v41 = vld [vmem:[%s17 + $0x58] sm:%s10]
          %42 = vst [vmem:[%s18 + $0xb0] sm:%s10] %v41
          %v43 = vld [vmem:[%s17 + $0x60] sm:%s10]
          %44 = vst [vmem:[%s18 + $0xc0] sm:%s10] %v43
          %v45 = vld [vmem:[%s17 + $0x68] sm:%s10]
          %46 = vst [vmem:[%s18 + $0xd0] sm:%s10] %v45
          %v47 = vld [vmem:[%s17 + $0x70] sm:%s10]
          %48 = vst [vmem:[%s18 + $0xe0] sm:%s10] %v47
          %v49 = vld [vmem:[%s17 + $0x78] sm:%s10]
          %50 = vst [vmem:[%s18 + $0xf0] sm:%s10] %v49
          %v51 = vld [vmem:[%s17 + $0x80] sm:%s10]
          %52 = vst [vmem:[%s18 + $0x100] sm:%s10] %v51
          %v53 = vld [vmem:[%s17 + $0x88] sm:%s10]
          %54 = vst [vmem:[%s18 + $0x110] sm:%s10] %v53
          %v55 = vld [vmem:[%s17 + $0x90] sm:%s10]
          %56 = vst [vmem:[%s18 + $0x120] sm:%s10] %v55
          %v57 = vld [vmem:[%s17 + $0x98] sm:%s10]
          %58 = vst [vmem:[%s18 + $0x130] sm:%s10] %v57
          %v59 = vld [vmem:[%s17 + $0xa0] sm:%s10]
          %60 = vst [vmem:[%s18 + $0x140] sm:%s10] %v59
          %v61 = vld [vmem:[%s17 + $0xa8] sm:%s10]
          %62 = vst [vmem:[%s18 + $0x150] sm:%s10] %v61
          %v63 = vld [vmem:[%s17 + $0xb0] sm:%s10]
          %64 = vst [vmem:[%s18 + $0x160] sm:%s10] %v63
          %v65 = vld [vmem:[%s17 + $0xb8] sm:%s10]
          %66 = vst [vmem:[%s18 + $0x170] sm:%s10] %v65
          %v67 = vld [vmem:[%s17 + $0xc0] sm:%s10]
          %68 = vst [vmem:[%s18 + $0x180] sm:%s10] %v67
          %v69 = vld [vmem:[%s17 + $0xc8] sm:%s10]
          %70 = vst [vmem:[%s18 + $0x190] sm:%s10] %v69
          %v71 = vld [vmem:[%s17 + $0xd0] sm:%s10]
          %72 = vst [vmem:[%s18 + $0x1a0] sm:%s10] %v71
          %v73 = vld [vmem:[%s17 + $0xd8] sm:%s10]
          %74 = vst [vmem:[%s18 + $0x1b0] sm:%s10] %v73
          %v75 = vld [vmem:[%s17 + $0xe0] sm:%s10]
          %76 = vst [vmem:[%s18 + $0x1c0] sm:%s10] %v75
          %v77 = vld [vmem:[%s17 + $0xe8] sm:%s10]
          %78 = vst [vmem:[%s18 + $0x1d0] sm:%s10] %v77
          %v79 = vld [vmem:[%s17 + $0xf0] sm:%s10]
          %80 = vst [vmem:[%s18 + $0x1e0] sm:%s10] %v79
          %v81 = vld [vmem:[%s17 + $0xf8] sm:%s10]
          %82 = vst [vmem:[%s18 + $0x1f0] sm:%s10] %v81
          %v83 = vld [vmem:[%s17 + $0x100] sm:%s10]
          %84 = vst [vmem:[%s18 + $0x200] sm:%s10] %v83
          %v85 = vld [vmem:[%s17 + $0x108] sm:%s10]
          %86 = vst [vmem:[%s18 + $0x210] sm:%s10] %v85
          %v87 = vld [vmem:[%s17 + $0x110] sm:%s10]
          %88 = vst [vmem:[%s18 + $0x220] sm:%s10] %v87
          %v89 = vld [vmem:[%s17 + $0x118] sm:%s10]
          %90 = vst [vmem:[%s18 + $0x230] sm:%s10] %v89
          %v91 = vld [vmem:[%s17 + $0x120] sm:%s10]
          %92 = vst [vmem:[%s18 + $0x240] sm:%s10] %v91
          %v93 = vld [vmem:[%s17 + $0x128] sm:%s10]
          %94 = vst [vmem:[%s18 + $0x250] sm:%s10] %v93
          %v95 = vld [vmem:[%s17 + $0x130] sm:%s10]
          %96 = vst [vmem:[%s18 + $0x260] sm:%s10] %v95
          %v97 = vld [vmem:[%s17 + $0x138] sm:%s10]
          %98 = vst [vmem:[%s18 + $0x270] sm:%s10] %v97
          %v99 = vld [vmem:[%s17 + $0x140] sm:%s10]
          %100 = vst [vmem:[%s18 + $0x280] sm:%s10] %v99
          %v101 = vld [vmem:[%s17 + $0x148] sm:%s10]
          %102 = vst [vmem:[%s18 + $0x290] sm:%s10] %v101
          %v103 = vld [vmem:[%s17 + $0x150] sm:%s10]
          %104 = vst [vmem:[%s18 + $0x2a0] sm:%s10] %v103
          %v105 = vld [vmem:[%s17 + $0x158] sm:%s10]
          %106 = vst [vmem:[%s18 + $0x2b0] sm:%s10] %v105
          %v107 = vld [vmem:[%s17 + $0x160] sm:%s10]
          %108 = vst [vmem:[%s18 + $0x2c0] sm:%s10] %v107
          %v109 = vld [vmem:[%s17 + $0x168] sm:%s10]
          %110 = vst [vmem:[%s18 + $0x2d0] sm:%s10] %v109
          %v111 = vld [vmem:[%s17 + $0x170] sm:%s10]
          %112 = vst [vmem:[%s18 + $0x2e0] sm:%s10] %v111
          %v113 = vld [vmem:[%s17 + $0x178] sm:%s10]
          %114 = vst [vmem:[%s18 + $0x2f0] sm:%s10] %v113
        $region18: #{reverse.9} parent=12 // loop_footer
          %s16 = sadd.s32 1, %s12
        $region19: #{reverse.9} parent=12 // loop_footer_branch
          %11 = sbr.rel target = $region15
        $region20: #{reverse.9} parent=12 // loop_exit
          _
      $region13: #{reverse.9} parent=4 // pred_fallthru
        _
    $region5: #{reverse.9} parent=1 // pred_fallthru
      _
    %223 = vnop
    %s224 = scalar_lea.vmem [#allocation0], 7
    %v225 = vld [vmem:[%s224] ss:$-1 sm:$0xff]
    %v226 = vrot.slane %v225, 1
    %227 = vst [vmem:[#allocation1] sm:$0xff] %v226
    %s228 = scalar_lea.vmem [#allocation0], 8
    %s229 = scalar_lea.vmem %s228, 7 [#allocation0]
    %v230 = vld [vmem:[%s229] ss:$-1 sm:$0xff]
    %v231 = vrot.slane %v230, 1
    %v232 = vlaneseq
    %v233 = vshrl.u32 %v232, 7
    %vm234 = vcmp.lt.s32.totalorder %v233, 7
    %235 = vst.msk [vmem:[#allocation1] sm:$0xff] %vm234, %v231
    %s236 = scalar_lea.vmem [#allocation1], 8
    %s237 = scalar_lea.vmem [#allocation0], 16
    %s238 = scalar_lea.vmem %s237, 7 [#allocation0]
    %v239 = vld [vmem:[%s238] ss:$-1 sm:$0xff]
    %v240 = vrot.slane %v239, 1
    %241 = vst [vmem:[%s236] sm:$0xff] %v240
    %s242 = scalar_lea.vmem %s237, 8 [#allocation0]
    %s243 = scalar_lea.vmem %s242, 7 [#allocation0]
    %v244 = vld [vmem:[%s243] ss:$-1 sm:$0xff]
    %v245 = vrot.slane %v244, 1
    %v246 = vlaneseq
    %v247 = vshrl.u32 %v246, 7
    %vm248 = vcmp.lt.s32.totalorder %v247, 7
    %249 = vst.msk [vmem:[%s236] sm:$0xff] %vm248, %v245
    %s250 = scalar_lea.vmem [#allocation1], 16
    %s251 = scalar_lea.vmem [#allocation0], 32
    %s252 = scalar_lea.vmem %s251, 7 [#allocation0]
    %v253 = vld [vmem:[%s252] ss:$-1 sm:$0xff]
    %v254 = vrot.slane %v253, 1
    %255 = vst [vmem:[%s250] sm:$0xff] %v254
    %s256 = scalar_lea.vmem %s251, 8 [#allocation0]
    %s257 = scalar_lea.vmem %s256, 7 [#allocation0]
    %v258 = vld [vmem:[%s257] ss:$-1 sm:$0xff]
    %v259 = vrot.slane %v258, 1
    %v260 = vlaneseq
    %v261 = vshrl.u32 %v260, 7
    %vm262 = vcmp.lt.s32.totalorder %v261, 7
    %263 = vst.msk [vmem:[%s250] sm:$0xff] %vm262, %v259
    %s264 = scalar_lea.vmem [#allocation1], 24
    %s265 = scalar_lea.vmem [#allocation0], 48
    %s266 = scalar_lea.vmem %s265, 7 [#allocation0]
    %v267 = vld [vmem:[%s266] ss:$-1 sm:$0xff]
    %v268 = vrot.slane %v267, 1
    %269 = vst [vmem:[%s264] sm:$0xff] %v268
    %s270 = scalar_lea.vmem %s265, 8 [#allocation0]
    %s271 = scalar_lea.vmem %s270, 7 [#allocation0]
    %v272 = vld [vmem:[%s271] ss:$-1 sm:$0xff]
    %v273 = vrot.slane %v272, 1
    %v274 = vlaneseq
    %v275 = vshrl.u32 %v274, 7
    %vm276 = vcmp.lt.s32.totalorder %v275, 7
    %277 = vst.msk [vmem:[%s264] sm:$0xff] %vm276, %v273
    %s278 = scalar_lea.vmem [#allocation1], 32
    %s279 = scalar_lea.vmem [#allocation0], 64
    %s280 = scalar_lea.vmem %s279, 7 [#allocation0]
    %v281 = vld [vmem:[%s280] ss:$-1 sm:$0xff]
    %v282 = vrot.slane %v281, 1
    %283 = vst [vmem:[%s278] sm:$0xff] %v282
    %s284 = scalar_lea.vmem %s279, 8 [#allocation0]
    %s285 = scalar_lea.vmem %s284, 7 [#allocation0]
    %v286 = vld [vmem:[%s285] ss:$-1 sm:$0xff]
    %v287 = vrot.slane %v286, 1
    %v288 = vlaneseq
    %v289 = vshrl.u32 %v288, 7
    %vm290 = vcmp.lt.s32.totalorder %v289, 7
    %291 = vst.msk [vmem:[%s278] sm:$0xff] %vm290, %v287
    %s292 = scalar_lea.vmem [#allocation1], 40
    %s293 = scalar_lea.vmem [#allocation0], 80
    %s294 = scalar_lea.vmem %s293, 7 [#allocation0]
    %v295 = vld [vmem:[%s294] ss:$-1 sm:$0xff]
    %v296 = vrot.slane %v295, 1
    %297 = vst [vmem:[%s292] sm:$0xff] %v296
    %s298 = scalar_lea.vmem %s293, 8 [#allocation0]
    %s299 = scalar_lea.vmem %s298, 7 [#allocation0]
    %v300 = vld [vmem:[%s299] ss:$-1 sm:$0xff]
    %v301 = vrot.slane %v300, 1
    %v302 = vlaneseq
    %v303 = vshrl.u32 %v302, 7
    %vm304 = vcmp.lt.s32.totalorder %v303, 7
    %305 = vst.msk [vmem:[%s292] sm:$0xff] %vm304, %v301
    %s306 = scalar_lea.vmem [#allocation1], 48
    %s307 = scalar_lea.vmem [#allocation0], 96
    %s308 = scalar_lea.vmem %s307, 7 [#allocation0]
    %v309 = vld [vmem:[%s308] ss:$-1 sm:$0xff]
    %v310 = vrot.slane %v309, 1
    %311 = vst [vmem:[%s306] sm:$0xff] %v310
    %s312 = scalar_lea.vmem %s307, 8 [#allocation0]
    %s313 = scalar_lea.vmem %s312, 7 [#allocation0]
    %v314 = vld [vmem:[%s313] ss:$-1 sm:$0xff]
    %v315 = vrot.slane %v314, 1
    %v316 = vlaneseq
    %v317 = vshrl.u32 %v316, 7
    %vm318 = vcmp.lt.s32.totalorder %v317, 7
    %319 = vst.msk [vmem:[%s306] sm:$0xff] %vm318, %v315
    %s320 = scalar_lea.vmem [#allocation1], 56
    %s321 = scalar_lea.vmem [#allocation0], 112
    %s322 = scalar_lea.vmem %s321, 7 [#allocation0]
    %v323 = vld [vmem:[%s322] ss:$-1 sm:$0xff]
    %v324 = vrot.slane %v323, 1
    %325 = vst [vmem:[%s320] sm:$0xff] %v324
    %s326 = scalar_lea.vmem %s321, 8 [#allocation0]
    %s327 = scalar_lea.vmem %s326, 7 [#allocation0]
    %v328 = vld [vmem:[%s327] ss:$-1 sm:$0xff]
    %v329 = vrot.slane %v328, 1
    %v330 = vlaneseq
    %v331 = vshrl.u32 %v330, 7
    %vm332 = vcmp.lt.s32.totalorder %v331, 7
    %333 = vst.msk [vmem:[%s320] sm:$0xff] %vm332, %v329
    %s334 = scalar_lea.vmem [#allocation1], 64
    %s335 = scalar_lea.vmem [#allocation0], 128
    %s336 = scalar_lea.vmem %s335, 7 [#allocation0]
    %v337 = vld [vmem:[%s336] ss:$-1 sm:$0xff]
    %v338 = vrot.slane %v337, 1
    %339 = vst [vmem:[%s334] sm:$0xff] %v338
    %s340 = scalar_lea.vmem %s335, 8 [#allocation0]
    %s341 = scalar_lea.vmem %s340, 7 [#allocation0]
    %v342 = vld [vmem:[%s341] ss:$-1 sm:$0xff]
    %v343 = vrot.slane %v342, 1
    %v344 = vlaneseq
    %v345 = vshrl.u32 %v344, 7
    %vm346 = vcmp.lt.s32.totalorder %v345, 7
    %347 = vst.msk [vmem:[%s334] sm:$0xff] %vm346, %v343
    %s348 = scalar_lea.vmem [#allocation1], 72
    %s349 = scalar_lea.vmem [#allocation0], 144
    %s350 = scalar_lea.vmem %s349, 7 [#allocation0]
    %v351 = vld [vmem:[%s350] ss:$-1 sm:$0xff]
    %v352 = vrot.slane %v351, 1
    %353 = vst [vmem:[%s348] sm:$0xff] %v352
    %s354 = scalar_lea.vmem %s349, 8 [#allocation0]
    %s355 = scalar_lea.vmem %s354, 7 [#allocation0]
    %v356 = vld [vmem:[%s355] ss:$-1 sm:$0xff]
    %v357 = vrot.slane %v356, 1
    %v358 = vlaneseq
    %v359 = vshrl.u32 %v358, 7
    %vm360 = vcmp.lt.s32.totalorder %v359, 7
    %361 = vst.msk [vmem:[%s348] sm:$0xff] %vm360, %v357
    %s362 = scalar_lea.vmem [#allocation1], 80
    %s363 = scalar_lea.vmem [#allocation0], 160
    %s364 = scalar_lea.vmem %s363, 7 [#allocation0]
    %v365 = vld [vmem:[%s364] ss:$-1 sm:$0xff]
    %v366 = vrot.slane %v365, 1
    %367 = vst [vmem:[%s362] sm:$0xff] %v366
    %s368 = scalar_lea.vmem %s363, 8 [#allocation0]
    %s369 = scalar_lea.vmem %s368, 7 [#allocation0]
    %v370 = vld [vmem:[%s369] ss:$-1 sm:$0xff]
    %v371 = vrot.slane %v370, 1
    %v372 = vlaneseq
    %v373 = vshrl.u32 %v372, 7
    %vm374 = vcmp.lt.s32.totalorder %v373, 7
    %375 = vst.msk [vmem:[%s362] sm:$0xff] %vm374, %v371
    %s376 = scalar_lea.vmem [#allocation1], 88
    %s377 = scalar_lea.vmem [#allocation0], 176
    %s378 = scalar_lea.vmem %s377, 7 [#allocation0]
    %v379 = vld [vmem:[%s378] ss:$-1 sm:$0xff]
    %v380 = vrot.slane %v379, 1
    %381 = vst [vmem:[%s376] sm:$0xff] %v380
    %s382 = scalar_lea.vmem %s377, 8 [#allocation0]
    %s383 = scalar_lea.vmem %s382, 7 [#allocation0]
    %v384 = vld [vmem:[%s383] ss:$-1 sm:$0xff]
    %v385 = vrot.slane %v384, 1
    %v386 = vlaneseq
    %v387 = vshrl.u32 %v386, 7
    %vm388 = vcmp.lt.s32.totalorder %v387, 7
    %389 = vst.msk [vmem:[%s376] sm:$0xff] %vm388, %v385
    %s390 = scalar_lea.vmem [#allocation1], 96
    %s391 = scalar_lea.vmem [#allocation0], 192
    %s392 = scalar_lea.vmem %s391, 7 [#allocation0]
    %v393 = vld [vmem:[%s392] ss:$-1 sm:$0xff]
    %v394 = vrot.slane %v393, 1
    %395 = vst [vmem:[%s390] sm:$0xff] %v394
    %s396 = scalar_lea.vmem %s391, 8 [#allocation0]
    %s397 = scalar_lea.vmem %s396, 7 [#allocation0]
    %v398 = vld [vmem:[%s397] ss:$-1 sm:$0xff]
    %v399 = vrot.slane %v398, 1
    %v400 = vlaneseq
    %v401 = vshrl.u32 %v400, 7
    %vm402 = vcmp.lt.s32.totalorder %v401, 7
    %403 = vst.msk [vmem:[%s390] sm:$0xff] %vm402, %v399
    %s404 = scalar_lea.vmem [#allocation1], 104
    %s405 = scalar_lea.vmem [#allocation0], 208
    %s406 = scalar_lea.vmem %s405, 7 [#allocation0]
    %v407 = vld [vmem:[%s406] ss:$-1 sm:$0xff]
    %v408 = vrot.slane %v407, 1
    %409 = vst [vmem:[%s404] sm:$0xff] %v408
    %s410 = scalar_lea.vmem %s405, 8 [#allocation0]
    %s411 = scalar_lea.vmem %s410, 7 [#allocation0]
    %v412 = vld [vmem:[%s411] ss:$-1 sm:$0xff]
    %v413 = vrot.slane %v412, 1
    %v414 = vlaneseq
    %v415 = vshrl.u32 %v414, 7
    %vm416 = vcmp.lt.s32.totalorder %v415, 7
    %417 = vst.msk [vmem:[%s404] sm:$0xff] %vm416, %v413
    %s418 = scalar_lea.vmem [#allocation1], 112
    %s419 = scalar_lea.vmem [#allocation0], 224
    %s420 = scalar_lea.vmem %s419, 7 [#allocation0]
    %v421 = vld [vmem:[%s420] ss:$-1 sm:$0xff]
    %v422 = vrot.slane %v421, 1
    %423 = vst [vmem:[%s418] sm:$0xff] %v422
    %s424 = scalar_lea.vmem %s419, 8 [#allocation0]
    %s425 = scalar_lea.vmem %s424, 7 [#allocation0]
    %v426 = vld [vmem:[%s425] ss:$-1 sm:$0xff]
    %v427 = vrot.slane %v426, 1
    %v428 = vlaneseq
    %v429 = vshrl.u32 %v428, 7
    %vm430 = vcmp.lt.s32.totalorder %v429, 7
    %431 = vst.msk [vmem:[%s418] sm:$0xff] %vm430, %v427
    %s432 = scalar_lea.vmem [#allocation1], 120
    %s433 = scalar_lea.vmem [#allocation0], 240
    %s434 = scalar_lea.vmem %s433, 7 [#allocation0]
    %v435 = vld [vmem:[%s434] ss:$-1 sm:$0xff]
    %v436 = vrot.slane %v435, 1
    %437 = vst [vmem:[%s432] sm:$0xff] %v436
    %s438 = scalar_lea.vmem %s433, 8 [#allocation0]
    %s439 = scalar_lea.vmem %s438, 7 [#allocation0]
    %v440 = vld [vmem:[%s439] ss:$-1 sm:$0xff]
    %v441 = vrot.slane %v440, 1
    %v442 = vlaneseq
    %v443 = vshrl.u32 %v442, 7
    %vm444 = vcmp.lt.s32.totalorder %v443, 7
    %445 = vst.msk [vmem:[%s432] sm:$0xff] %vm444, %v441
    %s446 = scalar_lea.vmem [#allocation1], 128
    %s447 = scalar_lea.vmem [#allocation0], 256
    %s448 = scalar_lea.vmem %s447, 7 [#allocation0]
    %v449 = vld [vmem:[%s448] ss:$-1 sm:$0xff]
    %v450 = vrot.slane %v449, 1
    %451 = vst [vmem:[%s446] sm:$0xff] %v450
    %s452 = scalar_lea.vmem %s447, 8 [#allocation0]
    %s453 = scalar_lea.vmem %s452, 7 [#allocation0]
    %v454 = vld [vmem:[%s453] ss:$-1 sm:$0xff]
    %v455 = vrot.slane %v454, 1
    %v456 = vlaneseq
    %v457 = vshrl.u32 %v456, 7
    %vm458 = vcmp.lt.s32.totalorder %v457, 7
    %459 = vst.msk [vmem:[%s446] sm:$0xff] %vm458, %v455
    %s460 = scalar_lea.vmem [#allocation1], 136
    %s461 = scalar_lea.vmem [#allocation0], 272
    %s462 = scalar_lea.vmem %s461, 7 [#allocation0]
    %v463 = vld [vmem:[%s462] ss:$-1 sm:$0xff]
    %v464 = vrot.slane %v463, 1
    %465 = vst [vmem:[%s460] sm:$0xff] %v464
    %s466 = scalar_lea.vmem %s461, 8 [#allocation0]
    %s467 = scalar_lea.vmem %s466, 7 [#allocation0]
    %v468 = vld [vmem:[%s467] ss:$-1 sm:$0xff]
    %v469 = vrot.slane %v468, 1
    %v470 = vlaneseq
    %v471 = vshrl.u32 %v470, 7
    %vm472 = vcmp.lt.s32.totalorder %v471, 7
    %473 = vst.msk [vmem:[%s460] sm:$0xff] %vm472, %v469
    %s474 = scalar_lea.vmem [#allocation1], 144
    %s475 = scalar_lea.vmem [#allocation0], 288
    %s476 = scalar_lea.vmem %s475, 7 [#allocation0]
    %v477 = vld [vmem:[%s476] ss:$-1 sm:$0xff]
    %v478 = vrot.slane %v477, 1
    %479 = vst [vmem:[%s474] sm:$0xff] %v478
    %s480 = scalar_lea.vmem %s475, 8 [#allocation0]
    %s481 = scalar_lea.vmem %s480, 7 [#allocation0]
    %v482 = vld [vmem:[%s481] ss:$-1 sm:$0xff]
    %v483 = vrot.slane %v482, 1
    %v484 = vlaneseq
    %v485 = vshrl.u32 %v484, 7
    %vm486 = vcmp.lt.s32.totalorder %v485, 7
    %487 = vst.msk [vmem:[%s474] sm:$0xff] %vm486, %v483
    %s488 = scalar_lea.vmem [#allocation1], 152
    %s489 = scalar_lea.vmem [#allocation0], 304
    %s490 = scalar_lea.vmem %s489, 7 [#allocation0]
    %v491 = vld [vmem:[%s490] ss:$-1 sm:$0xff]
    %v492 = vrot.slane %v491, 1
    %493 = vst [vmem:[%s488] sm:$0xff] %v492
    %s494 = scalar_lea.vmem %s489, 8 [#allocation0]
    %s495 = scalar_lea.vmem %s494, 7 [#allocation0]
    %v496 = vld [vmem:[%s495] ss:$-1 sm:$0xff]
    %v497 = vrot.slane %v496, 1
    %v498 = vlaneseq
    %v499 = vshrl.u32 %v498, 7
    %vm500 = vcmp.lt.s32.totalorder %v499, 7
    %501 = vst.msk [vmem:[%s488] sm:$0xff] %vm500, %v497
    %s502 = scalar_lea.vmem [#allocation1], 160
    %s503 = scalar_lea.vmem [#allocation0], 320
    %s504 = scalar_lea.vmem %s503, 7 [#allocation0]
    %v505 = vld [vmem:[%s504] ss:$-1 sm:$0xff]
    %v506 = vrot.slane %v505, 1
    %507 = vst [vmem:[%s502] sm:$0xff] %v506
    %s508 = scalar_lea.vmem %s503, 8 [#allocation0]
    %s509 = scalar_lea.vmem %s508, 7 [#allocation0]
    %v510 = vld [vmem:[%s509] ss:$-1 sm:$0xff]
    %v511 = vrot.slane %v510, 1
    %v512 = vlaneseq
    %v513 = vshrl.u32 %v512, 7
    %vm514 = vcmp.lt.s32.totalorder %v513, 7
    %515 = vst.msk [vmem:[%s502] sm:$0xff] %vm514, %v511
    %s516 = scalar_lea.vmem [#allocation1], 168
    %s517 = scalar_lea.vmem [#allocation0], 336
    %s518 = scalar_lea.vmem %s517, 7 [#allocation0]
    %v519 = vld [vmem:[%s518] ss:$-1 sm:$0xff]
    %v520 = vrot.slane %v519, 1
    %521 = vst [vmem:[%s516] sm:$0xff] %v520
    %s522 = scalar_lea.vmem %s517, 8 [#allocation0]
    %s523 = scalar_lea.vmem %s522, 7 [#allocation0]
    %v524 = vld [vmem:[%s523] ss:$-1 sm:$0xff]
    %v525 = vrot.slane %v524, 1
    %v526 = vlaneseq
    %v527 = vshrl.u32 %v526, 7
    %vm528 = vcmp.lt.s32.totalorder %v527, 7
    %529 = vst.msk [vmem:[%s516] sm:$0xff] %vm528, %v525
    %s530 = scalar_lea.vmem [#allocation1], 176
    %s531 = scalar_lea.vmem [#allocation0], 352
    %s532 = scalar_lea.vmem %s531, 7 [#allocation0]
    %v533 = vld [vmem:[%s532] ss:$-1 sm:$0xff]
    %v534 = vrot.slane %v533, 1
    %535 = vst [vmem:[%s530] sm:$0xff] %v534
    %s536 = scalar_lea.vmem %s531, 8 [#allocation0]
    %s537 = scalar_lea.vmem %s536, 7 [#allocation0]
    %v538 = vld [vmem:[%s537] ss:$-1 sm:$0xff]
    %v539 = vrot.slane %v538, 1
    %v540 = vlaneseq
    %v541 = vshrl.u32 %v540, 7
    %vm542 = vcmp.lt.s32.totalorder %v541, 7
    %543 = vst.msk [vmem:[%s530] sm:$0xff] %vm542, %v539
    %s544 = scalar_lea.vmem [#allocation1], 184
    %s545 = scalar_lea.vmem [#allocation0], 368
    %s546 = scalar_lea.vmem %s545, 7 [#allocation0]
    %v547 = vld [vmem:[%s546] ss:$-1 sm:$0xff]
    %v548 = vrot.slane %v547, 1
    %549 = vst [vmem:[%s544] sm:$0xff] %v548
    %s550 = scalar_lea.vmem %s545, 8 [#allocation0]
    %s551 = scalar_lea.vmem %s550, 7 [#allocation0]
    %v552 = vld [vmem:[%s551] ss:$-1 sm:$0xff]
    %v553 = vrot.slane %v552, 1
    %v554 = vlaneseq
    %v555 = vshrl.u32 %v554, 7
    %vm556 = vcmp.lt.s32.totalorder %v555, 7
    %557 = vst.msk [vmem:[%s544] sm:$0xff] %vm556, %v553
    %s558 = scalar_lea.vmem [#allocation1], 192
    %s559 = scalar_lea.vmem [#allocation0], 384
    %s560 = scalar_lea.vmem %s559, 7 [#allocation0]
    %v561 = vld [vmem:[%s560] ss:$-1 sm:$0xff]
    %v562 = vrot.slane %v561, 1
    %563 = vst [vmem:[%s558] sm:$0xff] %v562
    %s564 = scalar_lea.vmem %s559, 8 [#allocation0]
    %s565 = scalar_lea.vmem %s564, 7 [#allocation0]
    %v566 = vld [vmem:[%s565] ss:$-1 sm:$0xff]
    %v567 = vrot.slane %v566, 1
    %v568 = vlaneseq
    %v569 = vshrl.u32 %v568, 7
    %vm570 = vcmp.lt.s32.totalorder %v569, 7
    %571 = vst.msk [vmem:[%s558] sm:$0xff] %vm570, %v567
    %s572 = scalar_lea.vmem [#allocation1], 200
    %s573 = scalar_lea.vmem [#allocation0], 400
    %s574 = scalar_lea.vmem %s573, 7 [#allocation0]
    %v575 = vld [vmem:[%s574] ss:$-1 sm:$0xff]
    %v576 = vrot.slane %v575, 1
    %577 = vst [vmem:[%s572] sm:$0xff] %v576
    %s578 = scalar_lea.vmem %s573, 8 [#allocation0]
    %s579 = scalar_lea.vmem %s578, 7 [#allocation0]
    %v580 = vld [vmem:[%s579] ss:$-1 sm:$0xff]
    %v581 = vrot.slane %v580, 1
    %v582 = vlaneseq
    %v583 = vshrl.u32 %v582, 7
    %vm584 = vcmp.lt.s32.totalorder %v583, 7
    %585 = vst.msk [vmem:[%s572] sm:$0xff] %vm584, %v581
    %s586 = scalar_lea.vmem [#allocation1], 208
    %s587 = scalar_lea.vmem [#allocation0], 416
    %s588 = scalar_lea.vmem %s587, 7 [#allocation0]
    %v589 = vld [vmem:[%s588] ss:$-1 sm:$0xff]
    %v590 = vrot.slane %v589, 1
    %591 = vst [vmem:[%s586] sm:$0xff] %v590
    %s592 = scalar_lea.vmem %s587, 8 [#allocation0]
    %s593 = scalar_lea.vmem %s592, 7 [#allocation0]
    %v594 = vld [vmem:[%s593] ss:$-1 sm:$0xff]
    %v595 = vrot.slane %v594, 1
    %v596 = vlaneseq
    %v597 = vshrl.u32 %v596, 7
    %vm598 = vcmp.lt.s32.totalorder %v597, 7
    %599 = vst.msk [vmem:[%s586] sm:$0xff] %vm598, %v595
    %s600 = scalar_lea.vmem [#allocation1], 216
    %s601 = scalar_lea.vmem [#allocation0], 432
    %s602 = scalar_lea.vmem %s601, 7 [#allocation0]
    %v603 = vld [vmem:[%s602] ss:$-1 sm:$0xff]
    %v604 = vrot.slane %v603, 1
    %605 = vst [vmem:[%s600] sm:$0xff] %v604
    %s606 = scalar_lea.vmem %s601, 8 [#allocation0]
    %s607 = scalar_lea.vmem %s606, 7 [#allocation0]
    %v608 = vld [vmem:[%s607] ss:$-1 sm:$0xff]
    %v609 = vrot.slane %v608, 1
    %v610 = vlaneseq
    %v611 = vshrl.u32 %v610, 7
    %vm612 = vcmp.lt.s32.totalorder %v611, 7
    %613 = vst.msk [vmem:[%s600] sm:$0xff] %vm612, %v609
    %s614 = scalar_lea.vmem [#allocation1], 224
    %s615 = scalar_lea.vmem [#allocation0], 448
    %s616 = scalar_lea.vmem %s615, 7 [#allocation0]
    %v617 = vld [vmem:[%s616] ss:$-1 sm:$0xff]
    %v618 = vrot.slane %v617, 1
    %619 = vst [vmem:[%s614] sm:$0xff] %v618
    %s620 = scalar_lea.vmem %s615, 8 [#allocation0]
    %s621 = scalar_lea.vmem %s620, 7 [#allocation0]
    %v622 = vld [vmem:[%s621] ss:$-1 sm:$0xff]
    %v623 = vrot.slane %v622, 1
    %v624 = vlaneseq
    %v625 = vshrl.u32 %v624, 7
    %vm626 = vcmp.lt.s32.totalorder %v625, 7
    %627 = vst.msk [vmem:[%s614] sm:$0xff] %vm626, %v623
    %s628 = scalar_lea.vmem [#allocation1], 232
    %s629 = scalar_lea.vmem [#allocation0], 464
    %s630 = scalar_lea.vmem %s629, 7 [#allocation0]
    %v631 = vld [vmem:[%s630] ss:$-1 sm:$0xff]
    %v632 = vrot.slane %v631, 1
    %633 = vst [vmem:[%s628] sm:$0xff] %v632
    %s634 = scalar_lea.vmem %s629, 8 [#allocation0]
    %s635 = scalar_lea.vmem %s634, 7 [#allocation0]
    %v636 = vld [vmem:[%s635] ss:$-1 sm:$0xff]
    %v637 = vrot.slane %v636, 1
    %v638 = vlaneseq
    %v639 = vshrl.u32 %v638, 7
    %vm640 = vcmp.lt.s32.totalorder %v639, 7
    %641 = vst.msk [vmem:[%s628] sm:$0xff] %vm640, %v637
    %s642 = scalar_lea.vmem [#allocation1], 240
    %s643 = scalar_lea.vmem [#allocation0], 480
    %s644 = scalar_lea.vmem %s643, 7 [#allocation0]
    %v645 = vld [vmem:[%s644] ss:$-1 sm:$0xff]
    %v646 = vrot.slane %v645, 1
    %647 = vst [vmem:[%s642] sm:$0xff] %v646
    %s648 = scalar_lea.vmem %s643, 8 [#allocation0]
    %s649 = scalar_lea.vmem %s648, 7 [#allocation0]
    %v650 = vld [vmem:[%s649] ss:$-1 sm:$0xff]
    %v651 = vrot.slane %v650, 1
    %v652 = vlaneseq
    %v653 = vshrl.u32 %v652, 7
    %vm654 = vcmp.lt.s32.totalorder %v653, 7
    %655 = vst.msk [vmem:[%s642] sm:$0xff] %vm654, %v651
    %s656 = scalar_lea.vmem [#allocation1], 248
    %s657 = scalar_lea.vmem [#allocation0], 496
    %s658 = scalar_lea.vmem %s657, 7 [#allocation0]
    %v659 = vld [vmem:[%s658] ss:$-1 sm:$0xff]
    %v660 = vrot.slane %v659, 1
    %661 = vst [vmem:[%s656] sm:$0xff] %v660
    %s662 = scalar_lea.vmem %s657, 8 [#allocation0]
    %s663 = scalar_lea.vmem %s662, 7 [#allocation0]
    %v664 = vld [vmem:[%s663] ss:$-1 sm:$0xff]
    %v665 = vrot.slane %v664, 1
    %v666 = vlaneseq
    %v667 = vshrl.u32 %v666, 7
    %vm668 = vcmp.lt.s32.totalorder %v667, 7
    %669 = vst.msk [vmem:[%s656] sm:$0xff] %vm668, %v665
    %s670 = scalar_lea.vmem [#allocation1], 256
    %s671 = scalar_lea.vmem [#allocation0], 512
    %s672 = scalar_lea.vmem %s671, 7 [#allocation0]
    %v673 = vld [vmem:[%s672] ss:$-1 sm:$0xff]
    %v674 = vrot.slane %v673, 1
    %675 = vst [vmem:[%s670] sm:$0xff] %v674
    %s676 = scalar_lea.vmem %s671, 8 [#allocation0]
    %s677 = scalar_lea.vmem %s676, 7 [#allocation0]
    %v678 = vld [vmem:[%s677] ss:$-1 sm:$0xff]
    %v679 = vrot.slane %v678, 1
    %v680 = vlaneseq
    %v681 = vshrl.u32 %v680, 7
    %vm682 = vcmp.lt.s32.totalorder %v681, 7
    %683 = vst.msk [vmem:[%s670] sm:$0xff] %vm682, %v679
    %s684 = scalar_lea.vmem [#allocation1], 264
    %s685 = scalar_lea.vmem [#allocation0], 528
    %s686 = scalar_lea.vmem %s685, 7 [#allocation0]
    %v687 = vld [vmem:[%s686] ss:$-1 sm:$0xff]
    %v688 = vrot.slane %v687, 1
    %689 = vst [vmem:[%s684] sm:$0xff] %v688
    %s690 = scalar_lea.vmem %s685, 8 [#allocation0]
    %s691 = scalar_lea.vmem %s690, 7 [#allocation0]
    %v692 = vld [vmem:[%s691] ss:$-1 sm:$0xff]
    %v693 = vrot.slane %v692, 1
    %v694 = vlaneseq
    %v695 = vshrl.u32 %v694, 7
    %vm696 = vcmp.lt.s32.totalorder %v695, 7
    %697 = vst.msk [vmem:[%s684] sm:$0xff] %vm696, %v693
    %s698 = scalar_lea.vmem [#allocation1], 272
    %s699 = scalar_lea.vmem [#allocation0], 544
    %s700 = scalar_lea.vmem %s699, 7 [#allocation0]
    %v701 = vld [vmem:[%s700] ss:$-1 sm:$0xff]
    %v702 = vrot.slane %v701, 1
    %703 = vst [vmem:[%s698] sm:$0xff] %v702
    %s704 = scalar_lea.vmem %s699, 8 [#allocation0]
    %s705 = scalar_lea.vmem %s704, 7 [#allocation0]
    %v706 = vld [vmem:[%s705] ss:$-1 sm:$0xff]
    %v707 = vrot.slane %v706, 1
    %v708 = vlaneseq
    %v709 = vshrl.u32 %v708, 7
    %vm710 = vcmp.lt.s32.totalorder %v709, 7
    %711 = vst.msk [vmem:[%s698] sm:$0xff] %vm710, %v707
    %s712 = scalar_lea.vmem [#allocation1], 280
    %s713 = scalar_lea.vmem [#allocation0], 560
    %s714 = scalar_lea.vmem %s713, 7 [#allocation0]
    %v715 = vld [vmem:[%s714] ss:$-1 sm:$0xff]
    %v716 = vrot.slane %v715, 1
    %717 = vst [vmem:[%s712] sm:$0xff] %v716
    %s718 = scalar_lea.vmem %s713, 8 [#allocation0]
    %s719 = scalar_lea.vmem %s718, 7 [#allocation0]
    %v720 = vld [vmem:[%s719] ss:$-1 sm:$0xff]
    %v721 = vrot.slane %v720, 1
    %v722 = vlaneseq
    %v723 = vshrl.u32 %v722, 7
    %vm724 = vcmp.lt.s32.totalorder %v723, 7
    %725 = vst.msk [vmem:[%s712] sm:$0xff] %vm724, %v721
    %s726 = scalar_lea.vmem [#allocation1], 288
    %s727 = scalar_lea.vmem [#allocation0], 576
    %s728 = scalar_lea.vmem %s727, 7 [#allocation0]
    %v729 = vld [vmem:[%s728] ss:$-1 sm:$0xff]
    %v730 = vrot.slane %v729, 1
    %731 = vst [vmem:[%s726] sm:$0xff] %v730
    %s732 = scalar_lea.vmem %s727, 8 [#allocation0]
    %s733 = scalar_lea.vmem %s732, 7 [#allocation0]
    %v734 = vld [vmem:[%s733] ss:$-1 sm:$0xff]
    %v735 = vrot.slane %v734, 1
    %v736 = vlaneseq
    %v737 = vshrl.u32 %v736, 7
    %vm738 = vcmp.lt.s32.totalorder %v737, 7
    %739 = vst.msk [vmem:[%s726] sm:$0xff] %vm738, %v735
    %s740 = scalar_lea.vmem [#allocation1], 296
    %s741 = scalar_lea.vmem [#allocation0], 592
    %s742 = scalar_lea.vmem %s741, 7 [#allocation0]
    %v743 = vld [vmem:[%s742] ss:$-1 sm:$0xff]
    %v744 = vrot.slane %v743, 1
    %745 = vst [vmem:[%s740] sm:$0xff] %v744
    %s746 = scalar_lea.vmem %s741, 8 [#allocation0]
    %s747 = scalar_lea.vmem %s746, 7 [#allocation0]
    %v748 = vld [vmem:[%s747] ss:$-1 sm:$0xff]
    %v749 = vrot.slane %v748, 1
    %v750 = vlaneseq
    %v751 = vshrl.u32 %v750, 7
    %vm752 = vcmp.lt.s32.totalorder %v751, 7
    %753 = vst.msk [vmem:[%s740] sm:$0xff] %vm752, %v749
    %s754 = scalar_lea.vmem [#allocation1], 304
    %s755 = scalar_lea.vmem [#allocation0], 608
    %s756 = scalar_lea.vmem %s755, 7 [#allocation0]
    %v757 = vld [vmem:[%s756] ss:$-1 sm:$0xff]
    %v758 = vrot.slane %v757, 1
    %759 = vst [vmem:[%s754] sm:$0xff] %v758
    %s760 = scalar_lea.vmem %s755, 8 [#allocation0]
    %s761 = scalar_lea.vmem %s760, 7 [#allocation0]
    %v762 = vld [vmem:[%s761] ss:$-1 sm:$0xff]
    %v763 = vrot.slane %v762, 1
    %v764 = vlaneseq
    %v765 = vshrl.u32 %v764, 7
    %vm766 = vcmp.lt.s32.totalorder %v765, 7
    %767 = vst.msk [vmem:[%s754] sm:$0xff] %vm766, %v763
    %s768 = scalar_lea.vmem [#allocation1], 312
    %s769 = scalar_lea.vmem [#allocation0], 624
    %s770 = scalar_lea.vmem %s769, 7 [#allocation0]
    %v771 = vld [vmem:[%s770] ss:$-1 sm:$0xff]
    %v772 = vrot.slane %v771, 1
    %773 = vst [vmem:[%s768] sm:$0xff] %v772
    %s774 = scalar_lea.vmem %s769, 8 [#allocation0]
    %s775 = scalar_lea.vmem %s774, 7 [#allocation0]
    %v776 = vld [vmem:[%s775] ss:$-1 sm:$0xff]
    %v777 = vrot.slane %v776, 1
    %v778 = vlaneseq
    %v779 = vshrl.u32 %v778, 7
    %vm780 = vcmp.lt.s32.totalorder %v779, 7
    %781 = vst.msk [vmem:[%s768] sm:$0xff] %vm780, %v777
    %s782 = scalar_lea.vmem [#allocation1], 320
    %s783 = scalar_lea.vmem [#allocation0], 640
    %s784 = scalar_lea.vmem %s783, 7 [#allocation0]
    %v785 = vld [vmem:[%s784] ss:$-1 sm:$0xff]
    %v786 = vrot.slane %v785, 1
    %787 = vst [vmem:[%s782] sm:$0xff] %v786
    %s788 = scalar_lea.vmem %s783, 8 [#allocation0]
    %s789 = scalar_lea.vmem %s788, 7 [#allocation0]
    %v790 = vld [vmem:[%s789] ss:$-1 sm:$0xff]
    %v791 = vrot.slane %v790, 1
    %v792 = vlaneseq
    %v793 = vshrl.u32 %v792, 7
    %vm794 = vcmp.lt.s32.totalorder %v793, 7
    %795 = vst.msk [vmem:[%s782] sm:$0xff] %vm794, %v791
    %s796 = scalar_lea.vmem [#allocation1], 328
    %s797 = scalar_lea.vmem [#allocation0], 656
    %s798 = scalar_lea.vmem %s797, 7 [#allocation0]
    %v799 = vld [vmem:[%s798] ss:$-1 sm:$0xff]
    %v800 = vrot.slane %v799, 1
    %801 = vst [vmem:[%s796] sm:$0xff] %v800
    %s802 = scalar_lea.vmem %s797, 8 [#allocation0]
    %s803 = scalar_lea.vmem %s802, 7 [#allocation0]
    %v804 = vld [vmem:[%s803] ss:$-1 sm:$0xff]
    %v805 = vrot.slane %v804, 1
    %v806 = vlaneseq
    %v807 = vshrl.u32 %v806, 7
    %vm808 = vcmp.lt.s32.totalorder %v807, 7
    %809 = vst.msk [vmem:[%s796] sm:$0xff] %vm808, %v805
    %s810 = scalar_lea.vmem [#allocation1], 336
    %s811 = scalar_lea.vmem [#allocation0], 672
    %s812 = scalar_lea.vmem %s811, 7 [#allocation0]
    %v813 = vld [vmem:[%s812] ss:$-1 sm:$0xff]
    %v814 = vrot.slane %v813, 1
    %815 = vst [vmem:[%s810] sm:$0xff] %v814
    %s816 = scalar_lea.vmem %s811, 8 [#allocation0]
    %s817 = scalar_lea.vmem %s816, 7 [#allocation0]
    %v818 = vld [vmem:[%s817] ss:$-1 sm:$0xff]
    %v819 = vrot.slane %v818, 1
    %v820 = vlaneseq
    %v821 = vshrl.u32 %v820, 7
    %vm822 = vcmp.lt.s32.totalorder %v821, 7
    %823 = vst.msk [vmem:[%s810] sm:$0xff] %vm822, %v819
    %s824 = scalar_lea.vmem [#allocation1], 344
    %s825 = scalar_lea.vmem [#allocation0], 688
    %s826 = scalar_lea.vmem %s825, 7 [#allocation0]
    %v827 = vld [vmem:[%s826] ss:$-1 sm:$0xff]
    %v828 = vrot.slane %v827, 1
    %829 = vst [vmem:[%s824] sm:$0xff] %v828
    %s830 = scalar_lea.vmem %s825, 8 [#allocation0]
    %s831 = scalar_lea.vmem %s830, 7 [#allocation0]
    %v832 = vld [vmem:[%s831] ss:$-1 sm:$0xff]
    %v833 = vrot.slane %v832, 1
    %v834 = vlaneseq
    %v835 = vshrl.u32 %v834, 7
    %vm836 = vcmp.lt.s32.totalorder %v835, 7
    %837 = vst.msk [vmem:[%s824] sm:$0xff] %vm836, %v833
    %s838 = scalar_lea.vmem [#allocation1], 352
    %s839 = scalar_lea.vmem [#allocation0], 704
    %s840 = scalar_lea.vmem %s839, 7 [#allocation0]
    %v841 = vld [vmem:[%s840] ss:$-1 sm:$0xff]
    %v842 = vrot.slane %v841, 1
    %843 = vst [vmem:[%s838] sm:$0xff] %v842
    %s844 = scalar_lea.vmem %s839, 8 [#allocation0]
    %s845 = scalar_lea.vmem %s844, 7 [#allocation0]
    %v846 = vld [vmem:[%s845] ss:$-1 sm:$0xff]
    %v847 = vrot.slane %v846, 1
    %v848 = vlaneseq
    %v849 = vshrl.u32 %v848, 7
    %vm850 = vcmp.lt.s32.totalorder %v849, 7
    %851 = vst.msk [vmem:[%s838] sm:$0xff] %vm850, %v847
    %s852 = scalar_lea.vmem [#allocation1], 360
    %s853 = scalar_lea.vmem [#allocation0], 720
    %s854 = scalar_lea.vmem %s853, 7 [#allocation0]
    %v855 = vld [vmem:[%s854] ss:$-1 sm:$0xff]
    %v856 = vrot.slane %v855, 1
    %857 = vst [vmem:[%s852] sm:$0xff] %v856
    %s858 = scalar_lea.vmem %s853, 8 [#allocation0]
    %s859 = scalar_lea.vmem %s858, 7 [#allocation0]
    %v860 = vld [vmem:[%s859] ss:$-1 sm:$0xff]
    %v861 = vrot.slane %v860, 1
    %v862 = vlaneseq
    %v863 = vshrl.u32 %v862, 7
    %vm864 = vcmp.lt.s32.totalorder %v863, 7
    %865 = vst.msk [vmem:[%s852] sm:$0xff] %vm864, %v861
    %s866 = scalar_lea.vmem [#allocation1], 368
    %s867 = scalar_lea.vmem [#allocation0], 736
    %s868 = scalar_lea.vmem %s867, 7 [#allocation0]
    %v869 = vld [vmem:[%s868] ss:$-1 sm:$0xff]
    %v870 = vrot.slane %v869, 1
    %871 = vst [vmem:[%s866] sm:$0xff] %v870
    %s872 = scalar_lea.vmem %s867, 8 [#allocation0]
    %s873 = scalar_lea.vmem %s872, 7 [#allocation0]
    %v874 = vld [vmem:[%s873] ss:$-1 sm:$0xff]
    %v875 = vrot.slane %v874, 1
    %v876 = vlaneseq
    %v877 = vshrl.u32 %v876, 7
    %vm878 = vcmp.lt.s32.totalorder %v877, 7
    %879 = vst.msk [vmem:[%s866] sm:$0xff] %vm878, %v875
    %s880 = scalar_lea.vmem [#allocation1], 376
    %s881 = scalar_lea.vmem [#allocation0], 752
    %s882 = scalar_lea.vmem %s881, 7 [#allocation0]
    %v883 = vld [vmem:[%s882] ss:$-1 sm:$0xff]
    %v884 = vrot.slane %v883, 1
    %885 = vst [vmem:[%s880] sm:$0xff] %v884
    %s886 = scalar_lea.vmem %s881, 8 [#allocation0]
    %s887 = scalar_lea.vmem %s886, 7 [#allocation0]
    %v888 = vld [vmem:[%s887] ss:$-1 sm:$0xff]
    %v889 = vrot.slane %v888, 1
    %v890 = vlaneseq
    %v891 = vshrl.u32 %v890, 7
    %vm892 = vcmp.lt.s32.totalorder %v891, 7
    %893 = vst.msk [vmem:[%s880] sm:$0xff] %vm892, %v889
    // Predicated region
    $region36: #{reverse.9} parent=1 // pred_check
      _
    $region37: #{reverse.9} parent=1 // pred_check_branch
      %895 = sbr.rel (0) target = $region39
    $region38: #{reverse.9} parent=1 // pred_region
      // Predicated region
      $region40: #{reverse.9} parent=38 // pred_check
        _
      $region41: #{reverse.9} parent=38 // pred_check_branch
        %897 = sbr.rel (0) target = $region43
      $region42: #{reverse.9} parent=38 // pred_region
        // Predicated region
        $region55: #{reverse.9} parent=42 // pred_check
          _
        $region56: #{reverse.9} parent=42 // pred_check_branch
          %1007 = sbr.rel (0) target = $region58
        $region57: #{reverse.9} parent=42 // pred_region
          loop: start=0, step=1, limit=1
          $region59: #{reverse.9} parent=57 // loop_pre_header
            _
          $region60: #{reverse.9} parent=57 // loop_header
            %s1009 = sphi 0, %s1013
            %p1010 = scmp.ge.s32.totalorder %s1009, 1
            %s1014 = sphi [#allocation1], [#allocation1]
            %s1015 = sphi %s1, %s1
          $region61: #{reverse.9} parent=57 // loop_header_branch
            %1012 = sbr.rel (%p1010) target = $region65
          $region62: #{reverse.9} parent=57 // loop_body
            %v1016 = vld [vmem:[%s1014] sm:$0xff]
            %1017 = vst [vmem:[%s1015] sm:$0xff] %v1016
            %v1018 = vld [vmem:[%s1014 + $0x8] sm:$0xff]
            %1019 = vst [vmem:[%s1015 + $0x8] sm:$0xff] %v1018
            %v1020 = vld [vmem:[%s1014 + $0x10] sm:$0xff]
            %1021 = vst [vmem:[%s1015 + $0x10] sm:$0xff] %v1020
            %v1022 = vld [vmem:[%s1014 + $0x18] sm:$0xff]
            %1023 = vst [vmem:[%s1015 + $0x18] sm:$0xff] %v1022
            %v1024 = vld [vmem:[%s1014 + $0x20] sm:$0xff]
            %1025 = vst [vmem:[%s1015 + $0x20] sm:$0xff] %v1024
            %v1026 = vld [vmem:[%s1014 + $0x28] sm:$0xff]
            %1027 = vst [vmem:[%s1015 + $0x28] sm:$0xff] %v1026
            %v1028 = vld [vmem:[%s1014 + $0x30] sm:$0xff]
            %1029 = vst [vmem:[%s1015 + $0x30] sm:$0xff] %v1028
            %v1030 = vld [vmem:[%s1014 + $0x38] sm:$0xff]
            %1031 = vst [vmem:[%s1015 + $0x38] sm:$0xff] %v1030
            %v1032 = vld [vmem:[%s1014 + $0x40] sm:$0xff]
            %1033 = vst [vmem:[%s1015 + $0x40] sm:$0xff] %v1032
            %v1034 = vld [vmem:[%s1014 + $0x48] sm:$0xff]
            %1035 = vst [vmem:[%s1015 + $0x48] sm:$0xff] %v1034
            %v1036 = vld [vmem:[%s1014 + $0x50] sm:$0xff]
            %1037 = vst [vmem:[%s1015 + $0x50] sm:$0xff] %v1036
            %v1038 = vld [vmem:[%s1014 + $0x58] sm:$0xff]
            %1039 = vst [vmem:[%s1015 + $0x58] sm:$0xff] %v1038
            %v1040 = vld [vmem:[%s1014 + $0x60] sm:$0xff]
            %1041 = vst [vmem:[%s1015 + $0x60] sm:$0xff] %v1040
            %v1042 = vld [vmem:[%s1014 + $0x68] sm:$0xff]
            %1043 = vst [vmem:[%s1015 + $0x68] sm:$0xff] %v1042
            %v1044 = vld [vmem:[%s1014 + $0x70] sm:$0xff]
            %1045 = vst [vmem:[%s1015 + $0x70] sm:$0xff] %v1044
            %v1046 = vld [vmem:[%s1014 + $0x78] sm:$0xff]
            %1047 = vst [vmem:[%s1015 + $0x78] sm:$0xff] %v1046
            %v1048 = vld [vmem:[%s1014 + $0x80] sm:$0xff]
            %1049 = vst [vmem:[%s1015 + $0x80] sm:$0xff] %v1048
            %v1050 = vld [vmem:[%s1014 + $0x88] sm:$0xff]
            %1051 = vst [vmem:[%s1015 + $0x88] sm:$0xff] %v1050
            %v1052 = vld [vmem:[%s1014 + $0x90] sm:$0xff]
            %1053 = vst [vmem:[%s1015 + $0x90] sm:$0xff] %v1052
            %v1054 = vld [vmem:[%s1014 + $0x98] sm:$0xff]
            %1055 = vst [vmem:[%s1015 + $0x98] sm:$0xff] %v1054
            %v1056 = vld [vmem:[%s1014 + $0xa0] sm:$0xff]
            %1057 = vst [vmem:[%s1015 + $0xa0] sm:$0xff] %v1056
            %v1058 = vld [vmem:[%s1014 + $0xa8] sm:$0xff]
            %1059 = vst [vmem:[%s1015 + $0xa8] sm:$0xff] %v1058
            %v1060 = vld [vmem:[%s1014 + $0xb0] sm:$0xff]
            %1061 = vst [vmem:[%s1015 + $0xb0] sm:$0xff] %v1060
            %v1062 = vld [vmem:[%s1014 + $0xb8] sm:$0xff]
            %1063 = vst [vmem:[%s1015 + $0xb8] sm:$0xff] %v1062
            %v1064 = vld [vmem:[%s1014 + $0xc0] sm:$0xff]
            %1065 = vst [vmem:[%s1015 + $0xc0] sm:$0xff] %v1064
            %v1066 = vld [vmem:[%s1014 + $0xc8] sm:$0xff]
            %1067 = vst [vmem:[%s1015 + $0xc8] sm:$0xff] %v1066
            %v1068 = vld [vmem:[%s1014 + $0xd0] sm:$0xff]
            %1069 = vst [vmem:[%s1015 + $0xd0] sm:$0xff] %v1068
            %v1070 = vld [vmem:[%s1014 + $0xd8] sm:$0xff]
            %1071 = vst [vmem:[%s1015 + $0xd8] sm:$0xff] %v1070
            %v1072 = vld [vmem:[%s1014 + $0xe0] sm:$0xff]
            %1073 = vst [vmem:[%s1015 + $0xe0] sm:$0xff] %v1072
            %v1074 = vld [vmem:[%s1014 + $0xe8] sm:$0xff]
            %1075 = vst [vmem:[%s1015 + $0xe8] sm:$0xff] %v1074
            %v1076 = vld [vmem:[%s1014 + $0xf0] sm:$0xff]
            %1077 = vst [vmem:[%s1015 + $0xf0] sm:$0xff] %v1076
            %v1078 = vld [vmem:[%s1014 + $0xf8] sm:$0xff]
            %1079 = vst [vmem:[%s1015 + $0xf8] sm:$0xff] %v1078
            %v1080 = vld [vmem:[%s1014 + $0x100] sm:$0xff]
            %1081 = vst [vmem:[%s1015 + $0x100] sm:$0xff] %v1080
            %v1082 = vld [vmem:[%s1014 + $0x108] sm:$0xff]
            %1083 = vst [vmem:[%s1015 + $0x108] sm:$0xff] %v1082
            %v1084 = vld [vmem:[%s1014 + $0x110] sm:$0xff]
            %1085 = vst [vmem:[%s1015 + $0x110] sm:$0xff] %v1084
            %v1086 = vld [vmem:[%s1014 + $0x118] sm:$0xff]
            %1087 = vst [vmem:[%s1015 + $0x118] sm:$0xff] %v1086
            %v1088 = vld [vmem:[%s1014 + $0x120] sm:$0xff]
            %1089 = vst [vmem:[%s1015 + $0x120] sm:$0xff] %v1088
            %v1090 = vld [vmem:[%s1014 + $0x128] sm:$0xff]
            %1091 = vst [vmem:[%s1015 + $0x128] sm:$0xff] %v1090
            %v1092 = vld [vmem:[%s1014 + $0x130] sm:$0xff]
            %1093 = vst [vmem:[%s1015 + $0x130] sm:$0xff] %v1092
            %v1094 = vld [vmem:[%s1014 + $0x138] sm:$0xff]
            %1095 = vst [vmem:[%s1015 + $0x138] sm:$0xff] %v1094
            %v1096 = vld [vmem:[%s1014 + $0x140] sm:$0xff]
            %1097 = vst [vmem:[%s1015 + $0x140] sm:$0xff] %v1096
            %v1098 = vld [vmem:[%s1014 + $0x148] sm:$0xff]
            %1099 = vst [vmem:[%s1015 + $0x148] sm:$0xff] %v1098
            %v1100 = vld [vmem:[%s1014 + $0x150] sm:$0xff]
            %1101 = vst [vmem:[%s1015 + $0x150] sm:$0xff] %v1100
            %v1102 = vld [vmem:[%s1014 + $0x158] sm:$0xff]
            %1103 = vst [vmem:[%s1015 + $0x158] sm:$0xff] %v1102
            %v1104 = vld [vmem:[%s1014 + $0x160] sm:$0xff]
            %1105 = vst [vmem:[%s1015 + $0x160] sm:$0xff] %v1104
            %v1106 = vld [vmem:[%s1014 + $0x168] sm:$0xff]
            %1107 = vst [vmem:[%s1015 + $0x168] sm:$0xff] %v1106
            %v1108 = vld [vmem:[%s1014 + $0x170] sm:$0xff]
            %1109 = vst [vmem:[%s1015 + $0x170] sm:$0xff] %v1108
            %v1110 = vld [vmem:[%s1014 + $0x178] sm:$0xff]
            %1111 = vst [vmem:[%s1015 + $0x178] sm:$0xff] %v1110
          $region63: #{reverse.9} parent=57 // loop_footer
            %s1013 = sadd.s32 1, %s1009
          $region64: #{reverse.9} parent=57 // loop_footer_branch
            %1008 = sbr.rel target = $region60
          $region65: #{reverse.9} parent=57 // loop_exit
            _
        $region58: #{reverse.9} parent=42 // pred_fallthru
          _
        // Predicated region
        $region66: #{reverse.9} parent=42 // pred_check
          _
        $region67: #{reverse.9} parent=42 // pred_check_branch
          %1113 = sbr.rel target = $region69
        $region68: #{reverse.9} parent=42 // pred_region
          _
        $region69: #{reverse.9} parent=42 // pred_fallthru
          _
      $region43: #{reverse.9} parent=38 // pred_fallthru
        _
      // Predicated region
      $region44: #{reverse.9} parent=38 // pred_check
        _
      $region45: #{reverse.9} parent=38 // pred_check_branch
        %899 = sbr.rel target = $region47
      $region46: #{reverse.9} parent=38 // pred_region
        %s901 = ssub.s32 256, 1
        loop: start=0, step=1, limit=1
        $region48: #{reverse.9} parent=46 // loop_pre_header
          _
        $region49: #{reverse.9} parent=46 // loop_header
          %s903 = sphi 0, %s907
          %p904 = scmp.ge.s32.totalorder %s903, 1
          %s908 = sphi [#allocation1], [#allocation1]
          %s909 = sphi %s1, %s1
        $region50: #{reverse.9} parent=46 // loop_header_branch
          %906 = sbr.rel (%p904) target = $region54
        $region51: #{reverse.9} parent=46 // loop_body
          %v910 = vld [vmem:[%s908] sm:%s901]
          %911 = vst [vmem:[%s909] sm:%s901] %v910
          %v912 = vld [vmem:[%s908 + $0x8] sm:%s901]
          %913 = vst [vmem:[%s909 + $0x8] sm:%s901] %v912
          %v914 = vld [vmem:[%s908 + $0x10] sm:%s901]
          %915 = vst [vmem:[%s909 + $0x10] sm:%s901] %v914
          %v916 = vld [vmem:[%s908 + $0x18] sm:%s901]
          %917 = vst [vmem:[%s909 + $0x18] sm:%s901] %v916
          %v918 = vld [vmem:[%s908 + $0x20] sm:%s901]
          %919 = vst [vmem:[%s909 + $0x20] sm:%s901] %v918
          %v920 = vld [vmem:[%s908 + $0x28] sm:%s901]
          %921 = vst [vmem:[%s909 + $0x28] sm:%s901] %v920
          %v922 = vld [vmem:[%s908 + $0x30] sm:%s901]
          %923 = vst [vmem:[%s909 + $0x30] sm:%s901] %v922
          %v924 = vld [vmem:[%s908 + $0x38] sm:%s901]
          %925 = vst [vmem:[%s909 + $0x38] sm:%s901] %v924
          %v926 = vld [vmem:[%s908 + $0x40] sm:%s901]
          %927 = vst [vmem:[%s909 + $0x40] sm:%s901] %v926
          %v928 = vld [vmem:[%s908 + $0x48] sm:%s901]
          %929 = vst [vmem:[%s909 + $0x48] sm:%s901] %v928
          %v930 = vld [vmem:[%s908 + $0x50] sm:%s901]
          %931 = vst [vmem:[%s909 + $0x50] sm:%s901] %v930
          %v932 = vld [vmem:[%s908 + $0x58] sm:%s901]
          %933 = vst [vmem:[%s909 + $0x58] sm:%s901] %v932
          %v934 = vld [vmem:[%s908 + $0x60] sm:%s901]
          %935 = vst [vmem:[%s909 + $0x60] sm:%s901] %v934
          %v936 = vld [vmem:[%s908 + $0x68] sm:%s901]
          %937 = vst [vmem:[%s909 + $0x68] sm:%s901] %v936
          %v938 = vld [vmem:[%s908 + $0x70] sm:%s901]
          %939 = vst [vmem:[%s909 + $0x70] sm:%s901] %v938
          %v940 = vld [vmem:[%s908 + $0x78] sm:%s901]
          %941 = vst [vmem:[%s909 + $0x78] sm:%s901] %v940
          %v942 = vld [vmem:[%s908 + $0x80] sm:%s901]
          %943 = vst [vmem:[%s909 + $0x80] sm:%s901] %v942
          %v944 = vld [vmem:[%s908 + $0x88] sm:%s901]
          %945 = vst [vmem:[%s909 + $0x88] sm:%s901] %v944
          %v946 = vld [vmem:[%s908 + $0x90] sm:%s901]
          %947 = vst [vmem:[%s909 + $0x90] sm:%s901] %v946
          %v948 = vld [vmem:[%s908 + $0x98] sm:%s901]
          %949 = vst [vmem:[%s909 + $0x98] sm:%s901] %v948
          %v950 = vld [vmem:[%s908 + $0xa0] sm:%s901]
          %951 = vst [vmem:[%s909 + $0xa0] sm:%s901] %v950
          %v952 = vld [vmem:[%s908 + $0xa8] sm:%s901]
          %953 = vst [vmem:[%s909 + $0xa8] sm:%s901] %v952
          %v954 = vld [vmem:[%s908 + $0xb0] sm:%s901]
          %955 = vst [vmem:[%s909 + $0xb0] sm:%s901] %v954
          %v956 = vld [vmem:[%s908 + $0xb8] sm:%s901]
          %957 = vst [vmem:[%s909 + $0xb8] sm:%s901] %v956
          %v958 = vld [vmem:[%s908 + $0xc0] sm:%s901]
          %959 = vst [vmem:[%s909 + $0xc0] sm:%s901] %v958
          %v960 = vld [vmem:[%s908 + $0xc8] sm:%s901]
          %961 = vst [vmem:[%s909 + $0xc8] sm:%s901] %v960
          %v962 = vld [vmem:[%s908 + $0xd0] sm:%s901]
          %963 = vst [vmem:[%s909 + $0xd0] sm:%s901] %v962
          %v964 = vld [vmem:[%s908 + $0xd8] sm:%s901]
          %965 = vst [vmem:[%s909 + $0xd8] sm:%s901] %v964
          %v966 = vld [vmem:[%s908 + $0xe0] sm:%s901]
          %967 = vst [vmem:[%s909 + $0xe0] sm:%s901] %v966
          %v968 = vld [vmem:[%s908 + $0xe8] sm:%s901]
          %969 = vst [vmem:[%s909 + $0xe8] sm:%s901] %v968
          %v970 = vld [vmem:[%s908 + $0xf0] sm:%s901]
          %971 = vst [vmem:[%s909 + $0xf0] sm:%s901] %v970
          %v972 = vld [vmem:[%s908 + $0xf8] sm:%s901]
          %973 = vst [vmem:[%s909 + $0xf8] sm:%s901] %v972
          %v974 = vld [vmem:[%s908 + $0x100] sm:%s901]
          %975 = vst [vmem:[%s909 + $0x100] sm:%s901] %v974
          %v976 = vld [vmem:[%s908 + $0x108] sm:%s901]
          %977 = vst [vmem:[%s909 + $0x108] sm:%s901] %v976
          %v978 = vld [vmem:[%s908 + $0x110] sm:%s901]
          %979 = vst [vmem:[%s909 + $0x110] sm:%s901] %v978
          %v980 = vld [vmem:[%s908 + $0x118] sm:%s901]
          %981 = vst [vmem:[%s909 + $0x118] sm:%s901] %v980
          %v982 = vld [vmem:[%s908 + $0x120] sm:%s901]
          %983 = vst [vmem:[%s909 + $0x120] sm:%s901] %v982
          %v984 = vld [vmem:[%s908 + $0x128] sm:%s901]
          %985 = vst [vmem:[%s909 + $0x128] sm:%s901] %v984
          %v986 = vld [vmem:[%s908 + $0x130] sm:%s901]
          %987 = vst [vmem:[%s909 + $0x130] sm:%s901] %v986
          %v988 = vld [vmem:[%s908 + $0x138] sm:%s901]
          %989 = vst [vmem:[%s909 + $0x138] sm:%s901] %v988
          %v990 = vld [vmem:[%s908 + $0x140] sm:%s901]
          %991 = vst [vmem:[%s909 + $0x140] sm:%s901] %v990
          %v992 = vld [vmem:[%s908 + $0x148] sm:%s901]
          %993 = vst [vmem:[%s909 + $0x148] sm:%s901] %v992
          %v994 = vld [vmem:[%s908 + $0x150] sm:%s901]
          %995 = vst [vmem:[%s909 + $0x150] sm:%s901] %v994
          %v996 = vld [vmem:[%s908 + $0x158] sm:%s901]
          %997 = vst [vmem:[%s909 + $0x158] sm:%s901] %v996
          %v998 = vld [vmem:[%s908 + $0x160] sm:%s901]
          %999 = vst [vmem:[%s909 + $0x160] sm:%s901] %v998
          %v1000 = vld [vmem:[%s908 + $0x168] sm:%s901]
          %1001 = vst [vmem:[%s909 + $0x168] sm:%s901] %v1000
          %v1002 = vld [vmem:[%s908 + $0x170] sm:%s901]
          %1003 = vst [vmem:[%s909 + $0x170] sm:%s901] %v1002
          %v1004 = vld [vmem:[%s908 + $0x178] sm:%s901]
          %1005 = vst [vmem:[%s909 + $0x178] sm:%s901] %v1004
        $region52: #{reverse.9} parent=46 // loop_footer
          %s907 = sadd.s32 1, %s903
        $region53: #{reverse.9} parent=46 // loop_footer_branch
          %902 = sbr.rel target = $region49
        $region54: #{reverse.9} parent=46 // loop_exit
          _
      $region47: #{reverse.9} parent=38 // pred_fallthru
        _
    $region39: #{reverse.9} parent=1 // pred_fallthru
      _
    %1114 = vnop

// kernel: net2d_forward.11
$region0: #{net2d_forward.11}
  #allocation0 [shape = 'u32[]', space=smem, size = 0x4, offset = 0x4, fixed_abs, tag = 'smem constant byte address 0x4 - core index']
  #allocation1 [shape = 'u32[72,128]{1,0:T(1,128)}', space=vmem, size = 0x9000, scoped, tag = 'internal scratch']
  %s0 = inlined_call_operand.vmem [shape: bf16[8,1536], index: 0, kind: input, shape index: {}]
  %s1 = inlined_call_operand.vmem [shape: f32[8,1536], index: 1, kind: input, shape index: {}]
  %s2 = inlined_call_operand.vmem [shape: bf16[8,8], index: 2, kind: input, shape index: {}]
  %s3 = inlined_call_operand.vmem [shape: f32[8,1], index: 3, kind: input, shape index: {}]
  %s4 = inlined_call_operand.vmem [shape: f32[8,1], index: 4, kind: input, shape index: {}]
  %s5 = inlined_call_operand.vmem [shape: bf16[8,1536], index: 5, kind: output, shape index: {}]
  %s6 = sld [smem:[#allocation0]]
  $region53: #{net2d_forward.11} parent=0
    _
  %s8 = ssub.s32 1, %s6
  %s9 = scalar_select 0, %s8, %s6
  loop: start=0, step=1, limit=4
  $region2: #{net2d_forward.11} parent=0 // loop_pre_header
    _
  $region3: #{net2d_forward.11} parent=0 // loop_header
    %s11 = sphi 0, %s15
    %p12 = scmp.ge.s32.totalorder %s11, 4
    %s21 = sphi 0, %s23
    %s24 = sphi 0, %s21
    %s25 = sphi 0, %s24
    %s41 = sphi 0, %s25
    %s47 = sphi 0, %s49
    %s50 = sphi 0, %s47
    %s51 = sphi 0, %s50
    %s67 = sphi 0, %s51
    %s71 = sphi 0, %s71
    %s73 = sphi 0, %s71
    %s74 = sphi 0, %s73
    %s88 = sphi 0, %s74
    %s92 = sphi 0, %s92
    %s94 = sphi 0, %s92
    %s95 = sphi 0, %s94
    %s109 = sphi 0, %s95
    %s113 = sphi 0, %s113
    %s115 = sphi 0, %s113
    %s116 = sphi 0, %s115
    %s130 = sphi 0, %s116
    %s136 = sphi 0, %s138
    %s139 = sphi 0, %s136
    %s140 = sphi 0, %s139
    %s156 = sphi 0, %s140
  $region4: #{net2d_forward.11} parent=0 // loop_header_branch
    %14 = sbr.rel (%p12) target = $region8
  $region5: #{net2d_forward.11} parent=0 // loop_body
    %s16 = ssub.s32 %s11, 1
    %s17 = ssub.s32 %s11, 2
    %s18 = sadd.s32 %s11, 1
    %s19 = ssub.s32 %s11, %s18
    %p20 = scmp.eq.s32.totalorder %s19, 0
    %s22 = sadd.s32 %s21, 1
    %s23 = scalar_select %p20, %s21, %s22
    %p26 = pneg %p20
    %p27 = scmp.eq.s32.totalorder %s11, 1
    %p28 = por %p26, %p27
    %p29 = scmp.ne.s32.totalorder %s21, %s24
    %p30 = scmp.eq.s32.totalorder %s11, 0
    %p31 = por %p29, %p30
    %p32 = scmp.ne.s32.totalorder %s21, %s24
    %p33 = scmp.eq.s32.totalorder %s16, 1
    %p34 = por %p32, %p33
    %p35 = scmp.ne.s32.totalorder %s24, %s25
    %p36 = scmp.eq.s32.totalorder %s16, 0
    %p37 = por %p35, %p36
    %p38 = scmp.ne.s32.totalorder %s24, %s25
    %p39 = scmp.eq.s32.totalorder %s17, 1
    %p40 = por %p38, %p39
    %p42 = scmp.ne.s32.totalorder %s25, %s41
    %p43 = scmp.eq.s32.totalorder %s17, 0
    %p44 = por %p42, %p43
    %s45 = ssub.s32 %s11, %s18
    %p46 = scmp.eq.s32.totalorder %s45, 0
    %s48 = sadd.s32 %s47, 1
    %s49 = scalar_select %p46, %s47, %s48
    %p52 = pneg %p46
    %p53 = scmp.eq.s32.totalorder %s11, 1
    %p54 = por %p52, %p53
    %p55 = scmp.ne.s32.totalorder %s47, %s50
    %p56 = scmp.eq.s32.totalorder %s11, 0
    %p57 = por %p55, %p56
    %p58 = scmp.ne.s32.totalorder %s47, %s50
    %p59 = scmp.eq.s32.totalorder %s16, 1
    %p60 = por %p58, %p59
    %p61 = scmp.ne.s32.totalorder %s50, %s51
    %p62 = scmp.eq.s32.totalorder %s16, 0
    %p63 = por %p61, %p62
    %p64 = scmp.ne.s32.totalorder %s50, %s51
    %p65 = scmp.eq.s32.totalorder %s17, 1
    %p66 = por %p64, %p65
    %p68 = scmp.ne.s32.totalorder %s51, %s67
    %p69 = scmp.eq.s32.totalorder %s17, 0
    %p70 = por %p68, %p69
    %s72 = sadd.s32 %s71, 1
    %p75 = scmp.eq.s32.totalorder %s11, 1
    %p76 = scmp.ne.s32.totalorder %s71, %s73
    %p77 = scmp.eq.s32.totalorder %s11, 0
    %p78 = por %p76, %p77
    %p79 = scmp.ne.s32.totalorder %s71, %s73
    %p80 = scmp.eq.s32.totalorder %s16, 1
    %p81 = por %p79, %p80
    %p82 = scmp.ne.s32.totalorder %s73, %s74
    %p83 = scmp.eq.s32.totalorder %s16, 0
    %p84 = por %p82, %p83
    %p85 = scmp.ne.s32.totalorder %s73, %s74
    %p86 = scmp.eq.s32.totalorder %s17, 1
    %p87 = por %p85, %p86
    %p89 = scmp.ne.s32.totalorder %s74, %s88
    %p90 = scmp.eq.s32.totalorder %s17, 0
    %p91 = por %p89, %p90
    %s93 = sadd.s32 %s92, 1
    %p96 = scmp.eq.s32.totalorder %s11, 1
    %p97 = scmp.ne.s32.totalorder %s92, %s94
    %p98 = scmp.eq.s32.totalorder %s11, 0
    %p99 = por %p97, %p98
    %p100 = scmp.ne.s32.totalorder %s92, %s94
    %p101 = scmp.eq.s32.totalorder %s16, 1
    %p102 = por %p100, %p101
    %p103 = scmp.ne.s32.totalorder %s94, %s95
    %p104 = scmp.eq.s32.totalorder %s16, 0
    %p105 = por %p103, %p104
    %p106 = scmp.ne.s32.totalorder %s94, %s95
    %p107 = scmp.eq.s32.totalorder %s17, 1
    %p108 = por %p106, %p107
    %p110 = scmp.ne.s32.totalorder %s95, %s109
    %p111 = scmp.eq.s32.totalorder %s17, 0
    %p112 = por %p110, %p111
    %s114 = sadd.s32 %s113, 1
    %p117 = scmp.eq.s32.totalorder %s11, 1
    %p118 = scmp.ne.s32.totalorder %s113, %s115
    %p119 = scmp.eq.s32.totalorder %s11, 0
    %p120 = por %p118, %p119
    %p121 = scmp.ne.s32.totalorder %s113, %s115
    %p122 = scmp.eq.s32.totalorder %s16, 1
    %p123 = por %p121, %p122
    %p124 = scmp.ne.s32.totalorder %s115, %s116
    %p125 = scmp.eq.s32.totalorder %s16, 0
    %p126 = por %p124, %p125
    %p127 = scmp.ne.s32.totalorder %s115, %s116
    %p128 = scmp.eq.s32.totalorder %s17, 1
    %p129 = por %p127, %p128
    %p131 = scmp.ne.s32.totalorder %s116, %s130
    %p132 = scmp.eq.s32.totalorder %s17, 0
    %p133 = por %p131, %p132
    %s134 = ssub.s32 %s11, %s18
    %p135 = scmp.eq.s32.totalorder %s134, 0
    %s137 = sadd.s32 %s136, 1
    %s138 = scalar_select %p135, %s136, %s137
    %p141 = pneg %p135
    %p142 = scmp.eq.s32.totalorder %s11, 1
    %p143 = por %p141, %p142
    %p144 = scmp.ne.s32.totalorder %s136, %s139
    %p145 = scmp.eq.s32.totalorder %s11, 0
    %p146 = por %p144, %p145
    %p147 = scmp.ne.s32.totalorder %s136, %s139
    %p148 = scmp.eq.s32.totalorder %s16, 1
    %p149 = por %p147, %p148
    %p150 = scmp.ne.s32.totalorder %s139, %s140
    %p151 = scmp.eq.s32.totalorder %s16, 0
    %p152 = por %p150, %p151
    %p153 = scmp.ne.s32.totalorder %s139, %s140
    %p154 = scmp.eq.s32.totalorder %s17, 1
    %p155 = por %p153, %p154
    %p157 = scmp.ne.s32.totalorder %s140, %s156
    %p158 = scmp.eq.s32.totalorder %s17, 0
    %p159 = por %p157, %p158
    %p160 = scmp.le.s32.totalorder 1, %s11
    %p161 = scmp.lt.s32.totalorder %s11, 3
    %p162 = pnand %p160, %p161
    %p163 = pneg %p162
    // Predicated region
    $region9: #{net2d_forward.11} parent=5 // pred_check
      _
    $region10: #{net2d_forward.11} parent=5 // pred_check_branch
      %165 = sbr.rel (%p162) target = $region12
    $region11: #{net2d_forward.11} parent=5 // pred_region
      %s166 = ssub.s32 %s11, 1
      // Predicated region
      $region13: #{net2d_forward.11} parent=11 // pred_check
        %p167 = pneg %p84
      $region14: #{net2d_forward.11} parent=11 // pred_check_branch
        %169 = sbr.rel (%p167) target = $region16
      $region15: #{net2d_forward.11} parent=11 // pred_region
        _
      $region16: #{net2d_forward.11} parent=11 // pred_fallthru
        _
      // Predicated region
      $region17: #{net2d_forward.11} parent=11 // pred_check
        %p170 = pneg %p105
      $region18: #{net2d_forward.11} parent=11 // pred_check_branch
        %172 = sbr.rel (%p170) target = $region20
      $region19: #{net2d_forward.11} parent=11 // pred_region
        _
      $region20: #{net2d_forward.11} parent=11 // pred_fallthru
        _
      // Predicated region
      $region21: #{net2d_forward.11} parent=11 // pred_check
        %p173 = pneg %p126
      $region22: #{net2d_forward.11} parent=11 // pred_check_branch
        %175 = sbr.rel (%p173) target = $region24
      $region23: #{net2d_forward.11} parent=11 // pred_region
        _
      $region24: #{net2d_forward.11} parent=11 // pred_fallthru
        _
    $region12: #{net2d_forward.11} parent=5 // pred_fallthru
      _
    %p176 = scmp.lt.s32.totalorder %s11, 2
    // Predicated region
    $region25: #{net2d_forward.11} parent=5 // pred_check
      %p177 = pneg %p176
    $region26: #{net2d_forward.11} parent=5 // pred_check_branch
      %179 = sbr.rel (%p177) target = $region28
    $region27: #{net2d_forward.11} parent=5 // pred_region
      // Predicated region
      $region29: #{net2d_forward.11} parent=27 // pred_check
        %p180 = pneg %p31
      $region30: #{net2d_forward.11} parent=27 // pred_check_branch
        %182 = sbr.rel (%p180) target = $region32
      $region31: #{net2d_forward.11} parent=27 // pred_region
        %s183 = smul.u32 6, %s11
        %p184 = scmp.lt.s32.totalorder %s183, 11
        %s185 = scalar_select %p184, %s183, 11
        %s186 = smul.addr %s185, 4
        %s187 = scalar_lea.vmem %s0, %s186
        %s188 = smul.u32 6, %s11
      $region32: #{net2d_forward.11} parent=27 // pred_fallthru
        _
      // Predicated region
      $region33: #{net2d_forward.11} parent=27 // pred_check
        %p189 = pneg %p57
      $region34: #{net2d_forward.11} parent=27 // pred_check_branch
        %191 = sbr.rel (%p189) target = $region36
      $region35: #{net2d_forward.11} parent=27 // pred_region
        %s192 = smul.u32 6, %s11
        %p193 = scmp.lt.s32.totalorder %s192, 11
        %s194 = scalar_select %p193, %s192, 11
        %s195 = smul.addr %s194, 8
        %s196 = scalar_lea.vmem %s1, %s195
        %s197 = smul.u32 6, %s11
      $region36: #{net2d_forward.11} parent=27 // pred_fallthru
        _
    $region28: #{net2d_forward.11} parent=5 // pred_fallthru
      _
    %p198 = scmp.le.s32.totalorder 1, %s11
    %p199 = scmp.lt.s32.totalorder %s11, 3
    %p200 = pnand %p198, %p199
    %p201 = pneg %p200
    // Predicated region
    $region37: #{net2d_forward.11} parent=5 // pred_check
      _
    $region38: #{net2d_forward.11} parent=5 // pred_check_branch
      %203 = sbr.rel (%p200) target = $region40
    $region39: #{net2d_forward.11} parent=5 // pred_region
      %s204 = ssub.s32 %s11, 1
      %s205 = smul.u32 6, %s16
      %p206 = scmp.lt.s32.totalorder %s205, 11
      %s207 = scalar_select %p206, %s205, 11
      %s208 = smul.addr %s207, 4
      %s209 = scalar_lea.vmem %s0, %s208
      %p210 = pneg %p37
      %p211 = pneg %p34
      %s212 = smul.u32 6, %s16
      %p213 = scmp.lt.s32.totalorder %s212, 11
      %s214 = scalar_select %p213, %s212, 11
      %s215 = smul.addr %s214, 8
      %s216 = scalar_lea.vmem %s1, %s215
      %p217 = pneg %p63
      %p218 = pneg %p60
      %p219 = pneg %p84
      %p220 = pneg %p81
      %p221 = pneg %p105
      %p222 = pneg %p102
      %p223 = pneg %p126
      %p224 = pneg %p123
      %p225 = pneg %p152
      %p226 = pneg %p149
      %s227 = smul.u32 6, %s16
      %p228 = scmp.lt.s32.totalorder %s227, 11
      %s229 = scalar_select %p228, %s227, 11
      %s230 = smul.addr %s229, 4
      %s231 = scalar_lea.vmem %s5, %s230
      %s232 = smul.u32 6, %s16
      %p233 = scmp.lt.s32.totalorder %s232, 11
      %s234 = scalar_select %p233, %s232, 11
      %s235 = smul.addr %s234, 4
      %s236 = scalar_lea.vmem %s0, %s235
      %s237 = smul.u32 6, %s16
      %s238 = smul.u32 6, %s16
      %p239 = scmp.lt.s32.totalorder %s238, 11
      %s240 = scalar_select %p239, %s238, 11
      %s241 = smul.addr %s240, 8
      %s242 = scalar_lea.vmem %s1, %s241
      %s243 = smul.u32 6, %s16
      %s244 = smul.u32 6, %s16
      %p245 = scmp.lt.s32.totalorder %s244, 11
      %s246 = scalar_select %p245, %s244, 11
      %s247 = smul.addr %s246, 4
      %s248 = scalar_lea.vmem %s5, %s247
      %s249 = smul.u32 6, %s16
      %v251 = vld [vmem:[%s2] sm:$0xf]
      %v252 = vld [vmem:[%s236] sm:$0xff]
      %v253 = vld [vmem:[%s236 + $0x8] sm:$0xff]
      %v254 = vld [vmem:[%s236 + $0x10] sm:$0xff]
      %v255 = vld [vmem:[%s3] sm:$0xff]
      %257 = vset.pattern.permute.xlu0 0
      %258 = vperm.xlu0 %257, %v255
      %v259 = vpop.permute.xlu0 %258
      %v264 = vunpack.c.l.b16 %v252
      %v265 = vunpack.c.h.b16 %v252
      %v266 = vunpack.c.l.b16 %v253
      %v267 = vunpack.c.h.b16 %v253
      %v268 = vunpack.c.l.b16 %v254
      %v269 = vunpack.c.h.b16 %v254
      %v270 = vpack.c.b16 %v264, %v264
      %v271 = vpack.c.b16 %v265, %v265
      %v272 = vpack.c.b16 %v266, %v266
      %v273 = vpack.c.b16 %v267, %v267
      %v274 = vpack.c.b16 %v268, %v268
      %v275 = vpack.c.b16 %v269, %v269
      %vm276 = vcmask 64512
      %v278 = vsel %vm276, %v251, 0
      %vm280 = vcmask 1043456
      %v282 = vsel %vm280, %v270, 0
      %v285 = vsel %vm280, %v271, 0
      %v288 = vsel %vm280, %v272, 0
      %v291 = vsel %vm280, %v273, 0
      %v294 = vsel %vm280, %v274, 0
      %v297 = vsel %vm280, %v275, 0
      %299 = vmatpush.bf16.msra.mxu0 0
      %300 = vmatpush.bf16.msra.mxu0 0
      %301 = vmatpush.bf16.msra.mxu0 0
      %302 = vmatpush.bf16.msra.mxu0 0
      %303 = vmatpush.bf16.msra.mxu0 0
      %304 = vmatpush.bf16.msra.mxu0 0
      %305 = vmatpush.bf16.msra.mxu0 0
      %306 = vmatpush.bf16.msra.mxu0 %v282
      %307 = vmatmul.bf16.gmra.mxu0 %v278
      %v308 = vpop.f32.mrf.mxu0
      %v309 = vadd.f32 %v259, %v308
      %v310 = vpop.f32.mrf.mxu0
      %311 = vdwg.mxu0
      %312 = vmatpush.bf16.msra.mxu0 0
      %313 = vmatpush.bf16.msra.mxu0 0
      %314 = vmatpush.bf16.msra.mxu0 0
      %315 = vmatpush.bf16.msra.mxu0 0
      %316 = vmatpush.bf16.msra.mxu0 0
      %317 = vmatpush.bf16.msra.mxu0 0
      %318 = vmatpush.bf16.msra.mxu0 0
      %319 = vmatpush.bf16.msra.mxu0 %v285
      %320 = vmatmul.bf16.gmra.mxu0 %v278
      %v321 = vpop.f32.mrf.mxu0
      %v322 = vadd.f32 %v259, %v321
      %v323 = vpop.f32.mrf.mxu0
      %324 = vdwg.mxu0
      %325 = vmatpush.bf16.msra.mxu0 0
      %326 = vmatpush.bf16.msra.mxu0 0
      %327 = vmatpush.bf16.msra.mxu0 0
      %328 = vmatpush.bf16.msra.mxu0 0
      %329 = vmatpush.bf16.msra.mxu0 0
      %330 = vmatpush.bf16.msra.mxu0 0
      %331 = vmatpush.bf16.msra.mxu0 0
      %332 = vmatpush.bf16.msra.mxu0 %v288
      %333 = vmatmul.bf16.gmra.mxu0 %v278
      %v334 = vpop.f32.mrf.mxu0
      %v335 = vadd.f32 %v259, %v334
      %v336 = vpop.f32.mrf.mxu0
      %337 = vdwg.mxu0
      %338 = vmatpush.bf16.msra.mxu0 0
      %339 = vmatpush.bf16.msra.mxu0 0
      %340 = vmatpush.bf16.msra.mxu0 0
      %341 = vmatpush.bf16.msra.mxu0 0
      %342 = vmatpush.bf16.msra.mxu0 0
      %343 = vmatpush.bf16.msra.mxu0 0
      %344 = vmatpush.bf16.msra.mxu0 0
      %345 = vmatpush.bf16.msra.mxu0 %v291
      %346 = vmatmul.bf16.gmra.mxu0 %v278
      %v347 = vpop.f32.mrf.mxu0
      %v348 = vadd.f32 %v259, %v347
      %v349 = vpop.f32.mrf.mxu0
      %350 = vdwg.mxu0
      %351 = vmatpush.bf16.msra.mxu0 0
      %352 = vmatpush.bf16.msra.mxu0 0
      %353 = vmatpush.bf16.msra.mxu0 0
      %354 = vmatpush.bf16.msra.mxu0 0
      %355 = vmatpush.bf16.msra.mxu0 0
      %356 = vmatpush.bf16.msra.mxu0 0
      %357 = vmatpush.bf16.msra.mxu0 0
      %358 = vmatpush.bf16.msra.mxu0 %v294
      %359 = vmatmul.bf16.gmra.mxu0 %v278
      %v360 = vpop.f32.mrf.mxu0
      %v361 = vadd.f32 %v259, %v360
      %v362 = vpop.f32.mrf.mxu0
      %363 = vdwg.mxu0
      %364 = vmatpush.bf16.msra.mxu0 0
      %365 = vmatpush.bf16.msra.mxu0 0
      %366 = vmatpush.bf16.msra.mxu0 0
      %367 = vmatpush.bf16.msra.mxu0 0
      %368 = vmatpush.bf16.msra.mxu0 0
      %369 = vmatpush.bf16.msra.mxu0 0
      %370 = vmatpush.bf16.msra.mxu0 0
      %371 = vmatpush.bf16.msra.mxu0 %v297
      %372 = vmatmul.bf16.gmra.mxu0 %v278
      %v373 = vpop.f32.mrf.mxu0
      %v374 = vadd.f32 %v259, %v373
      %v375 = vpop.f32.mrf.mxu0
      %376 = vdwg.mxu0
      %v377 = vld [vmem:[%s242] sm:$0xff]
      %v378 = vld [vmem:[%s242 + $0x8] sm:$0xff]
      %v379 = vld [vmem:[%s242 + $0x10] sm:$0xff]
      %v380 = vld [vmem:[%s242 + $0x18] sm:$0xff]
      %v381 = vld [vmem:[%s242 + $0x20] sm:$0xff]
      %v382 = vld [vmem:[%s242 + $0x28] sm:$0xff]
      %v383 = vadd.f32 %v377, %v309
      %v384 = vadd.f32 %v378, %v322
      %v385 = vadd.f32 %v379, %v335
      %v386 = vadd.f32 %v380, %v348
      %v387 = vadd.f32 %v381, %v361
      %v388 = vadd.f32 %v382, %v374
      %v389 = vld [vmem:[%s4] sm:$0xff]
      %391 = vset.pattern.permute.xlu0 0
      %392 = vperm.xlu0 %391, %v389
      %v393 = vpop.permute.xlu0 %392
      %v395 = vadd.f32 %v383, %v393
      %v396 = vadd.f32 %v384, %v393
      %v397 = vadd.f32 %v385, %v393
      %v398 = vadd.f32 %v386, %v393
      %v399 = vadd.f32 %v387, %v393
      %v400 = vadd.f32 %v388, %v393
      %v401 = vmax.f32 %v395, 0.0
      %v402 = vmax.f32 %v396, 0.0
      %v403 = vmax.f32 %v397, 0.0
      %v404 = vmax.f32 %v398, 0.0
      %v405 = vmax.f32 %v399, 0.0
      %v406 = vmax.f32 %v400, 0.0
      %v407 = vpack.c.bf16 %v402, %v401
      %v408 = vpack.c.bf16 %v404, %v403
      %v409 = vpack.c.bf16 %v406, %v405
      %410 = vst [vmem:[%s248] sm:$0xff] %v407
      %411 = vst [vmem:[%s248 + $0x8] sm:$0xff] %v408
      %412 = vst [vmem:[%s248 + $0x10] sm:$0xff] %v409
      %s413 = smul.u32 6, %s16
      %p414 = scmp.lt.s32.totalorder %s413, 11
      %s415 = scalar_select %p414, %s413, 11
      %s416 = smul.addr %s415, 4
      %s417 = scalar_lea.vmem %s5, %s416
      // Predicated region
      $region41: #{net2d_forward.11} parent=39 // pred_check
        %p418 = pneg %p149
      $region42: #{net2d_forward.11} parent=39 // pred_check_branch
        %420 = sbr.rel (%p418) target = $region44
      $region43: #{net2d_forward.11} parent=39 // pred_region
        %s421 = smul.u32 6, %s16
      $region44: #{net2d_forward.11} parent=39 // pred_fallthru
        _
    $region40: #{net2d_forward.11} parent=5 // pred_fallthru
      _
    %p422 = scmp.le.s32.totalorder 2, %s11
    // Predicated region
    $region45: #{net2d_forward.11} parent=5 // pred_check
      %p423 = pneg %p422
    $region46: #{net2d_forward.11} parent=5 // pred_check_branch
      %425 = sbr.rel (%p423) target = $region48
    $region47: #{net2d_forward.11} parent=5 // pred_region
      %s426 = ssub.s32 %s11, 2
      // Predicated region
      $region49: #{net2d_forward.11} parent=47 // pred_check
        %p427 = pneg %p155
      $region50: #{net2d_forward.11} parent=47 // pred_check_branch
        %429 = sbr.rel (%p427) target = $region52
      $region51: #{net2d_forward.11} parent=47 // pred_region
        %s430 = smul.u32 6, %s17
        %p431 = scmp.lt.s32.totalorder %s430, 11
        %s432 = scalar_select %p431, %s430, 11
        %s433 = smul.addr %s432, 4
        %s434 = scalar_lea.vmem %s5, %s433
      $region52: #{net2d_forward.11} parent=47 // pred_fallthru
        _
    $region48: #{net2d_forward.11} parent=5 // pred_fallthru
      _
  $region6: #{net2d_forward.11} parent=0 // loop_footer
    %s15 = sadd.s32 1, %s11
  $region7: #{net2d_forward.11} parent=0 // loop_footer_branch
    %10 = sbr.rel target = $region3
  $region8: #{net2d_forward.11} parent=0 // loop_exit
    _

// kernel: net2d_forward.17
$region0: #{net2d_forward.17}
  #allocation0 [shape = 'u32[]', space=smem, size = 0x4, offset = 0x4, fixed_abs, tag = 'smem constant byte address 0x4 - core index']
  #allocation1 [shape = 'u32[72,128]{1,0:T(1,128)}', space=vmem, size = 0x9000, scoped, tag = 'internal scratch']
  #allocation2 [shape = 'f32[1,1]{1,0:T(1,128)S(1)}', space=vmem, size = 0x200, scoped, tag = 'scoped memory for net2d_forward.17']
  %s0 = inlined_call_operand.vmem [shape: bf16[8,1536], index: 0, kind: input, shape index: {}]
  %s1 = inlined_call_operand.vmem [shape: f32[8,1536], index: 1, kind: input, shape index: {}]
  %s2 = inlined_call_operand.vmem [shape: bf16[8,8], index: 2, kind: input, shape index: {}]
  %s3 = inlined_call_operand.vmem [shape: f32[8,1], index: 3, kind: input, shape index: {}]
  %s4 = inlined_call_operand.vmem [shape: f32[8,1], index: 4, kind: input, shape index: {}]
  %s5 = inlined_call_operand.vmem [shape: bf16[128,8], index: 5, kind: input, shape index: {}]
  %s6 = inlined_call_operand.vmem [shape: f32[128,1], index: 6, kind: input, shape index: {}]
  %s7 = inlined_call_operand.vmem [shape: bf16[1,128], index: 7, kind: input, shape index: {}]
  %s8 = inlined_call_operand.<no memory space> [shape: f32[1,1], index: 8, kind: input, shape index: {}]
  %s9 = inlined_call_operand.vmem [shape: f32[1,1536], index: 9, kind: output, shape index: {}]
  %s10 = sld [smem:[#allocation0]]
  $region69: #{net2d_forward.17} parent=0
    _
  %s12 = ssub.s32 1, %s10
  %s13 = scalar_select 0, %s12, %s10
  %v14 = vstv %s8
  %15 = vst [vmem:[#allocation2] sm:$0x1] %v14
  loop: start=0, step=1, limit=6
  $region2: #{net2d_forward.17} parent=0 // loop_pre_header
    _
  $region3: #{net2d_forward.17} parent=0 // loop_header
    %s17 = sphi 0, %s21
    %p18 = scmp.ge.s32.totalorder %s17, 6
    %s27 = sphi 0, %s29
    %s30 = sphi 0, %s27
    %s31 = sphi 0, %s30
    %s47 = sphi 0, %s31
    %s53 = sphi 0, %s55
    %s56 = sphi 0, %s53
    %s57 = sphi 0, %s56
    %s73 = sphi 0, %s57
    %s77 = sphi 0, %s77
    %s79 = sphi 0, %s77
    %s80 = sphi 0, %s79
    %s94 = sphi 0, %s80
    %s98 = sphi 0, %s98
    %s100 = sphi 0, %s98
    %s101 = sphi 0, %s100
    %s115 = sphi 0, %s101
    %s119 = sphi 0, %s119
    %s121 = sphi 0, %s119
    %s122 = sphi 0, %s121
    %s136 = sphi 0, %s122
    %s140 = sphi 0, %s140
    %s142 = sphi 0, %s140
    %s143 = sphi 0, %s142
    %s157 = sphi 0, %s143
    %s161 = sphi 0, %s161
    %s163 = sphi 0, %s161
    %s164 = sphi 0, %s163
    %s178 = sphi 0, %s164
    %s182 = sphi 0, %s182
    %s184 = sphi 0, %s182
    %s185 = sphi 0, %s184
    %s199 = sphi 0, %s185
    %s203 = sphi 0, %s203
    %s205 = sphi 0, %s203
    %s206 = sphi 0, %s205
    %s220 = sphi 0, %s206
    %s226 = sphi 0, %s228
    %s229 = sphi 0, %s226
    %s230 = sphi 0, %s229
    %s246 = sphi 0, %s230
  $region4: #{net2d_forward.17} parent=0 // loop_header_branch
    %20 = sbr.rel (%p18) target = $region8
  $region5: #{net2d_forward.17} parent=0 // loop_body
    %s22 = ssub.s32 %s17, 1
    %s23 = ssub.s32 %s17, 2
    %s24 = sadd.s32 %s17, 1
    %s25 = ssub.s32 %s17, %s24
    %p26 = scmp.eq.s32.totalorder %s25, 0
    %s28 = sadd.s32 %s27, 1
    %s29 = scalar_select %p26, %s27, %s28
    %p32 = pneg %p26
    %p33 = scmp.eq.s32.totalorder %s17, 3
    %p34 = por %p32, %p33
    %p35 = scmp.ne.s32.totalorder %s27, %s30
    %p36 = scmp.eq.s32.totalorder %s17, 0
    %p37 = por %p35, %p36
    %p38 = scmp.ne.s32.totalorder %s27, %s30
    %p39 = scmp.eq.s32.totalorder %s22, 3
    %p40 = por %p38, %p39
    %p41 = scmp.ne.s32.totalorder %s30, %s31
    %p42 = scmp.eq.s32.totalorder %s22, 0
    %p43 = por %p41, %p42
    %p44 = scmp.ne.s32.totalorder %s30, %s31
    %p45 = scmp.eq.s32.totalorder %s23, 3
    %p46 = por %p44, %p45
    %p48 = scmp.ne.s32.totalorder %s31, %s47
    %p49 = scmp.eq.s32.totalorder %s23, 0
    %p50 = por %p48, %p49
    %s51 = ssub.s32 %s17, %s24
    %p52 = scmp.eq.s32.totalorder %s51, 0
    %s54 = sadd.s32 %s53, 1
    %s55 = scalar_select %p52, %s53, %s54
    %p58 = pneg %p52
    %p59 = scmp.eq.s32.totalorder %s17, 3
    %p60 = por %p58, %p59
    %p61 = scmp.ne.s32.totalorder %s53, %s56
    %p62 = scmp.eq.s32.totalorder %s17, 0
    %p63 = por %p61, %p62
    %p64 = scmp.ne.s32.totalorder %s53, %s56
    %p65 = scmp.eq.s32.totalorder %s22, 3
    %p66 = por %p64, %p65
    %p67 = scmp.ne.s32.totalorder %s56, %s57
    %p68 = scmp.eq.s32.totalorder %s22, 0
    %p69 = por %p67, %p68
    %p70 = scmp.ne.s32.totalorder %s56, %s57
    %p71 = scmp.eq.s32.totalorder %s23, 3
    %p72 = por %p70, %p71
    %p74 = scmp.ne.s32.totalorder %s57, %s73
    %p75 = scmp.eq.s32.totalorder %s23, 0
    %p76 = por %p74, %p75
    %s78 = sadd.s32 %s77, 1
    %p81 = scmp.eq.s32.totalorder %s17, 3
    %p82 = scmp.ne.s32.totalorder %s77, %s79
    %p83 = scmp.eq.s32.totalorder %s17, 0
    %p84 = por %p82, %p83
    %p85 = scmp.ne.s32.totalorder %s77, %s79
    %p86 = scmp.eq.s32.totalorder %s22, 3
    %p87 = por %p85, %p86
    %p88 = scmp.ne.s32.totalorder %s79, %s80
    %p89 = scmp.eq.s32.totalorder %s22, 0
    %p90 = por %p88, %p89
    %p91 = scmp.ne.s32.totalorder %s79, %s80
    %p92 = scmp.eq.s32.totalorder %s23, 3
    %p93 = por %p91, %p92
    %p95 = scmp.ne.s32.totalorder %s80, %s94
    %p96 = scmp.eq.s32.totalorder %s23, 0
    %p97 = por %p95, %p96
    %s99 = sadd.s32 %s98, 1
    %p102 = scmp.eq.s32.totalorder %s17, 3
    %p103 = scmp.ne.s32.totalorder %s98, %s100
    %p104 = scmp.eq.s32.totalorder %s17, 0
    %p105 = por %p103, %p104
    %p106 = scmp.ne.s32.totalorder %s98, %s100
    %p107 = scmp.eq.s32.totalorder %s22, 3
    %p108 = por %p106, %p107
    %p109 = scmp.ne.s32.totalorder %s100, %s101
    %p110 = scmp.eq.s32.totalorder %s22, 0
    %p111 = por %p109, %p110
    %p112 = scmp.ne.s32.totalorder %s100, %s101
    %p113 = scmp.eq.s32.totalorder %s23, 3
    %p114 = por %p112, %p113
    %p116 = scmp.ne.s32.totalorder %s101, %s115
    %p117 = scmp.eq.s32.totalorder %s23, 0
    %p118 = por %p116, %p117
    %s120 = sadd.s32 %s119, 1
    %p123 = scmp.eq.s32.totalorder %s17, 3
    %p124 = scmp.ne.s32.totalorder %s119, %s121
    %p125 = scmp.eq.s32.totalorder %s17, 0
    %p126 = por %p124, %p125
    %p127 = scmp.ne.s32.totalorder %s119, %s121
    %p128 = scmp.eq.s32.totalorder %s22, 3
    %p129 = por %p127, %p128
    %p130 = scmp.ne.s32.totalorder %s121, %s122
    %p131 = scmp.eq.s32.totalorder %s22, 0
    %p132 = por %p130, %p131
    %p133 = scmp.ne.s32.totalorder %s121, %s122
    %p134 = scmp.eq.s32.totalorder %s23, 3
    %p135 = por %p133, %p134
    %p137 = scmp.ne.s32.totalorder %s122, %s136
    %p138 = scmp.eq.s32.totalorder %s23, 0
    %p139 = por %p137, %p138
    %s141 = sadd.s32 %s140, 1
    %p144 = scmp.eq.s32.totalorder %s17, 3
    %p145 = scmp.ne.s32.totalorder %s140, %s142
    %p146 = scmp.eq.s32.totalorder %s17, 0
    %p147 = por %p145, %p146
    %p148 = scmp.ne.s32.totalorder %s140, %s142
    %p149 = scmp.eq.s32.totalorder %s22, 3
    %p150 = por %p148, %p149
    %p151 = scmp.ne.s32.totalorder %s142, %s143
    %p152 = scmp.eq.s32.totalorder %s22, 0
    %p153 = por %p151, %p152
    %p154 = scmp.ne.s32.totalorder %s142, %s143
    %p155 = scmp.eq.s32.totalorder %s23, 3
    %p156 = por %p154, %p155
    %p158 = scmp.ne.s32.totalorder %s143, %s157
    %p159 = scmp.eq.s32.totalorder %s23, 0
    %p160 = por %p158, %p159
    %s162 = sadd.s32 %s161, 1
    %p165 = scmp.eq.s32.totalorder %s17, 3
    %p166 = scmp.ne.s32.totalorder %s161, %s163
    %p167 = scmp.eq.s32.totalorder %s17, 0
    %p168 = por %p166, %p167
    %p169 = scmp.ne.s32.totalorder %s161, %s163
    %p170 = scmp.eq.s32.totalorder %s22, 3
    %p171 = por %p169, %p170
    %p172 = scmp.ne.s32.totalorder %s163, %s164
    %p173 = scmp.eq.s32.totalorder %s22, 0
    %p174 = por %p172, %p173
    %p175 = scmp.ne.s32.totalorder %s163, %s164
    %p176 = scmp.eq.s32.totalorder %s23, 3
    %p177 = por %p175, %p176
    %p179 = scmp.ne.s32.totalorder %s164, %s178
    %p180 = scmp.eq.s32.totalorder %s23, 0
    %p181 = por %p179, %p180
    %s183 = sadd.s32 %s182, 1
    %p186 = scmp.eq.s32.totalorder %s17, 3
    %p187 = scmp.ne.s32.totalorder %s182, %s184
    %p188 = scmp.eq.s32.totalorder %s17, 0
    %p189 = por %p187, %p188
    %p190 = scmp.ne.s32.totalorder %s182, %s184
    %p191 = scmp.eq.s32.totalorder %s22, 3
    %p192 = por %p190, %p191
    %p193 = scmp.ne.s32.totalorder %s184, %s185
    %p194 = scmp.eq.s32.totalorder %s22, 0
    %p195 = por %p193, %p194
    %p196 = scmp.ne.s32.totalorder %s184, %s185
    %p197 = scmp.eq.s32.totalorder %s23, 3
    %p198 = por %p196, %p197
    %p200 = scmp.ne.s32.totalorder %s185, %s199
    %p201 = scmp.eq.s32.totalorder %s23, 0
    %p202 = por %p200, %p201
    %s204 = sadd.s32 %s203, 1
    %p207 = scmp.eq.s32.totalorder %s17, 3
    %p208 = scmp.ne.s32.totalorder %s203, %s205
    %p209 = scmp.eq.s32.totalorder %s17, 0
    %p210 = por %p208, %p209
    %p211 = scmp.ne.s32.totalorder %s203, %s205
    %p212 = scmp.eq.s32.totalorder %s22, 3
    %p213 = por %p211, %p212
    %p214 = scmp.ne.s32.totalorder %s205, %s206
    %p215 = scmp.eq.s32.totalorder %s22, 0
    %p216 = por %p214, %p215
    %p217 = scmp.ne.s32.totalorder %s205, %s206
    %p218 = scmp.eq.s32.totalorder %s23, 3
    %p219 = por %p217, %p218
    %p221 = scmp.ne.s32.totalorder %s206, %s220
    %p222 = scmp.eq.s32.totalorder %s23, 0
    %p223 = por %p221, %p222
    %s224 = ssub.s32 %s17, %s24
    %p225 = scmp.eq.s32.totalorder %s224, 0
    %s227 = sadd.s32 %s226, 1
    %s228 = scalar_select %p225, %s226, %s227
    %p231 = pneg %p225
    %p232 = scmp.eq.s32.totalorder %s17, 3
    %p233 = por %p231, %p232
    %p234 = scmp.ne.s32.totalorder %s226, %s229
    %p235 = scmp.eq.s32.totalorder %s17, 0
    %p236 = por %p234, %p235
    %p237 = scmp.ne.s32.totalorder %s226, %s229
    %p238 = scmp.eq.s32.totalorder %s22, 3
    %p239 = por %p237, %p238
    %p240 = scmp.ne.s32.totalorder %s229, %s230
    %p241 = scmp.eq.s32.totalorder %s22, 0
    %p242 = por %p240, %p241
    %p243 = scmp.ne.s32.totalorder %s229, %s230
    %p244 = scmp.eq.s32.totalorder %s23, 3
    %p245 = por %p243, %p244
    %p247 = scmp.ne.s32.totalorder %s230, %s246
    %p248 = scmp.eq.s32.totalorder %s23, 0
    %p249 = por %p247, %p248
    %p250 = scmp.le.s32.totalorder 1, %s17
    %p251 = scmp.lt.s32.totalorder %s17, 5
    %p252 = pnand %p250, %p251
    %p253 = pneg %p252
    // Predicated region
    $region9: #{net2d_forward.17} parent=5 // pred_check
      _
    $region10: #{net2d_forward.17} parent=5 // pred_check_branch
      %255 = sbr.rel (%p252) target = $region12
    $region11: #{net2d_forward.17} parent=5 // pred_region
      %s256 = ssub.s32 %s17, 1
      // Predicated region
      $region13: #{net2d_forward.17} parent=11 // pred_check
        %p257 = pneg %p90
      $region14: #{net2d_forward.17} parent=11 // pred_check_branch
        %259 = sbr.rel (%p257) target = $region16
      $region15: #{net2d_forward.17} parent=11 // pred_region
        _
      $region16: #{net2d_forward.17} parent=11 // pred_fallthru
        _
      // Predicated region
      $region17: #{net2d_forward.17} parent=11 // pred_check
        %p260 = pneg %p111
      $region18: #{net2d_forward.17} parent=11 // pred_check_branch
        %262 = sbr.rel (%p260) target = $region20
      $region19: #{net2d_forward.17} parent=11 // pred_region
        _
      $region20: #{net2d_forward.17} parent=11 // pred_fallthru
        _
      // Predicated region
      $region21: #{net2d_forward.17} parent=11 // pred_check
        %p263 = pneg %p132
      $region22: #{net2d_forward.17} parent=11 // pred_check_branch
        %265 = sbr.rel (%p263) target = $region24
      $region23: #{net2d_forward.17} parent=11 // pred_region
        _
      $region24: #{net2d_forward.17} parent=11 // pred_fallthru
        _
      // Predicated region
      $region25: #{net2d_forward.17} parent=11 // pred_check
        %p266 = pneg %p153
      $region26: #{net2d_forward.17} parent=11 // pred_check_branch
        %268 = sbr.rel (%p266) target = $region28
      $region27: #{net2d_forward.17} parent=11 // pred_region
        _
      $region28: #{net2d_forward.17} parent=11 // pred_fallthru
        _
      // Predicated region
      $region29: #{net2d_forward.17} parent=11 // pred_check
        %p269 = pneg %p174
      $region30: #{net2d_forward.17} parent=11 // pred_check_branch
        %271 = sbr.rel (%p269) target = $region32
      $region31: #{net2d_forward.17} parent=11 // pred_region
        _
      $region32: #{net2d_forward.17} parent=11 // pred_fallthru
        _
      // Predicated region
      $region33: #{net2d_forward.17} parent=11 // pred_check
        %p272 = pneg %p195
      $region34: #{net2d_forward.17} parent=11 // pred_check_branch
        %274 = sbr.rel (%p272) target = $region36
      $region35: #{net2d_forward.17} parent=11 // pred_region
        _
      $region36: #{net2d_forward.17} parent=11 // pred_fallthru
        _
      // Predicated region
      $region37: #{net2d_forward.17} parent=11 // pred_check
        %p275 = pneg %p216
      $region38: #{net2d_forward.17} parent=11 // pred_check_branch
        %277 = sbr.rel (%p275) target = $region40
      $region39: #{net2d_forward.17} parent=11 // pred_region
        _
      $region40: #{net2d_forward.17} parent=11 // pred_fallthru
        _
    $region12: #{net2d_forward.17} parent=5 // pred_fallthru
      _
    %p278 = scmp.lt.s32.totalorder %s17, 4
    // Predicated region
    $region41: #{net2d_forward.17} parent=5 // pred_check
      %p279 = pneg %p278
    $region42: #{net2d_forward.17} parent=5 // pred_check_branch
      %281 = sbr.rel (%p279) target = $region44
    $region43: #{net2d_forward.17} parent=5 // pred_region
      // Predicated region
      $region45: #{net2d_forward.17} parent=43 // pred_check
        %p282 = pneg %p37
      $region46: #{net2d_forward.17} parent=43 // pred_check_branch
        %284 = sbr.rel (%p282) target = $region48
      $region47: #{net2d_forward.17} parent=43 // pred_region
        %s285 = smul.u32 3, %s17
        %p286 = scmp.lt.s32.totalorder %s285, 11
        %s287 = scalar_select %p286, %s285, 11
        %s288 = smul.addr %s287, 4
        %s289 = scalar_lea.vmem %s0, %s288
        %s290 = smul.u32 3, %s17
      $region48: #{net2d_forward.17} parent=43 // pred_fallthru
        _
      // Predicated region
      $region49: #{net2d_forward.17} parent=43 // pred_check
        %p291 = pneg %p63
      $region50: #{net2d_forward.17} parent=43 // pred_check_branch
        %293 = sbr.rel (%p291) target = $region52
      $region51: #{net2d_forward.17} parent=43 // pred_region
        %s294 = smul.u32 3, %s17
        %p295 = scmp.lt.s32.totalorder %s294, 11
        %s296 = scalar_select %p295, %s294, 11
        %s297 = smul.addr %s296, 8
        %s298 = scalar_lea.vmem %s1, %s297
        %s299 = smul.u32 3, %s17
      $region52: #{net2d_forward.17} parent=43 // pred_fallthru
        _
    $region44: #{net2d_forward.17} parent=5 // pred_fallthru
      _
    %p300 = scmp.le.s32.totalorder 1, %s17
    %p301 = scmp.lt.s32.totalorder %s17, 5
    %p302 = pnand %p300, %p301
    %p303 = pneg %p302
    // Predicated region
    $region53: #{net2d_forward.17} parent=5 // pred_check
      _
    $region54: #{net2d_forward.17} parent=5 // pred_check_branch
      %305 = sbr.rel (%p302) target = $region56
    $region55: #{net2d_forward.17} parent=5 // pred_region
      %s306 = ssub.s32 %s17, 1
      %s307 = smul.u32 3, %s22
      %p308 = scmp.lt.s32.totalorder %s307, 11
      %s309 = scalar_select %p308, %s307, 11
      %s310 = smul.addr %s309, 4
      %s311 = scalar_lea.vmem %s0, %s310
      %p312 = pneg %p43
      %p313 = pneg %p40
      %s314 = smul.u32 3, %s22
      %p315 = scmp.lt.s32.totalorder %s314, 11
      %s316 = scalar_select %p315, %s314, 11
      %s317 = smul.addr %s316, 8
      %s318 = scalar_lea.vmem %s1, %s317
      %p319 = pneg %p69
      %p320 = pneg %p66
      %p321 = pneg %p90
      %p322 = pneg %p87
      %p323 = pneg %p111
      %p324 = pneg %p108
      %p325 = pneg %p132
      %p326 = pneg %p129
      %p327 = pneg %p153
      %p328 = pneg %p150
      %p329 = pneg %p174
      %p330 = pneg %p171
      %p331 = pneg %p195
      %p332 = pneg %p192
      %p333 = pneg %p216
      %p334 = pneg %p213
      %p335 = pneg %p242
      %p336 = pneg %p239
      %s337 = smul.u32 3, %s22
      %p338 = scmp.lt.s32.totalorder %s337, 11
      %s339 = scalar_select %p338, %s337, 11
      %s340 = scalar_lea.vmem %s9, %s339
      %s341 = smul.u32 3, %s22
      %p342 = scmp.lt.s32.totalorder %s341, 11
      %s343 = scalar_select %p342, %s341, 11
      %s344 = smul.addr %s343, 4
      %s345 = scalar_lea.vmem %s0, %s344
      %s346 = smul.u32 3, %s22
      %s347 = smul.u32 3, %s22
      %p348 = scmp.lt.s32.totalorder %s347, 11
      %s349 = scalar_select %p348, %s347, 11
      %s350 = smul.addr %s349, 8
      %s351 = scalar_lea.vmem %s1, %s350
      %s352 = smul.u32 3, %s22
      %s353 = smul.u32 3, %s22
      %p354 = scmp.lt.s32.totalorder %s353, 11
      %s355 = scalar_select %p354, %s353, 11
      %s356 = scalar_lea.vmem %s9, %s355
      %s357 = smul.u32 3, %s22
      %v359 = vld [vmem:[%s2] sm:$0xf]
      %v360 = vld [vmem:[%s345] sm:$0xff]
      %v361 = vld [vmem:[%s345 + $0x8] sm:$0xf]
      %v362 = vld [vmem:[%s3] sm:$0xff]
      %364 = vset.pattern.permute.xlu0 0
      %365 = vperm.xlu0 %364, %v362
      %v366 = vpop.permute.xlu0 %365
      %v370 = vunpack.c.l.b16 %v360
      %v371 = vunpack.c.h.b16 %v360
      %v372 = vunpack.c.l.b16 %v361
      %v373 = vpack.c.b16 %v370, %v370
      %v374 = vpack.c.b16 %v371, %v371
      %v375 = vpack.c.b16 %v372, %v372
      %vm376 = vcmask 64512
      %v378 = vsel %vm376, %v359, 0
      %vm380 = vcmask 1043456
      %v382 = vsel %vm380, %v373, 0
      %v385 = vsel %vm380, %v374, 0
      %v388 = vsel %vm380, %v375, 0
      %390 = vmatpush.bf16.msra.mxu0 0
      %391 = vmatpush.bf16.msra.mxu0 0
      %392 = vmatpush.bf16.msra.mxu0 0
      %393 = vmatpush.bf16.msra.mxu0 0
      %394 = vmatpush.bf16.msra.mxu0 0
      %395 = vmatpush.bf16.msra.mxu0 0
      %396 = vmatpush.bf16.msra.mxu0 0
      %397 = vmatpush.bf16.msra.mxu0 %v382
      %398 = vmatmul.bf16.gmra.mxu0 %v378
      %v399 = vpop.f32.mrf.mxu0
      %v400 = vadd.f32 %v366, %v399
      %v401 = vpop.f32.mrf.mxu0
      %402 = vdwg.mxu0
      %403 = vmatpush.bf16.msra.mxu0 0
      %404 = vmatpush.bf16.msra.mxu0 0
      %405 = vmatpush.bf16.msra.mxu0 0
      %406 = vmatpush.bf16.msra.mxu0 0
      %407 = vmatpush.bf16.msra.mxu0 0
      %408 = vmatpush.bf16.msra.mxu0 0
      %409 = vmatpush.bf16.msra.mxu0 0
      %410 = vmatpush.bf16.msra.mxu0 %v385
      %411 = vmatmul.bf16.gmra.mxu0 %v378
      %v412 = vpop.f32.mrf.mxu0
      %v413 = vadd.f32 %v366, %v412
      %v414 = vpop.f32.mrf.mxu0
      %415 = vdwg.mxu0
      %416 = vmatpush.bf16.msra.mxu0 0
      %417 = vmatpush.bf16.msra.mxu0 0
      %418 = vmatpush.bf16.msra.mxu0 0
      %419 = vmatpush.bf16.msra.mxu0 0
      %420 = vmatpush.bf16.msra.mxu0 0
      %421 = vmatpush.bf16.msra.mxu0 0
      %422 = vmatpush.bf16.msra.mxu0 0
      %423 = vmatpush.bf16.msra.mxu0 %v388
      %424 = vmatmul.bf16.gmra.mxu0 %v378
      %v425 = vpop.f32.mrf.mxu0
      %v426 = vadd.f32 %v366, %v425
      %v427 = vpop.f32.mrf.mxu0
      %428 = vdwg.mxu0
      %v429 = vld [vmem:[%s351] sm:$0xff]
      %v430 = vld [vmem:[%s351 + $0x8] sm:$0xff]
      %v431 = vld [vmem:[%s351 + $0x10] sm:$0xff]
      %v432 = vadd.f32 %v429, %v400
      %v433 = vadd.f32 %v430, %v413
      %v434 = vadd.f32 %v431, %v426
      %v435 = vld [vmem:[%s4] sm:$0xff]
      %437 = vset.pattern.permute.xlu0 0
      %438 = vperm.xlu0 %437, %v435
      %v439 = vpop.permute.xlu0 %438
      %v441 = vadd.f32 %v432, %v439
      %v442 = vadd.f32 %v433, %v439
      %v443 = vadd.f32 %v434, %v439
      %v444 = vpack.c.bf16 %v441, %v441
      %v445 = vpack.c.bf16 %v442, %v442
      %v446 = vpack.c.bf16 %v443, %v443
      %v447 = vld [vmem:[%s5] sm:$0xf]
      %v448 = vld [vmem:[%s5 + $0x4] sm:$0xf]
      %v449 = vld [vmem:[%s5 + $0x8] sm:$0xf]
      %v450 = vld [vmem:[%s5 + $0xc] sm:$0xf]
      %v451 = vld [vmem:[%s5 + $0x10] sm:$0xf]
      %v452 = vld [vmem:[%s5 + $0x14] sm:$0xf]
      %v453 = vld [vmem:[%s5 + $0x18] sm:$0xf]
      %v454 = vld [vmem:[%s5 + $0x1c] sm:$0xf]
      %v455 = vld [vmem:[%s5 + $0x20] sm:$0xf]
      %v456 = vld [vmem:[%s5 + $0x24] sm:$0xf]
      %v457 = vld [vmem:[%s5 + $0x28] sm:$0xf]
      %v458 = vld [vmem:[%s5 + $0x2c] sm:$0xf]
      %v459 = vld [vmem:[%s5 + $0x30] sm:$0xf]
      %v460 = vld [vmem:[%s5 + $0x34] sm:$0xf]
      %v461 = vld [vmem:[%s5 + $0x38] sm:$0xf]
      %v462 = vld [vmem:[%s5 + $0x3c] sm:$0xf]
      %v463 = vld [vmem:[%s6] sm:$0xff]
      %v464 = vld [vmem:[%s6 + $0x8] sm:$0xff]
      %v465 = vld [vmem:[%s6 + $0x10] sm:$0xff]
      %v466 = vld [vmem:[%s6 + $0x18] sm:$0xff]
      %v467 = vld [vmem:[%s6 + $0x20] sm:$0xff]
      %v468 = vld [vmem:[%s6 + $0x28] sm:$0xff]
      %v469 = vld [vmem:[%s6 + $0x30] sm:$0xff]
      %v470 = vld [vmem:[%s6 + $0x38] sm:$0xff]
      %v471 = vld [vmem:[%s6 + $0x40] sm:$0xff]
      %v472 = vld [vmem:[%s6 + $0x48] sm:$0xff]
      %v473 = vld [vmem:[%s6 + $0x50] sm:$0xff]
      %v474 = vld [vmem:[%s6 + $0x58] sm:$0xff]
      %v475 = vld [vmem:[%s6 + $0x60] sm:$0xff]
      %v476 = vld [vmem:[%s6 + $0x68] sm:$0xff]
      %v477 = vld [vmem:[%s6 + $0x70] sm:$0xff]
      %v478 = vld [vmem:[%s6 + $0x78] sm:$0xff]
      %480 = vset.pattern.permute.xlu0 0
      %481 = vperm.xlu0 %480, %v463
      %v482 = vpop.permute.xlu0 %481
      %485 = vset.pattern.permute.xlu0 0
      %486 = vperm.xlu0 %485, %v464
      %v487 = vpop.permute.xlu0 %486
      %490 = vset.pattern.permute.xlu0 0
      %491 = vperm.xlu0 %490, %v465
      %v492 = vpop.permute.xlu0 %491
      %495 = vset.pattern.permute.xlu0 0
      %496 = vperm.xlu0 %495, %v466
      %v497 = vpop.permute.xlu0 %496
      %500 = vset.pattern.permute.xlu0 0
      %501 = vperm.xlu0 %500, %v467
      %v502 = vpop.permute.xlu0 %501
      %505 = vset.pattern.permute.xlu0 0
      %506 = vperm.xlu0 %505, %v468
      %v507 = vpop.permute.xlu0 %506
      %510 = vset.pattern.permute.xlu0 0
      %511 = vperm.xlu0 %510, %v469
      %v512 = vpop.permute.xlu0 %511
      %515 = vset.pattern.permute.xlu0 0
      %516 = vperm.xlu0 %515, %v470
      %v517 = vpop.permute.xlu0 %516
      %520 = vset.pattern.permute.xlu0 0
      %521 = vperm.xlu0 %520, %v471
      %v522 = vpop.permute.xlu0 %521
      %525 = vset.pattern.permute.xlu0 0
      %526 = vperm.xlu0 %525, %v472
      %v527 = vpop.permute.xlu0 %526
      %530 = vset.pattern.permute.xlu0 0
      %531 = vperm.xlu0 %530, %v473
      %v532 = vpop.permute.xlu0 %531
      %535 = vset.pattern.permute.xlu0 0
      %536 = vperm.xlu0 %535, %v474
      %v537 = vpop.permute.xlu0 %536
      %540 = vset.pattern.permute.xlu0 0
      %541 = vperm.xlu0 %540, %v475
      %v542 = vpop.permute.xlu0 %541
      %545 = vset.pattern.permute.xlu0 0
      %546 = vperm.xlu0 %545, %v476
      %v547 = vpop.permute.xlu0 %546
      %550 = vset.pattern.permute.xlu0 0
      %551 = vperm.xlu0 %550, %v477
      %v552 = vpop.permute.xlu0 %551
      %555 = vset.pattern.permute.xlu0 0
      %556 = vperm.xlu0 %555, %v478
      %v557 = vpop.permute.xlu0 %556
      %v575 = vunpack.c.l.b16 %v447
      %v576 = vunpack.c.l.b16 %v448
      %v577 = vunpack.c.l.b16 %v449
      %v578 = vunpack.c.l.b16 %v450
      %v579 = vunpack.c.l.b16 %v451
      %v580 = vunpack.c.l.b16 %v452
      %v581 = vunpack.c.l.b16 %v453
      %v582 = vunpack.c.l.b16 %v454
      %v583 = vunpack.c.l.b16 %v455
      %v584 = vunpack.c.l.b16 %v456
      %v585 = vunpack.c.l.b16 %v457
      %v586 = vunpack.c.l.b16 %v458
      %v587 = vunpack.c.l.b16 %v459
      %v588 = vunpack.c.l.b16 %v460
      %v589 = vunpack.c.l.b16 %v461
      %v590 = vunpack.c.l.b16 %v462
      %v591 = vpack.c.b16 %v576, %v575
      %v592 = vpack.c.b16 %v578, %v577
      %v593 = vpack.c.b16 %v580, %v579
      %v594 = vpack.c.b16 %v582, %v581
      %v595 = vpack.c.b16 %v584, %v583
      %v596 = vpack.c.b16 %v586, %v585
      %v597 = vpack.c.b16 %v588, %v587
      %v598 = vpack.c.b16 %v590, %v589
      %v600 = vsel %vm376, %v591, 0
      %v603 = vsel %vm376, %v592, 0
      %v606 = vsel %vm376, %v593, 0
      %v609 = vsel %vm376, %v594, 0
      %v612 = vsel %vm376, %v595, 0
      %v615 = vsel %vm376, %v596, 0
      %v618 = vsel %vm376, %v597, 0
      %v621 = vsel %vm376, %v598, 0
      %v624 = vsel %vm380, %v444, 0
      %v627 = vsel %vm380, %v445, 0
      %v630 = vsel %vm380, %v446, 0
      %632 = vmatpush.bf16.msra.mxu0 0
      %633 = vmatpush.bf16.msra.mxu0 0
      %634 = vmatpush.bf16.msra.mxu0 0
      %635 = vmatpush.bf16.msra.mxu0 0
      %636 = vmatpush.bf16.msra.mxu0 0
      %637 = vmatpush.bf16.msra.mxu0 0
      %638 = vmatpush.bf16.msra.mxu0 0
      %639 = vmatpush.bf16.msra.mxu0 %v624
      %640 = vmatmul.bf16.gmra.mxu0 %v600
      %v641 = vpop.f32.mrf.mxu0
      %v642 = vadd.f32 %v482, %v641
      %v643 = vpop.f32.mrf.mxu0
      %v644 = vadd.f32 %v487, %v643
      %645 = vmatmul.bf16.gmra.mxu0 %v603
      %v646 = vpop.f32.mrf.mxu0
      %v647 = vadd.f32 %v492, %v646
      %v648 = vpop.f32.mrf.mxu0
      %v649 = vadd.f32 %v497, %v648
      %650 = vmatmul.bf16.gmra.mxu0 %v606
      %v651 = vpop.f32.mrf.mxu0
      %v652 = vadd.f32 %v502, %v651
      %v653 = vpop.f32.mrf.mxu0
      %v654 = vadd.f32 %v507, %v653
      %655 = vmatmul.bf16.gmra.mxu0 %v609
      %v656 = vpop.f32.mrf.mxu0
      %v657 = vadd.f32 %v512, %v656
      %v658 = vpop.f32.mrf.mxu0
      %v659 = vadd.f32 %v517, %v658
      %660 = vmatmul.bf16.gmra.mxu0 %v612
      %v661 = vpop.f32.mrf.mxu0
      %v662 = vadd.f32 %v522, %v661
      %v663 = vpop.f32.mrf.mxu0
      %v664 = vadd.f32 %v527, %v663
      %665 = vmatmul.bf16.gmra.mxu0 %v615
      %v666 = vpop.f32.mrf.mxu0
      %v667 = vadd.f32 %v532, %v666
      %v668 = vpop.f32.mrf.mxu0
      %v669 = vadd.f32 %v537, %v668
      %670 = vmatmul.bf16.gmra.mxu0 %v618
      %v671 = vpop.f32.mrf.mxu0
      %v672 = vadd.f32 %v542, %v671
      %v673 = vpop.f32.mrf.mxu0
      %v674 = vadd.f32 %v547, %v673
      %675 = vmatmul.bf16.gmra.mxu0 %v621
      %v676 = vpop.f32.mrf.mxu0
      %v677 = vadd.f32 %v552, %v676
      %v678 = vpop.f32.mrf.mxu0
      %v679 = vadd.f32 %v557, %v678
      %680 = vdwg.mxu0
      %681 = vmatpush.bf16.msra.mxu0 0
      %682 = vmatpush.bf16.msra.mxu0 0
      %683 = vmatpush.bf16.msra.mxu0 0
      %684 = vmatpush.bf16.msra.mxu0 0
      %685 = vmatpush.bf16.msra.mxu0 0
      %686 = vmatpush.bf16.msra.mxu0 0
      %687 = vmatpush.bf16.msra.mxu0 0
      %688 = vmatpush.bf16.msra.mxu0 %v627
      %689 = vmatmul.bf16.gmra.mxu0 %v600
      %v690 = vpop.f32.mrf.mxu0
      %v691 = vadd.f32 %v482, %v690
      %v692 = vpop.f32.mrf.mxu0
      %v693 = vadd.f32 %v487, %v692
      %694 = vmatmul.bf16.gmra.mxu0 %v603
      %v695 = vpop.f32.mrf.mxu0
      %v696 = vadd.f32 %v492, %v695
      %v697 = vpop.f32.mrf.mxu0
      %v698 = vadd.f32 %v497, %v697
      %699 = vmatmul.bf16.gmra.mxu0 %v606
      %v700 = vpop.f32.mrf.mxu0
      %v701 = vadd.f32 %v502, %v700
      %v702 = vpop.f32.mrf.mxu0
      %v703 = vadd.f32 %v507, %v702
      %704 = vmatmul.bf16.gmra.mxu0 %v609
      %v705 = vpop.f32.mrf.mxu0
      %v706 = vadd.f32 %v512, %v705
      %v707 = vpop.f32.mrf.mxu0
      %v708 = vadd.f32 %v517, %v707
      %709 = vmatmul.bf16.gmra.mxu0 %v612
      %v710 = vpop.f32.mrf.mxu0
      %v711 = vadd.f32 %v522, %v710
      %v712 = vpop.f32.mrf.mxu0
      %v713 = vadd.f32 %v527, %v712
      %714 = vmatmul.bf16.gmra.mxu0 %v615
      %v715 = vpop.f32.mrf.mxu0
      %v716 = vadd.f32 %v532, %v715
      %v717 = vpop.f32.mrf.mxu0
      %v718 = vadd.f32 %v537, %v717
      %719 = vmatmul.bf16.gmra.mxu0 %v618
      %v720 = vpop.f32.mrf.mxu0
      %v721 = vadd.f32 %v542, %v720
      %v722 = vpop.f32.mrf.mxu0
      %v723 = vadd.f32 %v547, %v722
      %724 = vmatmul.bf16.gmra.mxu0 %v621
      %v725 = vpop.f32.mrf.mxu0
      %v726 = vadd.f32 %v552, %v725
      %v727 = vpop.f32.mrf.mxu0
      %v728 = vadd.f32 %v557, %v727
      %729 = vdwg.mxu0
      %730 = vmatpush.bf16.msra.mxu0 0
      %731 = vmatpush.bf16.msra.mxu0 0
      %732 = vmatpush.bf16.msra.mxu0 0
      %733 = vmatpush.bf16.msra.mxu0 0
      %734 = vmatpush.bf16.msra.mxu0 0
      %735 = vmatpush.bf16.msra.mxu0 0
      %736 = vmatpush.bf16.msra.mxu0 0
      %737 = vmatpush.bf16.msra.mxu0 %v630
      %738 = vmatmul.bf16.gmra.mxu0 %v600
      %v739 = vpop.f32.mrf.mxu0
      %v740 = vadd.f32 %v482, %v739
      %v741 = vpop.f32.mrf.mxu0
      %v742 = vadd.f32 %v487, %v741
      %743 = vmatmul.bf16.gmra.mxu0 %v603
      %v744 = vpop.f32.mrf.mxu0
      %v745 = vadd.f32 %v492, %v744
      %v746 = vpop.f32.mrf.mxu0
      %v747 = vadd.f32 %v497, %v746
      %748 = vmatmul.bf16.gmra.mxu0 %v606
      %v749 = vpop.f32.mrf.mxu0
      %v750 = vadd.f32 %v502, %v749
      %v751 = vpop.f32.mrf.mxu0
      %v752 = vadd.f32 %v507, %v751
      %753 = vmatmul.bf16.gmra.mxu0 %v609
      %v754 = vpop.f32.mrf.mxu0
      %v755 = vadd.f32 %v512, %v754
      %v756 = vpop.f32.mrf.mxu0
      %v757 = vadd.f32 %v517, %v756
      %758 = vmatmul.bf16.gmra.mxu0 %v612
      %v759 = vpop.f32.mrf.mxu0
      %v760 = vadd.f32 %v522, %v759
      %v761 = vpop.f32.mrf.mxu0
      %v762 = vadd.f32 %v527, %v761
      %763 = vmatmul.bf16.gmra.mxu0 %v615
      %v764 = vpop.f32.mrf.mxu0
      %v765 = vadd.f32 %v532, %v764
      %v766 = vpop.f32.mrf.mxu0
      %v767 = vadd.f32 %v537, %v766
      %768 = vmatmul.bf16.gmra.mxu0 %v618
      %v769 = vpop.f32.mrf.mxu0
      %v770 = vadd.f32 %v542, %v769
      %v771 = vpop.f32.mrf.mxu0
      %v772 = vadd.f32 %v547, %v771
      %773 = vmatmul.bf16.gmra.mxu0 %v621
      %v774 = vpop.f32.mrf.mxu0
      %v775 = vadd.f32 %v552, %v774
      %v776 = vpop.f32.mrf.mxu0
      %v777 = vadd.f32 %v557, %v776
      %778 = vdwg.mxu0
      %v779 = vmax.f32 %v642, 0.0
      %v780 = vmax.f32 %v691, 0.0
      %v781 = vmax.f32 %v740, 0.0
      %v782 = vmax.f32 %v644, 0.0
      %v783 = vmax.f32 %v693, 0.0
      %v784 = vmax.f32 %v742, 0.0
      %v785 = vmax.f32 %v647, 0.0
      %v786 = vmax.f32 %v696, 0.0
      %v787 = vmax.f32 %v745, 0.0
      %v788 = vmax.f32 %v649, 0.0
      %v789 = vmax.f32 %v698, 0.0
      %v790 = vmax.f32 %v747, 0.0
      %v791 = vmax.f32 %v652, 0.0
      %v792 = vmax.f32 %v701, 0.0
      %v793 = vmax.f32 %v750, 0.0
      %v794 = vmax.f32 %v654, 0.0
      %v795 = vmax.f32 %v703, 0.0
      %v796 = vmax.f32 %v752, 0.0
      %v797 = vmax.f32 %v657, 0.0
      %v798 = vmax.f32 %v706, 0.0
      %v799 = vmax.f32 %v755, 0.0
      %v800 = vmax.f32 %v659, 0.0
      %v801 = vmax.f32 %v708, 0.0
      %v802 = vmax.f32 %v757, 0.0
      %v803 = vmax.f32 %v662, 0.0
      %v804 = vmax.f32 %v711, 0.0
      %v805 = vmax.f32 %v760, 0.0
      %v806 = vmax.f32 %v664, 0.0
      %v807 = vmax.f32 %v713, 0.0
      %v808 = vmax.f32 %v762, 0.0
      %v809 = vmax.f32 %v667, 0.0
      %v810 = vmax.f32 %v716, 0.0
      %v811 = vmax.f32 %v765, 0.0
      %v812 = vmax.f32 %v669, 0.0
      %v813 = vmax.f32 %v718, 0.0
      %v814 = vmax.f32 %v767, 0.0
      %v815 = vmax.f32 %v672, 0.0
      %v816 = vmax.f32 %v721, 0.0
      %v817 = vmax.f32 %v770, 0.0
      %v818 = vmax.f32 %v674, 0.0
      %v819 = vmax.f32 %v723, 0.0
      %v820 = vmax.f32 %v772, 0.0
      %v821 = vmax.f32 %v677, 0.0
      %v822 = vmax.f32 %v726, 0.0
      %v823 = vmax.f32 %v775, 0.0
      %v824 = vmax.f32 %v679, 0.0
      %v825 = vmax.f32 %v728, 0.0
      %v826 = vmax.f32 %v777, 0.0
      %v827 = vpack.c.bf16 %v782, %v779
      %v828 = vpack.c.bf16 %v783, %v780
      %v829 = vpack.c.bf16 %v784, %v781
      %v830 = vpack.c.bf16 %v788, %v785
      %v831 = vpack.c.bf16 %v789, %v786
      %v832 = vpack.c.bf16 %v790, %v787
      %v833 = vpack.c.bf16 %v794, %v791
      %v834 = vpack.c.bf16 %v795, %v792
      %v835 = vpack.c.bf16 %v796, %v793
      %v836 = vpack.c.bf16 %v800, %v797
      %v837 = vpack.c.bf16 %v801, %v798
      %v838 = vpack.c.bf16 %v802, %v799
      %v839 = vpack.c.bf16 %v806, %v803
      %v840 = vpack.c.bf16 %v807, %v804
      %v841 = vpack.c.bf16 %v808, %v805
      %v842 = vpack.c.bf16 %v812, %v809
      %v843 = vpack.c.bf16 %v813, %v810
      %v844 = vpack.c.bf16 %v814, %v811
      %v845 = vpack.c.bf16 %v818, %v815
      %v846 = vpack.c.bf16 %v819, %v816
      %v847 = vpack.c.bf16 %v820, %v817
      %v848 = vpack.c.bf16 %v824, %v821
      %v849 = vpack.c.bf16 %v825, %v822
      %v850 = vpack.c.bf16 %v826, %v823
      %v851 = vld [vmem:[%s7] sm:$0x1]
      %v852 = vld [vmem:[#allocation2] sm:$0x1]
      %854 = vset.pattern.permute.xlu0 0
      %855 = vperm.xlu0 %854, %v852
      %v856 = vpop.permute.xlu0 %855
      %v858 = vperm.slane %v856, 0
      %859 = vmatpush.bf16.msra.mxu0 %v848
      %860 = vmatpush.bf16.msra.mxu0 %v845
      %861 = vmatpush.bf16.msra.mxu0 %v842
      %862 = vmatpush.bf16.msra.mxu0 %v839
      %863 = vmatpush.bf16.msra.mxu0 %v836
      %864 = vmatpush.bf16.msra.mxu0 %v833
      %865 = vmatpush.bf16.msra.mxu0 %v830
      %866 = vmatpush.bf16.msra.mxu0 %v827
      %867 = vmatmul.bf16.gmra.mxu0 %v851
      %v868 = vpop.f32.mrf.mxu0
      %v869 = vadd.f32 %v858, %v868
      %v870 = vpop.f32.mrf.mxu0
      %871 = vdwg.mxu0
      %872 = vmatpush.bf16.msra.mxu0 %v849
      %873 = vmatpush.bf16.msra.mxu0 %v846
      %874 = vmatpush.bf16.msra.mxu0 %v843
      %875 = vmatpush.bf16.msra.mxu0 %v840
      %876 = vmatpush.bf16.msra.mxu0 %v837
      %877 = vmatpush.bf16.msra.mxu0 %v834
      %878 = vmatpush.bf16.msra.mxu0 %v831
      %879 = vmatpush.bf16.msra.mxu0 %v828
      %880 = vmatmul.bf16.gmra.mxu0 %v851
      %v881 = vpop.f32.mrf.mxu0
      %v882 = vadd.f32 %v858, %v881
      %v883 = vpop.f32.mrf.mxu0
      %884 = vdwg.mxu0
      %885 = vmatpush.bf16.msra.mxu0 %v850
      %886 = vmatpush.bf16.msra.mxu0 %v847
      %887 = vmatpush.bf16.msra.mxu0 %v844
      %888 = vmatpush.bf16.msra.mxu0 %v841
      %889 = vmatpush.bf16.msra.mxu0 %v838
      %890 = vmatpush.bf16.msra.mxu0 %v835
      %891 = vmatpush.bf16.msra.mxu0 %v832
      %892 = vmatpush.bf16.msra.mxu0 %v829
      %893 = vmatmul.bf16.gmra.mxu0 %v851
      %v894 = vpop.f32.mrf.mxu0
      %v895 = vadd.f32 %v858, %v894
      %v896 = vpop.f32.mrf.mxu0
      %897 = vdwg.mxu0
      %v901 = vrot.slane %v882, 7
      %v902 = vrot.slane %v895, 6
      %vm903 = vcmask 1040384
      %v904 = vsel %vm903, %v869, %v901
      %vm905 = vcmask 1041408
      %v906 = vsel %vm905, %v904, %v902
      %v908 = vlaneseq
      %vm909 = vcmp.ge.s32.totalorder %v908, 0
      %vm910 = vcmp.lt.s32.totalorder %v908, 384
      %vm911 = vmand %vm909, %vm910
      %912 = vst.msk [vmem:[%s356] sm:$0x7] %vm911, %v906
      %s913 = smul.u32 3, %s22
      %p914 = scmp.lt.s32.totalorder %s913, 11
      %s915 = scalar_select %p914, %s913, 11
      %s916 = scalar_lea.vmem %s9, %s915
      // Predicated region
      $region57: #{net2d_forward.17} parent=55 // pred_check
        %p917 = pneg %p239
      $region58: #{net2d_forward.17} parent=55 // pred_check_branch
        %919 = sbr.rel (%p917) target = $region60
      $region59: #{net2d_forward.17} parent=55 // pred_region
        %s920 = smul.u32 3, %s22
      $region60: #{net2d_forward.17} parent=55 // pred_fallthru
        _
    $region56: #{net2d_forward.17} parent=5 // pred_fallthru
      _
    %p921 = scmp.le.s32.totalorder 2, %s17
    // Predicated region
    $region61: #{net2d_forward.17} parent=5 // pred_check
      %p922 = pneg %p921
    $region62: #{net2d_forward.17} parent=5 // pred_check_branch
      %924 = sbr.rel (%p922) target = $region64
    $region63: #{net2d_forward.17} parent=5 // pred_region
      %s925 = ssub.s32 %s17, 2
      // Predicated region
      $region65: #{net2d_forward.17} parent=63 // pred_check
        %p926 = pneg %p245
      $region66: #{net2d_forward.17} parent=63 // pred_check_branch
        %928 = sbr.rel (%p926) target = $region68
      $region67: #{net2d_forward.17} parent=63 // pred_region
        %s929 = smul.u32 3, %s23
        %p930 = scmp.lt.s32.totalorder %s929, 11
        %s931 = scalar_select %p930, %s929, 11
        %s932 = scalar_lea.vmem %s9, %s931
      $region68: #{net2d_forward.17} parent=63 // pred_fallthru
        _
    $region64: #{net2d_forward.17} parent=5 // pred_fallthru
      _
  $region6: #{net2d_forward.17} parent=0 // loop_footer
    %s21 = sadd.s32 1, %s17
  $region7: #{net2d_forward.17} parent=0 // loop_footer_branch
    %16 = sbr.rel target = $region3
  $region8: #{net2d_forward.17} parent=0 // loop_exit
    _

</llo_original>
